<compile_context>
chip_gen: v5e
topology: v5e:2x2
jax: 0.10.0
libtpu: 0.0.40
codegen_flags: <defaults>
</compile_context>

<pallas_src>
import jax
import jax.numpy as jnp
from jax.experimental import pallas as pl
from jax.experimental.pallas import tpu as pltpu

_LANE = 128


def _round_up(c, m=_LANE):
    return -(-c // m) * m


def double_conv_kernel(x_ref, w1_ref, b1_ref, w2_ref, b2_ref, o_ref, acc_ref):
    # x_ref  : (1, H, W, Cin)          bf16  one image, real (unpadded) channel count
    # w1_ref : (3, 3, Cin, Cmidp)      bf16  out-channel dim zero-padded to a lane multiple
    # b1_ref : (1, Cmidp)              f32
    # w2_ref : (3, 3, Cmidp, Coutp)    bf16
    # b2_ref : (1, Coutp)              f32
    # o_ref  : (1, H, W, Cout)         bf16  real channel count -- padding never touches HBM
    # acc_ref: (H*W, max(Cmidp,Coutp)) f32   accumulator scratch shared by both conv stages
    _, H, W, Cin = x_ref.shape
    HW = H * W
    Cmidp = w1_ref.shape[-1]
    Coutp = w2_ref.shape[-1]
    Cout = o_ref.shape[-1]

    def conv3x3_relu(x_bf, w_ref, b_ref, n_out):
        """3x3 SAME conv + bias + ReLU on a flattened (H*W, C) bf16 image -> (H*W, n_out) f32.

        One MXU matmul per (ky, kx) tap.  The tap becomes a flat row offset off = dy*W + dx:
        out[i] += src[i + off].  Rows that fall outside the image are dropped by the slice
        bounds; column wrap-around at the left/right image edge is removed by masking the
        one boundary column of the source operand (VPU select, no halo buffer needed).
        """
        C = x_bf.shape[-1]
        col = jax.lax.broadcasted_iota(jnp.int32, (H, W, C), 1).reshape(HW, C)
        zero = jnp.zeros_like(x_bf)
        # dx = -1 taps read source column w-1 -> the wrapped rows have source col W-1;
        # dx = +1 taps read source column w+1 -> the wrapped rows have source col 0.
        src_by_dx = {
            -1: jnp.where(col < W - 1, x_bf, zero),
            0: x_bf,
            1: jnp.where(col > 0, x_bf, zero),
        }

        # Centre tap (ky=1, kx=1) initializes the accumulator with the bias folded in,
        # so the scratch is never separately zeroed.
        acc_ref[:, :n_out] = (
            jnp.dot(x_bf, w_ref[1, 1], preferred_element_type=jnp.float32) + b_ref[...]
        )
        for ky in range(3):
            for kx in range(3):
                dy, dx = ky - 1, kx - 1
                if dy == 0 and dx == 0:
                    continue
                off = dy * W + dx
                if abs(off) >= HW:  # degenerate tiny images: tap fully out of range
                    continue
                m = HW - abs(off)
                src = src_by_dx[dx]
                wt = w_ref[ky, kx]
                if off > 0:
                    acc_ref[0:m, :n_out] += jnp.dot(
                        src[off:HW], wt, preferred_element_type=jnp.float32)
                else:
                    acc_ref[-off:HW, :n_out] += jnp.dot(
                        src[0:m], wt, preferred_element_type=jnp.float32)
        return jnp.maximum(acc_ref[:, :n_out], 0.0)

    # ---- conv1 + ReLU: the (lane-padded) mid activation never leaves VMEM ----
    x_bf = x_ref[0].reshape(HW, Cin)
    mid = conv3x3_relu(x_bf, w1_ref, b1_ref, Cmidp)

    # ---- conv2 + ReLU; store only the real Cout channels, in bf16 ----
    y = conv3x3_relu(mid.astype(jnp.bfloat16), w2_ref, b2_ref, Coutp)
    o_ref[0] = y[:, :Cout].reshape(H, W, Cout).astype(o_ref.dtype)


def _vmem_limit_bytes(H, W, Cin, Cout, Cmidp, Coutp):
    HW = H * W
    Cmaxp = max(Cmidp, Coutp)
    est = (
        2 * 2 * HW * Cin                                # input block (bf16, double-buffered)
        + 2 * 2 * HW * Cout                             # output block (bf16, double-buffered)
        + 2 * 2 * 9 * (Cin * Cmidp + Cmidp * Coutp)     # weights (bf16, double-buffered)
        + 2 * 4 * (Cmidp + Coutp)                       # biases (f32)
        + 4 * HW * Cmaxp                                # f32 accumulator scratch
        + 4 * HW * Cmidp                                # mid activation value
        + 6 * HW * 3 * Cmaxp                            # tap operand / mask value headroom
    )
    # Leave headroom under v7x's 64 MiB physical VMEM; v5e/v6e could go higher (~100 MiB).
    return int(min(56 * 1024 * 1024, max(32 * 1024 * 1024, 2 * est)))


def double_conv(x_nchw, params):
    """Matches DoubleConv.forward semantics. Input/output are NCHW (PyTorch convention)."""
    w1, b1, w2, b2 = params                      # w: (3, 3, Cin, Cout) HWIO, b: (Cout,)
    N, Cin, H, W = x_nchw.shape
    Cmid, Cout = w1.shape[-1], w2.shape[-1]
    Cmidp, Coutp = _round_up(Cmid), _round_up(Cout)
    bf = jnp.bfloat16

    # NCHW -> NHWC, bf16.  No channel padding in HBM -- the real Cin goes straight to the kernel.
    x = jnp.transpose(x_nchw, (0, 2, 3, 1)).astype(bf)

    # Weights: only the matmul N dims (mid/out channels) are zero-padded to a lane multiple.
    w1p = jnp.zeros((3, 3, Cin, Cmidp), bf).at[:, :, :, :Cmid].set(w1.astype(bf))
    w2p = jnp.zeros((3, 3, Cmidp, Coutp), bf).at[:, :, :Cmid, :Cout].set(w2.astype(bf))
    b1p = jnp.zeros((1, Cmidp), jnp.float32).at[0, :Cmid].set(b1.astype(jnp.float32))
    b2p = jnp.zeros((1, Coutp), jnp.float32).at[0, :Cout].set(b2.astype(jnp.float32))

    out = pl.pallas_call(
        double_conv_kernel,
        out_shape=jax.ShapeDtypeStruct((N, H, W, Cout), bf),
        grid=(N,),
        in_specs=[
            pl.BlockSpec((1, H, W, Cin), lambda n: (n, 0, 0, 0)),
            pl.BlockSpec((3, 3, Cin, Cmidp), lambda n: (0, 0, 0, 0)),
            pl.BlockSpec((1, Cmidp), lambda n: (0, 0)),
            pl.BlockSpec((3, 3, Cmidp, Coutp), lambda n: (0, 0, 0, 0)),
            pl.BlockSpec((1, Coutp), lambda n: (0, 0)),
        ],
        out_specs=pl.BlockSpec((1, H, W, Cout), lambda n: (n, 0, 0, 0)),
        scratch_shapes=[
            pltpu.VMEM((H * W, max(Cmidp, Coutp)), jnp.float32),
        ],
        compiler_params=pltpu.CompilerParams(
            dimension_semantics=("parallel",),   # batch axis: megacore on v7x, pipelined overlap
            vmem_limit_bytes=_vmem_limit_bytes(H, W, Cin, Cout, Cmidp, Coutp),
        ),
    )(x, w1p, b1p, w2p, b2p)

    # NHWC -> NCHW, back to f32 like the PyTorch module's output.
    return jnp.transpose(out, (0, 3, 1, 2)).astype(jnp.float32)


def init_params(key, in_channels, out_channels, mid_channels=None):
    if not mid_channels:
        mid_channels = out_channels
    k1, k2, k3, k4 = jax.random.split(key, 4)
    # weights stored as (kh, kw, Cin, Cout); PyTorch layout would be (Cout, Cin, kh, kw)
    s1 = 1.0 / jnp.sqrt(in_channels * 9.0)
    s2 = 1.0 / jnp.sqrt(mid_channels * 9.0)
    w1 = jax.random.uniform(k1, (3, 3, in_channels, mid_channels), jnp.float32, -s1, s1)
    b1 = jax.random.uniform(k2, (mid_channels,), jnp.float32, -s1, s1)
    w2 = jax.random.uniform(k3, (3, 3, mid_channels, out_channels), jnp.float32, -s2, s2)
    b2 = jax.random.uniform(k4, (out_channels,), jnp.float32, -s2, s2)
    return (w1, b1, w2, b2)


def _reference(x_nchw, params):
    """Pure-JAX reference mirroring the kernel's precision (bf16 operands, f32 accumulate)."""
    w1, b1, w2, b2 = params
    bf = jnp.bfloat16
    f32 = jnp.float32
    hi = jax.lax.Precision.HIGHEST
    x = jnp.transpose(x_nchw, (0, 2, 3, 1)).astype(bf).astype(f32)
    w1f = w1.astype(bf).astype(f32)
    w2f = w2.astype(bf).astype(f32)
    dn1 = jax.lax.conv_dimension_numbers(x.shape, w1f.shape, ("NHWC", "HWIO", "NHWC"))
    y = jax.lax.conv_general_dilated(x, w1f, (1, 1), "SAME", dimension_numbers=dn1, precision=hi)
    y = jnp.maximum(y + b1, 0.0)
    y = y.astype(bf).astype(f32)
    dn2 = jax.lax.conv_dimension_numbers(y.shape, w2f.shape, ("NHWC", "HWIO", "NHWC"))
    y = jax.lax.conv_general_dilated(y, w2f, (1, 1), "SAME", dimension_numbers=dn2, precision=hi)
    y = jnp.maximum(y + b2, 0.0)
    y = y.astype(bf).astype(f32)   # kernel output is bf16 -> mirror the final rounding
    return jnp.transpose(y, (0, 3, 1, 2))


if __name__ == "__main__":
    key = jax.random.PRNGKey(0)
    kx, kp = jax.random.split(key)

    N, C_in, H, W = 2, 4, 16, 16
    C_out = 8

    x = jax.random.normal(kx, (N, C_in, H, W), jnp.float32)
    params = init_params(kp, C_in, C_out)

    out = jax.block_until_ready(double_conv(x, params))
    ref = jax.block_until_ready(_reference(x, params))

    assert out.shape == (N, C_out, H, W), out.shape
    err = float(jnp.max(jnp.abs(out - ref)))
    assert jnp.allclose(out, ref, atol=2e-2, rtol=2e-2), f"mismatch vs reference, max abs err={err}"

    print("KERNEL_OK")
</pallas_src>

<mosaic_0001>
module attributes {stable_mosaic.version = 11 : i64} {
  func.func @double_conv_kernel(%arg0: i32, %arg1: memref<1x16x16x4xbf16, #tpu.memory_space<vmem>>, %arg2: memref<3x3x4x128xbf16, #tpu.memory_space<vmem>>, %arg3: memref<1x128xf32, #tpu.memory_space<vmem>>, %arg4: memref<3x3x128x128xbf16, #tpu.memory_space<vmem>>, %arg5: memref<1x128xf32, #tpu.memory_space<vmem>>, %arg6: memref<1x16x16x8xbf16, #tpu.memory_space<vmem>>, %arg7: memref<256x128xf32, #tpu.memory_space<vmem>>) attributes {dimension_semantics = [#tpu.dimension_semantics<parallel>], iteration_bounds = array<i64: 2>, scalar_prefetch = 0 : i64, scratch_operands = 1 : i64, tpu.core_type = #tpu.core_type<tc>, window_params = [{transform_indices = @transform_0, window_bounds = array<i64: 1, 16, 16, 4>}, {pipeline_mode = #tpu.pipeline_mode<synchronous>, transform_indices = @transform_1, window_bounds = array<i64: 3, 3, 4, 128>}, {pipeline_mode = #tpu.pipeline_mode<synchronous>, transform_indices = @transform_2, window_bounds = array<i64: 1, 128>}, {pipeline_mode = #tpu.pipeline_mode<synchronous>, transform_indices = @transform_3, window_bounds = array<i64: 3, 3, 128, 128>}, {pipeline_mode = #tpu.pipeline_mode<synchronous>, transform_indices = @transform_4, window_bounds = array<i64: 1, 128>}, {transform_indices = @transform_5, window_bounds = array<i64: 1, 16, 16, 8>}]} {
    %c0 = arith.constant 0 : index
    %c0_0 = arith.constant 0 : index
    %c0_1 = arith.constant 0 : index
    %c0_2 = arith.constant 0 : index
    %0 = vector.load %arg1[%c0, %c0_0, %c0_1, %c0_2] : memref<1x16x16x4xbf16, #tpu.memory_space<vmem>>, vector<1x16x16x4xbf16>
    %1 = vector.shape_cast %0 : vector<1x16x16x4xbf16> to vector<16x16x4xbf16>
    %2 = vector.shape_cast %1 : vector<16x16x4xbf16> to vector<256x4xbf16>
    %3 = tpu.iota {dimensions = array<i32: 1>} : vector<16x16x4xi32>
    %4 = vector.shape_cast %3 : vector<16x16x4xi32> to vector<256x4xi32>
    %cst = arith.constant 0.000000e+00 : bf16
    %5 = vector.broadcast %cst : bf16 to vector<256x4xbf16>
    %c15_i32 = arith.constant 15 : i32
    %6 = vector.broadcast %c15_i32 : i32 to vector<256x4xi32>
    %7 = arith.cmpi slt, %4, %6 : vector<256x4xi32>
    %8 = arith.select %7, %2, %5 : vector<256x4xi1>, vector<256x4xbf16>
    %c0_i32 = arith.constant 0 : i32
    %9 = vector.broadcast %c0_i32 : i32 to vector<256x4xi32>
    %10 = arith.cmpi sgt, %4, %9 : vector<256x4xi32>
    %11 = arith.select %10, %2, %5 : vector<256x4xi1>, vector<256x4xbf16>
    %c1 = arith.constant 1 : index
    %c1_3 = arith.constant 1 : index
    %c0_4 = arith.constant 0 : index
    %c0_5 = arith.constant 0 : index
    %12 = vector.load %arg2[%c1, %c1_3, %c0_4, %c0_5] : memref<3x3x4x128xbf16, #tpu.memory_space<vmem>>, vector<1x1x4x128xbf16>
    %13 = vector.shape_cast %12 : vector<1x1x4x128xbf16> to vector<4x128xbf16>
    %cst_6 = arith.constant dense<0.000000e+00> : vector<256x128xf32>
    %14 = tpu.matmul %2, %13, %cst_6 {dimension_numbers = #tpu.dot_dimension_numbers<[1], [0], [0], [1], [0, 0, 1, 1], [], []>} : vector<256x4xbf16>, vector<4x128xbf16>, vector<256x128xf32> -> vector<256x128xf32>
    %c0_7 = arith.constant 0 : index
    %c0_8 = arith.constant 0 : index
    %15 = vector.load %arg3[%c0_7, %c0_8] : memref<1x128xf32, #tpu.memory_space<vmem>>, vector<1x128xf32>
    %16 = vector.broadcast %15 : vector<1x128xf32> to vector<256x128xf32>
    %17 = arith.addf %14, %16 : vector<256x128xf32>
    %c0_9 = arith.constant 0 : index
    %c0_10 = arith.constant 0 : index
    %18 = vector.load %arg7[%c0_9, %c0_10] : memref<256x128xf32, #tpu.memory_space<vmem>>, vector<256x128xf32>
    tpu.vector_store %arg7[%c0_9, %c0_10], %17 {strides = array<i32>} : memref<256x128xf32, #tpu.memory_space<vmem>>, vector<256x128xf32>,
    %c0_11 = arith.constant 0 : index
    %c0_12 = arith.constant 0 : index
    %c0_13 = arith.constant 0 : index
    %c0_14 = arith.constant 0 : index
    %19 = vector.load %arg2[%c0_11, %c0_12, %c0_13, %c0_14] : memref<3x3x4x128xbf16, #tpu.memory_space<vmem>>, vector<1x1x4x128xbf16>
    %20 = vector.shape_cast %19 : vector<1x1x4x128xbf16> to vector<4x128xbf16>
    %c17 = arith.constant 17 : index
    %c0_15 = arith.constant 0 : index
    %21 = vector.load %arg7[%c17, %c0_15] : memref<256x128xf32, #tpu.memory_space<vmem>>, vector<239x128xf32>
    %22 = vector.extract_strided_slice %8 {offsets = [0, 0], sizes = [239, 4], strides = [1, 1]} : vector<256x4xbf16> to vector<239x4xbf16>
    %cst_16 = arith.constant dense<0.000000e+00> : vector<239x128xf32>
    %23 = tpu.matmul %22, %20, %cst_16 {dimension_numbers = #tpu.dot_dimension_numbers<[1], [0], [0], [1], [0, 0, 1, 1], [], []>} : vector<239x4xbf16>, vector<4x128xbf16>, vector<239x128xf32> -> vector<239x128xf32>
    %24 = arith.addf %21, %23 : vector<239x128xf32>
    %c17_17 = arith.constant 17 : index
    %c0_18 = arith.constant 0 : index
    %25 = vector.load %arg7[%c17_17, %c0_18] : memref<256x128xf32, #tpu.memory_space<vmem>>, vector<239x128xf32>
    tpu.vector_store %arg7[%c17_17, %c0_18], %24 {strides = array<i32>} : memref<256x128xf32, #tpu.memory_space<vmem>>, vector<239x128xf32>,
    %c0_19 = arith.constant 0 : index
    %c1_20 = arith.constant 1 : index
    %c0_21 = arith.constant 0 : index
    %c0_22 = arith.constant 0 : index
    %26 = vector.load %arg2[%c0_19, %c1_20, %c0_21, %c0_22] : memref<3x3x4x128xbf16, #tpu.memory_space<vmem>>, vector<1x1x4x128xbf16>
    %27 = vector.shape_cast %26 : vector<1x1x4x128xbf16> to vector<4x128xbf16>
    %c16 = arith.constant 16 : index
    %c0_23 = arith.constant 0 : index
    %28 = vector.load %arg7[%c16, %c0_23] : memref<256x128xf32, #tpu.memory_space<vmem>>, vector<240x128xf32>
    %29 = vector.extract_strided_slice %2 {offsets = [0, 0], sizes = [240, 4], strides = [1, 1]} : vector<256x4xbf16> to vector<240x4xbf16>
    %cst_24 = arith.constant dense<0.000000e+00> : vector<240x128xf32>
    %30 = tpu.matmul %29, %27, %cst_24 {dimension_numbers = #tpu.dot_dimension_numbers<[1], [0], [0], [1], [0, 0, 1, 1], [], []>} : vector<240x4xbf16>, vector<4x128xbf16>, vector<240x128xf32> -> vector<240x128xf32>
    %31 = arith.addf %28, %30 : vector<240x128xf32>
    %c16_25 = arith.constant 16 : index
    %c0_26 = arith.constant 0 : index
    %32 = vector.load %arg7[%c16_25, %c0_26] : memref<256x128xf32, #tpu.memory_space<vmem>>, vector<240x128xf32>
    tpu.vector_store %arg7[%c16_25, %c0_26], %31 {strides = array<i32>} : memref<256x128xf32, #tpu.memory_space<vmem>>, vector<240x128xf32>,
    %c0_27 = arith.constant 0 : index
    %c2 = arith.constant 2 : index
    %c0_28 = arith.constant 0 : index
    %c0_29 = arith.constant 0 : index
    %33 = vector.load %arg2[%c0_27, %c2, %c0_28, %c0_29] : memref<3x3x4x128xbf16, #tpu.memory_space<vmem>>, vector<1x1x4x128xbf16>
    %34 = vector.shape_cast %33 : vector<1x1x4x128xbf16> to vector<4x128xbf16>
    %c15 = arith.constant 15 : index
    %c0_30 = arith.constant 0 : index
    %35 = vector.load %arg7[%c15, %c0_30] : memref<256x128xf32, #tpu.memory_space<vmem>>, vector<241x128xf32>
    %36 = vector.extract_strided_slice %11 {offsets = [0, 0], sizes = [241, 4], strides = [1, 1]} : vector<256x4xbf16> to vector<241x4xbf16>
    %cst_31 = arith.constant dense<0.000000e+00> : vector<241x128xf32>
    %37 = tpu.matmul %36, %34, %cst_31 {dimension_numbers = #tpu.dot_dimension_numbers<[1], [0], [0], [1], [0, 0, 1, 1], [], []>} : vector<241x4xbf16>, vector<4x128xbf16>, vector<241x128xf32> -> vector<241x128xf32>
    %38 = arith.addf %35, %37 : vector<241x128xf32>
    %c15_32 = arith.constant 15 : index
    %c0_33 = arith.constant 0 : index
    %39 = vector.load %arg7[%c15_32, %c0_33] : memref<256x128xf32, #tpu.memory_space<vmem>>, vector<241x128xf32>
    tpu.vector_store %arg7[%c15_32, %c0_33], %38 {strides = array<i32>} : memref<256x128xf32, #tpu.memory_space<vmem>>, vector<241x128xf32>,
    %c1_34 = arith.constant 1 : index
    %c0_35 = arith.constant 0 : index
    %c0_36 = arith.constant 0 : index
    %c0_37 = arith.constant 0 : index
    %40 = vector.load %arg2[%c1_34, %c0_35, %c0_36, %c0_37] : memref<3x3x4x128xbf16, #tpu.memory_space<vmem>>, vector<1x1x4x128xbf16>
    %41 = vector.shape_cast %40 : vector<1x1x4x128xbf16> to vector<4x128xbf16>
    %c1_38 = arith.constant 1 : index
    %c0_39 = arith.constant 0 : index
    %42 = vector.load %arg7[%c1_38, %c0_39] : memref<256x128xf32, #tpu.memory_space<vmem>>, vector<255x128xf32>
    %43 = vector.extract_strided_slice %8 {offsets = [0, 0], sizes = [255, 4], strides = [1, 1]} : vector<256x4xbf16> to vector<255x4xbf16>
    %cst_40 = arith.constant dense<0.000000e+00> : vector<255x128xf32>
    %44 = tpu.matmul %43, %41, %cst_40 {dimension_numbers = #tpu.dot_dimension_numbers<[1], [0], [0], [1], [0, 0, 1, 1], [], []>} : vector<255x4xbf16>, vector<4x128xbf16>, vector<255x128xf32> -> vector<255x128xf32>
    %45 = arith.addf %42, %44 : vector<255x128xf32>
    %c1_41 = arith.constant 1 : index
    %c0_42 = arith.constant 0 : index
    %46 = vector.load %arg7[%c1_41, %c0_42] : memref<256x128xf32, #tpu.memory_space<vmem>>, vector<255x128xf32>
    tpu.vector_store %arg7[%c1_41, %c0_42], %45 {strides = array<i32>} : memref<256x128xf32, #tpu.memory_space<vmem>>, vector<255x128xf32>,
    %c1_43 = arith.constant 1 : index
    %c2_44 = arith.constant 2 : index
    %c0_45 = arith.constant 0 : index
    %c0_46 = arith.constant 0 : index
    %47 = vector.load %arg2[%c1_43, %c2_44, %c0_45, %c0_46] : memref<3x3x4x128xbf16, #tpu.memory_space<vmem>>, vector<1x1x4x128xbf16>
    %48 = vector.shape_cast %47 : vector<1x1x4x128xbf16> to vector<4x128xbf16>
    %c0_47 = arith.constant 0 : index
    %c0_48 = arith.constant 0 : index
    %49 = vector.load %arg7[%c0_47, %c0_48] : memref<256x128xf32, #tpu.memory_space<vmem>>, vector<255x128xf32>
    %50 = vector.extract_strided_slice %11 {offsets = [1, 0], sizes = [255, 4], strides = [1, 1]} : vector<256x4xbf16> to vector<255x4xbf16>
    %cst_49 = arith.constant dense<0.000000e+00> : vector<255x128xf32>
    %51 = tpu.matmul %50, %48, %cst_49 {dimension_numbers = #tpu.dot_dimension_numbers<[1], [0], [0], [1], [0, 0, 1, 1], [], []>} : vector<255x4xbf16>, vector<4x128xbf16>, vector<255x128xf32> -> vector<255x128xf32>
    %52 = arith.addf %49, %51 : vector<255x128xf32>
    %c0_50 = arith.constant 0 : index
    %c0_51 = arith.constant 0 : index
    %53 = vector.load %arg7[%c0_50, %c0_51] : memref<256x128xf32, #tpu.memory_space<vmem>>, vector<255x128xf32>
    tpu.vector_store %arg7[%c0_50, %c0_51], %52 {strides = array<i32>} : memref<256x128xf32, #tpu.memory_space<vmem>>, vector<255x128xf32>,
    %c2_52 = arith.constant 2 : index
    %c0_53 = arith.constant 0 : index
    %c0_54 = arith.constant 0 : index
    %c0_55 = arith.constant 0 : index
    %54 = vector.load %arg2[%c2_52, %c0_53, %c0_54, %c0_55] : memref<3x3x4x128xbf16, #tpu.memory_space<vmem>>, vector<1x1x4x128xbf16>
    %55 = vector.shape_cast %54 : vector<1x1x4x128xbf16> to vector<4x128xbf16>
    %c0_56 = arith.constant 0 : index
    %c0_57 = arith.constant 0 : index
    %56 = vector.load %arg7[%c0_56, %c0_57] : memref<256x128xf32, #tpu.memory_space<vmem>>, vector<241x128xf32>
    %57 = vector.extract_strided_slice %8 {offsets = [15, 0], sizes = [241, 4], strides = [1, 1]} : vector<256x4xbf16> to vector<241x4xbf16>
    %cst_58 = arith.constant dense<0.000000e+00> : vector<241x128xf32>
    %58 = tpu.matmul %57, %55, %cst_58 {dimension_numbers = #tpu.dot_dimension_numbers<[1], [0], [0], [1], [0, 0, 1, 1], [], []>} : vector<241x4xbf16>, vector<4x128xbf16>, vector<241x128xf32> -> vector<241x128xf32>
    %59 = arith.addf %56, %58 : vector<241x128xf32>
    %c0_59 = arith.constant 0 : index
    %c0_60 = arith.constant 0 : index
    %60 = vector.load %arg7[%c0_59, %c0_60] : memref<256x128xf32, #tpu.memory_space<vmem>>, vector<241x128xf32>
    tpu.vector_store %arg7[%c0_59, %c0_60], %59 {strides = array<i32>} : memref<256x128xf32, #tpu.memory_space<vmem>>, vector<241x128xf32>,
    %c2_61 = arith.constant 2 : index
    %c1_62 = arith.constant 1 : index
    %c0_63 = arith.constant 0 : index
    %c0_64 = arith.constant 0 : index
    %61 = vector.load %arg2[%c2_61, %c1_62, %c0_63, %c0_64] : memref<3x3x4x128xbf16, #tpu.memory_space<vmem>>, vector<1x1x4x128xbf16>
    %62 = vector.shape_cast %61 : vector<1x1x4x128xbf16> to vector<4x128xbf16>
    %c0_65 = arith.constant 0 : index
    %c0_66 = arith.constant 0 : index
    %63 = vector.load %arg7[%c0_65, %c0_66] : memref<256x128xf32, #tpu.memory_space<vmem>>, vector<240x128xf32>
    %64 = vector.extract_strided_slice %2 {offsets = [16, 0], sizes = [240, 4], strides = [1, 1]} : vector<256x4xbf16> to vector<240x4xbf16>
    %cst_67 = arith.constant dense<0.000000e+00> : vector<240x128xf32>
    %65 = tpu.matmul %64, %62, %cst_67 {dimension_numbers = #tpu.dot_dimension_numbers<[1], [0], [0], [1], [0, 0, 1, 1], [], []>} : vector<240x4xbf16>, vector<4x128xbf16>, vector<240x128xf32> -> vector<240x128xf32>
    %66 = arith.addf %63, %65 : vector<240x128xf32>
    %c0_68 = arith.constant 0 : index
    %c0_69 = arith.constant 0 : index
    %67 = vector.load %arg7[%c0_68, %c0_69] : memref<256x128xf32, #tpu.memory_space<vmem>>, vector<240x128xf32>
    tpu.vector_store %arg7[%c0_68, %c0_69], %66 {strides = array<i32>} : memref<256x128xf32, #tpu.memory_space<vmem>>, vector<240x128xf32>,
    %c2_70 = arith.constant 2 : index
    %c2_71 = arith.constant 2 : index
    %c0_72 = arith.constant 0 : index
    %c0_73 = arith.constant 0 : index
    %68 = vector.load %arg2[%c2_70, %c2_71, %c0_72, %c0_73] : memref<3x3x4x128xbf16, #tpu.memory_space<vmem>>, vector<1x1x4x128xbf16>
    %69 = vector.shape_cast %68 : vector<1x1x4x128xbf16> to vector<4x128xbf16>
    %c0_74 = arith.constant 0 : index
    %c0_75 = arith.constant 0 : index
    %70 = vector.load %arg7[%c0_74, %c0_75] : memref<256x128xf32, #tpu.memory_space<vmem>>, vector<239x128xf32>
    %71 = vector.extract_strided_slice %11 {offsets = [17, 0], sizes = [239, 4], strides = [1, 1]} : vector<256x4xbf16> to vector<239x4xbf16>
    %cst_76 = arith.constant dense<0.000000e+00> : vector<239x128xf32>
    %72 = tpu.matmul %71, %69, %cst_76 {dimension_numbers = #tpu.dot_dimension_numbers<[1], [0], [0], [1], [0, 0, 1, 1], [], []>} : vector<239x4xbf16>, vector<4x128xbf16>, vector<239x128xf32> -> vector<239x128xf32>
    %73 = arith.addf %70, %72 : vector<239x128xf32>
    %c0_77 = arith.constant 0 : index
    %c0_78 = arith.constant 0 : index
    %74 = vector.load %arg7[%c0_77, %c0_78] : memref<256x128xf32, #tpu.memory_space<vmem>>, vector<239x128xf32>
    tpu.vector_store %arg7[%c0_77, %c0_78], %73 {strides = array<i32>} : memref<256x128xf32, #tpu.memory_space<vmem>>, vector<239x128xf32>,
    %c0_79 = arith.constant 0 : index
    %c0_80 = arith.constant 0 : index
    %75 = vector.load %arg7[%c0_79, %c0_80] : memref<256x128xf32, #tpu.memory_space<vmem>>, vector<256x128xf32>
    %cst_81 = arith.constant 0.000000e+00 : f32
    %76 = vector.broadcast %cst_81 : f32 to vector<256x128xf32>
    %77 = arith.maximumf %75, %76 : vector<256x128xf32>
    %78 = arith.truncf %77 : vector<256x128xf32> to vector<256x128xbf16>
    %79 = tpu.iota {dimensions = array<i32: 1>} : vector<16x16x128xi32>
    %80 = vector.shape_cast %79 : vector<16x16x128xi32> to vector<256x128xi32>
    %cst_82 = arith.constant 0.000000e+00 : bf16
    %81 = vector.broadcast %cst_82 : bf16 to vector<256x128xbf16>
    %c15_i32_83 = arith.constant 15 : i32
    %82 = vector.broadcast %c15_i32_83 : i32 to vector<256x128xi32>
    %83 = arith.cmpi slt, %80, %82 : vector<256x128xi32>
    %84 = arith.select %83, %78, %81 : vector<256x128xi1>, vector<256x128xbf16>
    %c0_i32_84 = arith.constant 0 : i32
    %85 = vector.broadcast %c0_i32_84 : i32 to vector<256x128xi32>
    %86 = arith.cmpi sgt, %80, %85 : vector<256x128xi32>
    %87 = arith.select %86, %78, %81 : vector<256x128xi1>, vector<256x128xbf16>
    %c1_85 = arith.constant 1 : index
    %c1_86 = arith.constant 1 : index
    %c0_87 = arith.constant 0 : index
    %c0_88 = arith.constant 0 : index
    %88 = vector.load %arg4[%c1_85, %c1_86, %c0_87, %c0_88] : memref<3x3x128x128xbf16, #tpu.memory_space<vmem>>, vector<1x1x128x128xbf16>
    %89 = vector.shape_cast %88 : vector<1x1x128x128xbf16> to vector<128x128xbf16>
    %cst_89 = arith.constant dense<0.000000e+00> : vector<256x128xf32>
    %90 = tpu.matmul %78, %89, %cst_89 {dimension_numbers = #tpu.dot_dimension_numbers<[1], [0], [0], [1], [0, 0, 1, 1], [], []>} : vector<256x128xbf16>, vector<128x128xbf16>, vector<256x128xf32> -> vector<256x128xf32>
    %c0_90 = arith.constant 0 : index
    %c0_91 = arith.constant 0 : index
    %91 = vector.load %arg5[%c0_90, %c0_91] : memref<1x128xf32, #tpu.memory_space<vmem>>, vector<1x128xf32>
    %92 = vector.broadcast %91 : vector<1x128xf32> to vector<256x128xf32>
    %93 = arith.addf %90, %92 : vector<256x128xf32>
    %c0_92 = arith.constant 0 : index
    %c0_93 = arith.constant 0 : index
    %94 = vector.load %arg7[%c0_92, %c0_93] : memref<256x128xf32, #tpu.memory_space<vmem>>, vector<256x128xf32>
    tpu.vector_store %arg7[%c0_92, %c0_93], %93 {strides = array<i32>} : memref<256x128xf32, #tpu.memory_space<vmem>>, vector<256x128xf32>,
    %c0_94 = arith.constant 0 : index
    %c0_95 = arith.constant 0 : index
    %c0_96 = arith.constant 0 : index
    %c0_97 = arith.constant 0 : index
    %95 = vector.load %arg4[%c0_94, %c0_95, %c0_96, %c0_97] : memref<3x3x128x128xbf16, #tpu.memory_space<vmem>>, vector<1x1x128x128xbf16>
    %96 = vector.shape_cast %95 : vector<1x1x128x128xbf16> to vector<128x128xbf16>
    %c17_98 = arith.constant 17 : index
    %c0_99 = arith.constant 0 : index
    %97 = vector.load %arg7[%c17_98, %c0_99] : memref<256x128xf32, #tpu.memory_space<vmem>>, vector<239x128xf32>
    %98 = vector.extract_strided_slice %84 {offsets = [0, 0], sizes = [239, 128], strides = [1, 1]} : vector<256x128xbf16> to vector<239x128xbf16>
    %cst_100 = arith.constant dense<0.000000e+00> : vector<239x128xf32>
    %99 = tpu.matmul %98, %96, %cst_100 {dimension_numbers = #tpu.dot_dimension_numbers<[1], [0], [0], [1], [0, 0, 1, 1], [], []>} : vector<239x128xbf16>, vector<128x128xbf16>, vector<239x128xf32> -> vector<239x128xf32>
    %100 = arith.addf %97, %99 : vector<239x128xf32>
    %c17_101 = arith.constant 17 : index
    %c0_102 = arith.constant 0 : index
    %101 = vector.load %arg7[%c17_101, %c0_102] : memref<256x128xf32, #tpu.memory_space<vmem>>, vector<239x128xf32>
    tpu.vector_store %arg7[%c17_101, %c0_102], %100 {strides = array<i32>} : memref<256x128xf32, #tpu.memory_space<vmem>>, vector<239x128xf32>,
    %c0_103 = arith.constant 0 : index
    %c1_104 = arith.constant 1 : index
    %c0_105 = arith.constant 0 : index
    %c0_106 = arith.constant 0 : index
    %102 = vector.load %arg4[%c0_103, %c1_104, %c0_105, %c0_106] : memref<3x3x128x128xbf16, #tpu.memory_space<vmem>>, vector<1x1x128x128xbf16>
    %103 = vector.shape_cast %102 : vector<1x1x128x128xbf16> to vector<128x128xbf16>
    %c16_107 = arith.constant 16 : index
    %c0_108 = arith.constant 0 : index
    %104 = vector.load %arg7[%c16_107, %c0_108] : memref<256x128xf32, #tpu.memory_space<vmem>>, vector<240x128xf32>
    %105 = vector.extract_strided_slice %78 {offsets = [0, 0], sizes = [240, 128], strides = [1, 1]} : vector<256x128xbf16> to vector<240x128xbf16>
    %cst_109 = arith.constant dense<0.000000e+00> : vector<240x128xf32>
    %106 = tpu.matmul %105, %103, %cst_109 {dimension_numbers = #tpu.dot_dimension_numbers<[1], [0], [0], [1], [0, 0, 1, 1], [], []>} : vector<240x128xbf16>, vector<128x128xbf16>, vector<240x128xf32> -> vector<240x128xf32>
    %107 = arith.addf %104, %106 : vector<240x128xf32>
    %c16_110 = arith.constant 16 : index
    %c0_111 = arith.constant 0 : index
    %108 = vector.load %arg7[%c16_110, %c0_111] : memref<256x128xf32, #tpu.memory_space<vmem>>, vector<240x128xf32>
    tpu.vector_store %arg7[%c16_110, %c0_111], %107 {strides = array<i32>} : memref<256x128xf32, #tpu.memory_space<vmem>>, vector<240x128xf32>,
    %c0_112 = arith.constant 0 : index
    %c2_113 = arith.constant 2 : index
    %c0_114 = arith.constant 0 : index
    %c0_115 = arith.constant 0 : index
    %109 = vector.load %arg4[%c0_112, %c2_113, %c0_114, %c0_115] : memref<3x3x128x128xbf16, #tpu.memory_space<vmem>>, vector<1x1x128x128xbf16>
    %110 = vector.shape_cast %109 : vector<1x1x128x128xbf16> to vector<128x128xbf16>
    %c15_116 = arith.constant 15 : index
    %c0_117 = arith.constant 0 : index
    %111 = vector.load %arg7[%c15_116, %c0_117] : memref<256x128xf32, #tpu.memory_space<vmem>>, vector<241x128xf32>
    %112 = vector.extract_strided_slice %87 {offsets = [0, 0], sizes = [241, 128], strides = [1, 1]} : vector<256x128xbf16> to vector<241x128xbf16>
    %cst_118 = arith.constant dense<0.000000e+00> : vector<241x128xf32>
    %113 = tpu.matmul %112, %110, %cst_118 {dimension_numbers = #tpu.dot_dimension_numbers<[1], [0], [0], [1], [0, 0, 1, 1], [], []>} : vector<241x128xbf16>, vector<128x128xbf16>, vector<241x128xf32> -> vector<241x128xf32>
    %114 = arith.addf %111, %113 : vector<241x128xf32>
    %c15_119 = arith.constant 15 : index
    %c0_120 = arith.constant 0 : index
    %115 = vector.load %arg7[%c15_119, %c0_120] : memref<256x128xf32, #tpu.memory_space<vmem>>, vector<241x128xf32>
    tpu.vector_store %arg7[%c15_119, %c0_120], %114 {strides = array<i32>} : memref<256x128xf32, #tpu.memory_space<vmem>>, vector<241x128xf32>,
    %c1_121 = arith.constant 1 : index
    %c0_122 = arith.constant 0 : index
    %c0_123 = arith.constant 0 : index
    %c0_124 = arith.constant 0 : index
    %116 = vector.load %arg4[%c1_121, %c0_122, %c0_123, %c0_124] : memref<3x3x128x128xbf16, #tpu.memory_space<vmem>>, vector<1x1x128x128xbf16>
    %117 = vector.shape_cast %116 : vector<1x1x128x128xbf16> to vector<128x128xbf16>
    %c1_125 = arith.constant 1 : index
    %c0_126 = arith.constant 0 : index
    %118 = vector.load %arg7[%c1_125, %c0_126] : memref<256x128xf32, #tpu.memory_space<vmem>>, vector<255x128xf32>
    %119 = vector.extract_strided_slice %84 {offsets = [0, 0], sizes = [255, 128], strides = [1, 1]} : vector<256x128xbf16> to vector<255x128xbf16>
    %cst_127 = arith.constant dense<0.000000e+00> : vector<255x128xf32>
    %120 = tpu.matmul %119, %117, %cst_127 {dimension_numbers = #tpu.dot_dimension_numbers<[1], [0], [0], [1], [0, 0, 1, 1], [], []>} : vector<255x128xbf16>, vector<128x128xbf16>, vector<255x128xf32> -> vector<255x128xf32>
    %121 = arith.addf %118, %120 : vector<255x128xf32>
    %c1_128 = arith.constant 1 : index
    %c0_129 = arith.constant 0 : index
    %122 = vector.load %arg7[%c1_128, %c0_129] : memref<256x128xf32, #tpu.memory_space<vmem>>, vector<255x128xf32>
    tpu.vector_store %arg7[%c1_128, %c0_129], %121 {strides = array<i32>} : memref<256x128xf32, #tpu.memory_space<vmem>>, vector<255x128xf32>,
    %c1_130 = arith.constant 1 : index
    %c2_131 = arith.constant 2 : index
    %c0_132 = arith.constant 0 : index
    %c0_133 = arith.constant 0 : index
    %123 = vector.load %arg4[%c1_130, %c2_131, %c0_132, %c0_133] : memref<3x3x128x128xbf16, #tpu.memory_space<vmem>>, vector<1x1x128x128xbf16>
    %124 = vector.shape_cast %123 : vector<1x1x128x128xbf16> to vector<128x128xbf16>
    %c0_134 = arith.constant 0 : index
    %c0_135 = arith.constant 0 : index
    %125 = vector.load %arg7[%c0_134, %c0_135] : memref<256x128xf32, #tpu.memory_space<vmem>>, vector<255x128xf32>
    %126 = vector.extract_strided_slice %87 {offsets = [1, 0], sizes = [255, 128], strides = [1, 1]} : vector<256x128xbf16> to vector<255x128xbf16>
    %cst_136 = arith.constant dense<0.000000e+00> : vector<255x128xf32>
    %127 = tpu.matmul %126, %124, %cst_136 {dimension_numbers = #tpu.dot_dimension_numbers<[1], [0], [0], [1], [0, 0, 1, 1], [], []>} : vector<255x128xbf16>, vector<128x128xbf16>, vector<255x128xf32> -> vector<255x128xf32>
    %128 = arith.addf %125, %127 : vector<255x128xf32>
    %c0_137 = arith.constant 0 : index
    %c0_138 = arith.constant 0 : index
    %129 = vector.load %arg7[%c0_137, %c0_138] : memref<256x128xf32, #tpu.memory_space<vmem>>, vector<255x128xf32>
    tpu.vector_store %arg7[%c0_137, %c0_138], %128 {strides = array<i32>} : memref<256x128xf32, #tpu.memory_space<vmem>>, vector<255x128xf32>,
    %c2_139 = arith.constant 2 : index
    %c0_140 = arith.constant 0 : index
    %c0_141 = arith.constant 0 : index
    %c0_142 = arith.constant 0 : index
    %130 = vector.load %arg4[%c2_139, %c0_140, %c0_141, %c0_142] : memref<3x3x128x128xbf16, #tpu.memory_space<vmem>>, vector<1x1x128x128xbf16>
    %131 = vector.shape_cast %130 : vector<1x1x128x128xbf16> to vector<128x128xbf16>
    %c0_143 = arith.constant 0 : index
    %c0_144 = arith.constant 0 : index
    %132 = vector.load %arg7[%c0_143, %c0_144] : memref<256x128xf32, #tpu.memory_space<vmem>>, vector<241x128xf32>
    %133 = vector.extract_strided_slice %84 {offsets = [15, 0], sizes = [241, 128], strides = [1, 1]} : vector<256x128xbf16> to vector<241x128xbf16>
    %cst_145 = arith.constant dense<0.000000e+00> : vector<241x128xf32>
    %134 = tpu.matmul %133, %131, %cst_145 {dimension_numbers = #tpu.dot_dimension_numbers<[1], [0], [0], [1], [0, 0, 1, 1], [], []>} : vector<241x128xbf16>, vector<128x128xbf16>, vector<241x128xf32> -> vector<241x128xf32>
    %135 = arith.addf %132, %134 : vector<241x128xf32>
    %c0_146 = arith.constant 0 : index
    %c0_147 = arith.constant 0 : index
    %136 = vector.load %arg7[%c0_146, %c0_147] : memref<256x128xf32, #tpu.memory_space<vmem>>, vector<241x128xf32>
    tpu.vector_store %arg7[%c0_146, %c0_147], %135 {strides = array<i32>} : memref<256x128xf32, #tpu.memory_space<vmem>>, vector<241x128xf32>,
    %c2_148 = arith.constant 2 : index
    %c1_149 = arith.constant 1 : index
    %c0_150 = arith.constant 0 : index
    %c0_151 = arith.constant 0 : index
    %137 = vector.load %arg4[%c2_148, %c1_149, %c0_150, %c0_151] : memref<3x3x128x128xbf16, #tpu.memory_space<vmem>>, vector<1x1x128x128xbf16>
    %138 = vector.shape_cast %137 : vector<1x1x128x128xbf16> to vector<128x128xbf16>
    %c0_152 = arith.constant 0 : index
    %c0_153 = arith.constant 0 : index
    %139 = vector.load %arg7[%c0_152, %c0_153] : memref<256x128xf32, #tpu.memory_space<vmem>>, vector<240x128xf32>
    %140 = vector.extract_strided_slice %78 {offsets = [16, 0], sizes = [240, 128], strides = [1, 1]} : vector<256x128xbf16> to vector<240x128xbf16>
    %cst_154 = arith.constant dense<0.000000e+00> : vector<240x128xf32>
    %141 = tpu.matmul %140, %138, %cst_154 {dimension_numbers = #tpu.dot_dimension_numbers<[1], [0], [0], [1], [0, 0, 1, 1], [], []>} : vector<240x128xbf16>, vector<128x128xbf16>, vector<240x128xf32> -> vector<240x128xf32>
    %142 = arith.addf %139, %141 : vector<240x128xf32>
    %c0_155 = arith.constant 0 : index
    %c0_156 = arith.constant 0 : index
    %143 = vector.load %arg7[%c0_155, %c0_156] : memref<256x128xf32, #tpu.memory_space<vmem>>, vector<240x128xf32>
    tpu.vector_store %arg7[%c0_155, %c0_156], %142 {strides = array<i32>} : memref<256x128xf32, #tpu.memory_space<vmem>>, vector<240x128xf32>,
    %c2_157 = arith.constant 2 : index
    %c2_158 = arith.constant 2 : index
    %c0_159 = arith.constant 0 : index
    %c0_160 = arith.constant 0 : index
    %144 = vector.load %arg4[%c2_157, %c2_158, %c0_159, %c0_160] : memref<3x3x128x128xbf16, #tpu.memory_space<vmem>>, vector<1x1x128x128xbf16>
    %145 = vector.shape_cast %144 : vector<1x1x128x128xbf16> to vector<128x128xbf16>
    %c0_161 = arith.constant 0 : index
    %c0_162 = arith.constant 0 : index
    %146 = vector.load %arg7[%c0_161, %c0_162] : memref<256x128xf32, #tpu.memory_space<vmem>>, vector<239x128xf32>
    %147 = vector.extract_strided_slice %87 {offsets = [17, 0], sizes = [239, 128], strides = [1, 1]} : vector<256x128xbf16> to vector<239x128xbf16>
    %cst_163 = arith.constant dense<0.000000e+00> : vector<239x128xf32>
    %148 = tpu.matmul %147, %145, %cst_163 {dimension_numbers = #tpu.dot_dimension_numbers<[1], [0], [0], [1], [0, 0, 1, 1], [], []>} : vector<239x128xbf16>, vector<128x128xbf16>, vector<239x128xf32> -> vector<239x128xf32>
    %149 = arith.addf %146, %148 : vector<239x128xf32>
    %c0_164 = arith.constant 0 : index
    %c0_165 = arith.constant 0 : index
    %150 = vector.load %arg7[%c0_164, %c0_165] : memref<256x128xf32, #tpu.memory_space<vmem>>, vector<239x128xf32>
    tpu.vector_store %arg7[%c0_164, %c0_165], %149 {strides = array<i32>} : memref<256x128xf32, #tpu.memory_space<vmem>>, vector<239x128xf32>,
    %c0_166 = arith.constant 0 : index
    %c0_167 = arith.constant 0 : index
    %151 = vector.load %arg7[%c0_166, %c0_167] : memref<256x128xf32, #tpu.memory_space<vmem>>, vector<256x128xf32>
    %cst_168 = arith.constant 0.000000e+00 : f32
    %152 = vector.broadcast %cst_168 : f32 to vector<256x128xf32>
    %153 = arith.maximumf %151, %152 : vector<256x128xf32>
    %154 = vector.extract_strided_slice %153 {offsets = [0, 0], sizes = [256, 8], strides = [1, 1]} : vector<256x128xf32> to vector<256x8xf32>
    %155 = vector.shape_cast %154 : vector<256x8xf32> to vector<16x16x8xf32>
    %156 = arith.truncf %155 : vector<16x16x8xf32> to vector<16x16x8xbf16>
    %c0_169 = arith.constant 0 : index
    %c0_170 = arith.constant 0 : index
    %c0_171 = arith.constant 0 : index
    %c0_172 = arith.constant 0 : index
    %157 = vector.load %arg6[%c0_169, %c0_170, %c0_171, %c0_172] : memref<1x16x16x8xbf16, #tpu.memory_space<vmem>>, vector<1x16x16x8xbf16>
    %158 = vector.shape_cast %157 : vector<1x16x16x8xbf16> to vector<16x16x8xbf16>
    %159 = vector.shape_cast %156 : vector<16x16x8xbf16> to vector<1x16x16x8xbf16>
    tpu.vector_store %arg6[%c0_169, %c0_170, %c0_171, %c0_172], %159 {strides = array<i32>} : memref<1x16x16x8xbf16, #tpu.memory_space<vmem>>, vector<1x16x16x8xbf16>,
    return
  }
  func.func @transform_0(%arg0: i32) -> (i32, i32, i32, i32) {
    %c0_i32 = arith.constant 0 : i32
    %c0_i32_0 = arith.constant 0 : i32
    %c0_i32_1 = arith.constant 0 : i32
    %c0_i32_2 = arith.constant 0 : i32
    return %arg0, %c0_i32, %c0_i32_0, %c0_i32_1 : i32, i32, i32, i32
  }
  func.func @transform_1(%arg0: i32) -> (i32, i32, i32, i32) {
    %c0_i32 = arith.constant 0 : i32
    %c0_i32_0 = arith.constant 0 : i32
    %c0_i32_1 = arith.constant 0 : i32
    %c0_i32_2 = arith.constant 0 : i32
    %c0_i32_3 = arith.constant 0 : i32
    return %c0_i32, %c0_i32_0, %c0_i32_1, %c0_i32_2 : i32, i32, i32, i32
  }
  func.func @transform_2(%arg0: i32) -> (i32, i32) {
    %c0_i32 = arith.constant 0 : i32
    %c0_i32_0 = arith.constant 0 : i32
    %c0_i32_1 = arith.constant 0 : i32
    return %c0_i32, %c0_i32_0 : i32, i32
  }
  func.func @transform_3(%arg0: i32) -> (i32, i32, i32, i32) {
    %c0_i32 = arith.constant 0 : i32
    %c0_i32_0 = arith.constant 0 : i32
    %c0_i32_1 = arith.constant 0 : i32
    %c0_i32_2 = arith.constant 0 : i32
    %c0_i32_3 = arith.constant 0 : i32
    return %c0_i32, %c0_i32_0, %c0_i32_1, %c0_i32_2 : i32, i32, i32, i32
  }
  func.func @transform_4(%arg0: i32) -> (i32, i32) {
    %c0_i32 = arith.constant 0 : i32
    %c0_i32_0 = arith.constant 0 : i32
    %c0_i32_1 = arith.constant 0 : i32
    return %c0_i32, %c0_i32_0 : i32, i32
  }
  func.func @transform_5(%arg0: i32) -> (i32, i32, i32, i32) {
    %c0_i32 = arith.constant 0 : i32
    %c0_i32_0 = arith.constant 0 : i32
    %c0_i32_1 = arith.constant 0 : i32
    %c0_i32_2 = arith.constant 0 : i32
    return %arg0, %c0_i32, %c0_i32_0, %c0_i32_1 : i32, i32, i32, i32
  }
}

</mosaic_0001>

<llo_original>
// kernel: tpu_custom_call.1
$region0: #{tpu_custom_call.1}
  #allocation0 [shape = 'u32[]', space=smem, size = 0x4, offset = 0x4, fixed_abs, tag = 'smem constant byte address 0x4 - core index']
  #allocation1 [shape = 'u32[72,128]{1,0:T(1,128)}', space=vmem, size = 0x9000, scoped, tag = 'internal scratch']
  #allocation2 [shape = 'f32[256,128]{1,0:T(8,128)}', space=vmem, size = 0x20000, scoped, tag = 'scratch operand']
  %s0 = inlined_call_operand.vmem [shape: bf16[2,16,16,4], index: 0, kind: input, shape index: {}]
  %s1 = inlined_call_operand.vmem [shape: bf16[3,3,4,128], index: 1, kind: input, shape index: {}]
  %s2 = inlined_call_operand.vmem [shape: f32[1,128], index: 2, kind: input, shape index: {}]
  %s3 = inlined_call_operand.hbm [shape: bf16[3,3,128,128], index: 3, kind: input, shape index: {}]
  %s4 = inlined_call_operand.vmem [shape: f32[1,128], index: 4, kind: input, shape index: {}]
  %s5 = inlined_call_operand.vmem [shape: bf16[2,16,16,8], index: 5, kind: output, shape index: {}]
  %s6 = sld [smem:[#allocation0]]
  $region57: #{tpu_custom_call.1} parent=0
    _
  %s8 = ssub.s32 1, %s6
  %s9 = scalar_select 0, %s8, %s6
  $region1: #{tpu_custom_call.1} parent=0
    #allocation3 [shape = 'u8[294912]{0}', space=vmem, size = 0x48000, scoped, tag = 'input window, operand 3, single buffered']
    #allocation4 [shape = 's32[2]{0}', space=sflag, size = 0x8, scoped, tag = 'scoped memory for tpu_custom_call.1']
    %10 = vsyncpa [#allocation4], 0
    loop: start=0, step=1, limit=4
    $region2: #{tpu_custom_call.1} parent=1 // loop_pre_header
      _
    $region3: #{tpu_custom_call.1} parent=1 // loop_header
      %s12 = sphi 0, %s16
      %p13 = scmp.ge.s32.totalorder %s12, 4
      %s22 = sphi 0, %s24
      %s25 = sphi 0, %s22
      %s26 = sphi 0, %s25
      %s42 = sphi 0, %s26
      %s46 = sphi 0, %s46
      %s48 = sphi 0, %s46
      %s49 = sphi 0, %s48
      %s63 = sphi 0, %s49
      %s67 = sphi 0, %s67
      %s69 = sphi 0, %s67
      %s70 = sphi 0, %s69
      %s84 = sphi 0, %s70
      %s88 = sphi 0, %s88
      %s90 = sphi 0, %s88
      %s91 = sphi 0, %s90
      %s105 = sphi 0, %s91
      %s109 = sphi 0, %s109
      %s111 = sphi 0, %s109
      %s112 = sphi 0, %s111
      %s126 = sphi 0, %s112
      %s132 = sphi 0, %s134
      %s135 = sphi 0, %s132
      %s136 = sphi 0, %s135
      %s152 = sphi 0, %s136
    $region4: #{tpu_custom_call.1} parent=1 // loop_header_branch
      %15 = sbr.rel (%p13) target = $region8
    $region5: #{tpu_custom_call.1} parent=1 // loop_body
      %s17 = ssub.s32 %s12, 1
      %s18 = ssub.s32 %s12, 2
      %s19 = sadd.s32 %s12, 1
      %s20 = ssub.s32 %s12, %s19
      %p21 = scmp.eq.s32.totalorder %s20, 0
      %s23 = sadd.s32 %s22, 1
      %s24 = scalar_select %p21, %s22, %s23
      %p27 = pneg %p21
      %p28 = scmp.eq.s32.totalorder %s12, 1
      %p29 = por %p27, %p28
      %p30 = scmp.ne.s32.totalorder %s22, %s25
      %p31 = scmp.eq.s32.totalorder %s12, 0
      %p32 = por %p30, %p31
      %p33 = scmp.ne.s32.totalorder %s22, %s25
      %p34 = scmp.eq.s32.totalorder %s17, 1
      %p35 = por %p33, %p34
      %p36 = scmp.ne.s32.totalorder %s25, %s26
      %p37 = scmp.eq.s32.totalorder %s17, 0
      %p38 = por %p36, %p37
      %p39 = scmp.ne.s32.totalorder %s25, %s26
      %p40 = scmp.eq.s32.totalorder %s18, 1
      %p41 = por %p39, %p40
      %p43 = scmp.ne.s32.totalorder %s26, %s42
      %p44 = scmp.eq.s32.totalorder %s18, 0
      %p45 = por %p43, %p44
      %s47 = sadd.s32 %s46, 1
      %p50 = scmp.eq.s32.totalorder %s12, 1
      %p51 = scmp.ne.s32.totalorder %s46, %s48
      %p52 = scmp.eq.s32.totalorder %s12, 0
      %p53 = por %p51, %p52
      %p54 = scmp.ne.s32.totalorder %s46, %s48
      %p55 = scmp.eq.s32.totalorder %s17, 1
      %p56 = por %p54, %p55
      %p57 = scmp.ne.s32.totalorder %s48, %s49
      %p58 = scmp.eq.s32.totalorder %s17, 0
      %p59 = por %p57, %p58
      %p60 = scmp.ne.s32.totalorder %s48, %s49
      %p61 = scmp.eq.s32.totalorder %s18, 1
      %p62 = por %p60, %p61
      %p64 = scmp.ne.s32.totalorder %s49, %s63
      %p65 = scmp.eq.s32.totalorder %s18, 0
      %p66 = por %p64, %p65
      %s68 = sadd.s32 %s67, 1
      %p71 = scmp.eq.s32.totalorder %s12, 1
      %p72 = scmp.ne.s32.totalorder %s67, %s69
      %p73 = scmp.eq.s32.totalorder %s12, 0
      %p74 = por %p72, %p73
      %p75 = scmp.ne.s32.totalorder %s67, %s69
      %p76 = scmp.eq.s32.totalorder %s17, 1
      %p77 = por %p75, %p76
      %p78 = scmp.ne.s32.totalorder %s69, %s70
      %p79 = scmp.eq.s32.totalorder %s17, 0
      %p80 = por %p78, %p79
      %p81 = scmp.ne.s32.totalorder %s69, %s70
      %p82 = scmp.eq.s32.totalorder %s18, 1
      %p83 = por %p81, %p82
      %p85 = scmp.ne.s32.totalorder %s70, %s84
      %p86 = scmp.eq.s32.totalorder %s18, 0
      %p87 = por %p85, %p86
      %s89 = sadd.s32 %s88, 1
      %p92 = scmp.eq.s32.totalorder %s12, 1
      %p93 = scmp.ne.s32.totalorder %s88, %s90
      %p94 = scmp.eq.s32.totalorder %s12, 0
      %p95 = por %p93, %p94
      %p96 = scmp.ne.s32.totalorder %s88, %s90
      %p97 = scmp.eq.s32.totalorder %s17, 1
      %p98 = por %p96, %p97
      %p99 = scmp.ne.s32.totalorder %s90, %s91
      %p100 = scmp.eq.s32.totalorder %s17, 0
      %p101 = por %p99, %p100
      %p102 = scmp.ne.s32.totalorder %s90, %s91
      %p103 = scmp.eq.s32.totalorder %s18, 1
      %p104 = por %p102, %p103
      %p106 = scmp.ne.s32.totalorder %s91, %s105
      %p107 = scmp.eq.s32.totalorder %s18, 0
      %p108 = por %p106, %p107
      %s110 = sadd.s32 %s109, 1
      %p113 = scmp.eq.s32.totalorder %s12, 1
      %p114 = scmp.ne.s32.totalorder %s109, %s111
      %p115 = scmp.eq.s32.totalorder %s12, 0
      %p116 = por %p114, %p115
      %p117 = scmp.ne.s32.totalorder %s109, %s111
      %p118 = scmp.eq.s32.totalorder %s17, 1
      %p119 = por %p117, %p118
      %p120 = scmp.ne.s32.totalorder %s111, %s112
      %p121 = scmp.eq.s32.totalorder %s17, 0
      %p122 = por %p120, %p121
      %p123 = scmp.ne.s32.totalorder %s111, %s112
      %p124 = scmp.eq.s32.totalorder %s18, 1
      %p125 = por %p123, %p124
      %p127 = scmp.ne.s32.totalorder %s112, %s126
      %p128 = scmp.eq.s32.totalorder %s18, 0
      %p129 = por %p127, %p128
      %s130 = ssub.s32 %s12, %s19
      %p131 = scmp.eq.s32.totalorder %s130, 0
      %s133 = sadd.s32 %s132, 1
      %s134 = scalar_select %p131, %s132, %s133
      %p137 = pneg %p131
      %p138 = scmp.eq.s32.totalorder %s12, 1
      %p139 = por %p137, %p138
      %p140 = scmp.ne.s32.totalorder %s132, %s135
      %p141 = scmp.eq.s32.totalorder %s12, 0
      %p142 = por %p140, %p141
      %p143 = scmp.ne.s32.totalorder %s132, %s135
      %p144 = scmp.eq.s32.totalorder %s17, 1
      %p145 = por %p143, %p144
      %p146 = scmp.ne.s32.totalorder %s135, %s136
      %p147 = scmp.eq.s32.totalorder %s17, 0
      %p148 = por %p146, %p147
      %p149 = scmp.ne.s32.totalorder %s135, %s136
      %p150 = scmp.eq.s32.totalorder %s18, 1
      %p151 = por %p149, %p150
      %p153 = scmp.ne.s32.totalorder %s136, %s152
      %p154 = scmp.eq.s32.totalorder %s18, 0
      %p155 = por %p153, %p154
      %p156 = scmp.le.s32.totalorder 1, %s12
      %p157 = scmp.lt.s32.totalorder %s12, 3
      %p158 = pnand %p156, %p157
      %p159 = pneg %p158
      // Predicated region
      $region9: #{tpu_custom_call.1} parent=5 // pred_check
        _
      $region10: #{tpu_custom_call.1} parent=5 // pred_check_branch
        %161 = sbr.rel (%p158) target = $region12
      $region11: #{tpu_custom_call.1} parent=5 // pred_region
        %s162 = ssub.s32 %s12, 1
        // Predicated region
        $region13: #{tpu_custom_call.1} parent=11 // pred_check
          %p163 = pneg %p59
        $region14: #{tpu_custom_call.1} parent=11 // pred_check_branch
          %165 = sbr.rel (%p163) target = $region16
        $region15: #{tpu_custom_call.1} parent=11 // pred_region
          _
        $region16: #{tpu_custom_call.1} parent=11 // pred_fallthru
          _
        // Predicated region
        $region17: #{tpu_custom_call.1} parent=11 // pred_check
          %p166 = pneg %p80
        $region18: #{tpu_custom_call.1} parent=11 // pred_check_branch
          %168 = sbr.rel (%p166) target = $region20
        $region19: #{tpu_custom_call.1} parent=11 // pred_region
          _
        $region20: #{tpu_custom_call.1} parent=11 // pred_fallthru
          _
        // Predicated region
        $region21: #{tpu_custom_call.1} parent=11 // pred_check
          %p169 = pneg %p101
        $region22: #{tpu_custom_call.1} parent=11 // pred_check_branch
          %171 = sbr.rel (%p169) target = $region24
        $region23: #{tpu_custom_call.1} parent=11 // pred_region
          %173 = vsyncadd [#allocation4], 0
          %s174 = sshll.u32 %s3, 4
          %s175 = int_to_ptr.hbm [resolvable:$true] %s174
          %s176 = sshll.u32 [#allocation3], 4
          %s177 = int_to_ptr.vmem [resolvable:$true] %s176
          %182 = dma.hbm_to_vmem [thread:$0]  %s175, 9216, %s177, [#allocation4], 64, 64, 4
        $region24: #{tpu_custom_call.1} parent=11 // pred_fallthru
          _
        // Predicated region
        $region25: #{tpu_custom_call.1} parent=11 // pred_check
          %p183 = pneg %p122
        $region26: #{tpu_custom_call.1} parent=11 // pred_check_branch
          %185 = sbr.rel (%p183) target = $region28
        $region27: #{tpu_custom_call.1} parent=11 // pred_region
          _
        $region28: #{tpu_custom_call.1} parent=11 // pred_fallthru
          _
      $region12: #{tpu_custom_call.1} parent=5 // pred_fallthru
        _
      %p186 = scmp.lt.s32.totalorder %s12, 2
      // Predicated region
      $region29: #{tpu_custom_call.1} parent=5 // pred_check
        %p187 = pneg %p186
      $region30: #{tpu_custom_call.1} parent=5 // pred_check_branch
        %189 = sbr.rel (%p187) target = $region32
      $region31: #{tpu_custom_call.1} parent=5 // pred_region
        // Predicated region
        $region33: #{tpu_custom_call.1} parent=31 // pred_check
          %p190 = pneg %p32
        $region34: #{tpu_custom_call.1} parent=31 // pred_check_branch
          %192 = sbr.rel (%p190) target = $region36
        $region35: #{tpu_custom_call.1} parent=31 // pred_region
          %p193 = scmp.lt.s32.totalorder %s12, 1
          %s194 = scalar_select %p193, %s12, 1
          %s195 = smul.addr %s194, 32
          %s196 = smul.addr %s195, 4
          %s197 = scalar_lea.vmem %s0, %s196
        $region36: #{tpu_custom_call.1} parent=31 // pred_fallthru
          _
      $region32: #{tpu_custom_call.1} parent=5 // pred_fallthru
        _
      %p198 = scmp.le.s32.totalorder 1, %s12
      %p199 = scmp.lt.s32.totalorder %s12, 3
      %p200 = pnand %p198, %p199
      %p201 = pneg %p200
      // Predicated region
      $region37: #{tpu_custom_call.1} parent=5 // pred_check
        _
      $region38: #{tpu_custom_call.1} parent=5 // pred_check_branch
        %203 = sbr.rel (%p200) target = $region40
      $region39: #{tpu_custom_call.1} parent=5 // pred_region
        %s204 = ssub.s32 %s12, 1
        // Predicated region
        $region41: #{tpu_custom_call.1} parent=39 // pred_check
          %p205 = pneg %p101
        $region42: #{tpu_custom_call.1} parent=39 // pred_check_branch
          %207 = sbr.rel (%p205) target = $region44
        $region43: #{tpu_custom_call.1} parent=39 // pred_region
          %209 = dma.done [#allocation4], 9216
        $region44: #{tpu_custom_call.1} parent=39 // pred_fallthru
          _
        %p210 = scmp.lt.s32.totalorder %s17, 1
        %s211 = scalar_select %p210, %s17, 1
        %s212 = smul.addr %s211, 32
        %s213 = smul.addr %s212, 4
        %s214 = scalar_lea.vmem %s0, %s213
        %p215 = pneg %p38
        %p216 = pneg %p35
        %p217 = pneg %p59
        %p218 = pneg %p56
        %p219 = pneg %p80
        %p220 = pneg %p77
        %p221 = pneg %p101
        %p222 = pneg %p98
        %p223 = pneg %p122
        %p224 = pneg %p119
        %p225 = pneg %p148
        %p226 = pneg %p145
        %p227 = scmp.lt.s32.totalorder %s17, 1
        %s228 = scalar_select %p227, %s17, 1
        %s229 = smul.addr %s228, 32
        %s230 = smul.addr %s229, 4
        %s231 = scalar_lea.vmem %s5, %s230
        %p232 = scmp.lt.s32.totalorder %s17, 1
        %s233 = scalar_select %p232, %s17, 1
        %s234 = smul.addr %s233, 32
        %s235 = smul.addr %s234, 4
        %s236 = scalar_lea.vmem %s0, %s235
        %p237 = scmp.lt.s32.totalorder %s17, 1
        %s238 = scalar_select %p237, %s17, 1
        %s239 = smul.addr %s238, 32
        %s240 = smul.addr %s239, 4
        %s241 = scalar_lea.vmem %s5, %s240
        %v243 = vld [vmem:[%s236] sm:$0xf]
        %v244 = vld [vmem:[%s236 + $0x4] sm:$0xf]
        %v245 = vld [vmem:[%s236 + $0x8] sm:$0xf]
        %v246 = vld [vmem:[%s236 + $0xc] sm:$0xf]
        %v247 = vld [vmem:[%s236 + $0x10] sm:$0xf]
        %v248 = vld [vmem:[%s236 + $0x14] sm:$0xf]
        %v249 = vld [vmem:[%s236 + $0x18] sm:$0xf]
        %v250 = vld [vmem:[%s236 + $0x1c] sm:$0xf]
        %v251 = vld [vmem:[%s236 + $0x20] sm:$0xf]
        %v252 = vld [vmem:[%s236 + $0x24] sm:$0xf]
        %v253 = vld [vmem:[%s236 + $0x28] sm:$0xf]
        %v254 = vld [vmem:[%s236 + $0x2c] sm:$0xf]
        %v255 = vld [vmem:[%s236 + $0x30] sm:$0xf]
        %v256 = vld [vmem:[%s236 + $0x34] sm:$0xf]
        %v257 = vld [vmem:[%s236 + $0x38] sm:$0xf]
        %v258 = vld [vmem:[%s236 + $0x3c] sm:$0xf]
        %v259 = vld [vmem:[%s236 + $0x40] sm:$0xf]
        %v260 = vld [vmem:[%s236 + $0x44] sm:$0xf]
        %v261 = vld [vmem:[%s236 + $0x48] sm:$0xf]
        %v262 = vld [vmem:[%s236 + $0x4c] sm:$0xf]
        %v263 = vld [vmem:[%s236 + $0x50] sm:$0xf]
        %v264 = vld [vmem:[%s236 + $0x54] sm:$0xf]
        %v265 = vld [vmem:[%s236 + $0x58] sm:$0xf]
        %v266 = vld [vmem:[%s236 + $0x5c] sm:$0xf]
        %v267 = vld [vmem:[%s236 + $0x60] sm:$0xf]
        %v268 = vld [vmem:[%s236 + $0x64] sm:$0xf]
        %v269 = vld [vmem:[%s236 + $0x68] sm:$0xf]
        %v270 = vld [vmem:[%s236 + $0x6c] sm:$0xf]
        %v271 = vld [vmem:[%s236 + $0x70] sm:$0xf]
        %v272 = vld [vmem:[%s236 + $0x74] sm:$0xf]
        %v273 = vld [vmem:[%s236 + $0x78] sm:$0xf]
        %v274 = vld [vmem:[%s236 + $0x7c] sm:$0xf]
        %v275 = vlaneseq
        %v276 = vshrl.u32 %v275, 7
        %v277 = vadd.s32 %v276, 8
        %vm278 = vcmp.lt.s32.totalorder %v276, 15
        %vm279 = vcmp.lt.s32.totalorder %v277, 15
        %vm280 = vmpackc.low %vm278, %vm278
        %vm281 = vmpackc.low %vm279, %vm279
        %v282 = vsel %vm280, %v243, 0
        %v283 = vsel %vm281, %v244, 0
        %v284 = vsel %vm280, %v245, 0
        %v285 = vsel %vm281, %v246, 0
        %v286 = vsel %vm280, %v247, 0
        %v287 = vsel %vm281, %v248, 0
        %v288 = vsel %vm280, %v249, 0
        %v289 = vsel %vm281, %v250, 0
        %v290 = vsel %vm280, %v251, 0
        %v291 = vsel %vm281, %v252, 0
        %v292 = vsel %vm280, %v253, 0
        %v293 = vsel %vm281, %v254, 0
        %v294 = vsel %vm280, %v255, 0
        %v295 = vsel %vm281, %v256, 0
        %v296 = vsel %vm280, %v257, 0
        %v297 = vsel %vm281, %v258, 0
        %v298 = vsel %vm280, %v259, 0
        %v299 = vsel %vm281, %v260, 0
        %v300 = vsel %vm280, %v261, 0
        %v301 = vsel %vm281, %v262, 0
        %v302 = vsel %vm280, %v263, 0
        %v303 = vsel %vm281, %v264, 0
        %v304 = vsel %vm280, %v265, 0
        %v305 = vsel %vm281, %v266, 0
        %v306 = vsel %vm280, %v267, 0
        %v307 = vsel %vm281, %v268, 0
        %v308 = vsel %vm280, %v269, 0
        %v309 = vsel %vm281, %v270, 0
        %v310 = vsel %vm280, %v271, 0
        %v311 = vsel %vm281, %v272, 0
        %v312 = vsel %vm280, %v273, 0
        %v313 = vsel %vm281, %v274, 0
        %vm314 = vcmp.gt.s32.totalorder %v276, 0
        %vm315 = vcmp.gt.s32.totalorder %v277, 0
        %vm316 = vmpackc.low %vm314, %vm314
        %vm317 = vmpackc.low %vm315, %vm315
        %v318 = vsel %vm316, %v243, 0
        %v319 = vsel %vm317, %v244, 0
        %v320 = vsel %vm316, %v245, 0
        %v321 = vsel %vm317, %v246, 0
        %v322 = vsel %vm316, %v247, 0
        %v323 = vsel %vm317, %v248, 0
        %v324 = vsel %vm316, %v249, 0
        %v325 = vsel %vm317, %v250, 0
        %v326 = vsel %vm316, %v251, 0
        %v327 = vsel %vm317, %v252, 0
        %v328 = vsel %vm316, %v253, 0
        %v329 = vsel %vm317, %v254, 0
        %v330 = vsel %vm316, %v255, 0
        %v331 = vsel %vm317, %v256, 0
        %v332 = vsel %vm316, %v257, 0
        %v333 = vsel %vm317, %v258, 0
        %v334 = vsel %vm316, %v259, 0
        %v335 = vsel %vm317, %v260, 0
        %v336 = vsel %vm316, %v261, 0
        %v337 = vsel %vm317, %v262, 0
        %v338 = vsel %vm316, %v263, 0
        %v339 = vsel %vm317, %v264, 0
        %v340 = vsel %vm316, %v265, 0
        %v341 = vsel %vm317, %v266, 0
        %v342 = vsel %vm316, %v267, 0
        %v343 = vsel %vm317, %v268, 0
        %v344 = vsel %vm316, %v269, 0
        %v345 = vsel %vm317, %v270, 0
        %v346 = vsel %vm316, %v271, 0
        %v347 = vsel %vm317, %v272, 0
        %v348 = vsel %vm316, %v273, 0
        %v349 = vsel %vm317, %v274, 0
        %s350 = scalar_lea.vmem %s1, 8
        %v351 = vld [vmem:[%s350] sm:$0x3]
        %v352 = vld [vmem:[%s2] sm:$0x1]
        %v354 = vperm.slane %v352, 0
        %v388 = vunpack.c.l.b16 %v243
        %v389 = vunpack.c.l.b16 %v244
        %v390 = vunpack.c.l.b16 %v245
        %v391 = vunpack.c.l.b16 %v246
        %v392 = vunpack.c.l.b16 %v247
        %v393 = vunpack.c.l.b16 %v248
        %v394 = vunpack.c.l.b16 %v249
        %v395 = vunpack.c.l.b16 %v250
        %v396 = vunpack.c.l.b16 %v251
        %v397 = vunpack.c.l.b16 %v252
        %v398 = vunpack.c.l.b16 %v253
        %v399 = vunpack.c.l.b16 %v254
        %v400 = vunpack.c.l.b16 %v255
        %v401 = vunpack.c.l.b16 %v256
        %v402 = vunpack.c.l.b16 %v257
        %v403 = vunpack.c.l.b16 %v258
        %v404 = vunpack.c.l.b16 %v259
        %v405 = vunpack.c.l.b16 %v260
        %v406 = vunpack.c.l.b16 %v261
        %v407 = vunpack.c.l.b16 %v262
        %v408 = vunpack.c.l.b16 %v263
        %v409 = vunpack.c.l.b16 %v264
        %v410 = vunpack.c.l.b16 %v265
        %v411 = vunpack.c.l.b16 %v266
        %v412 = vunpack.c.l.b16 %v267
        %v413 = vunpack.c.l.b16 %v268
        %v414 = vunpack.c.l.b16 %v269
        %v415 = vunpack.c.l.b16 %v270
        %v416 = vunpack.c.l.b16 %v271
        %v417 = vunpack.c.l.b16 %v272
        %v418 = vunpack.c.l.b16 %v273
        %v419 = vunpack.c.l.b16 %v274
        %v420 = vpack.c.b16 %v389, %v388
        %v421 = vpack.c.b16 %v391, %v390
        %v422 = vpack.c.b16 %v393, %v392
        %v423 = vpack.c.b16 %v395, %v394
        %v424 = vpack.c.b16 %v397, %v396
        %v425 = vpack.c.b16 %v399, %v398
        %v426 = vpack.c.b16 %v401, %v400
        %v427 = vpack.c.b16 %v403, %v402
        %v428 = vpack.c.b16 %v405, %v404
        %v429 = vpack.c.b16 %v407, %v406
        %v430 = vpack.c.b16 %v409, %v408
        %v431 = vpack.c.b16 %v411, %v410
        %v432 = vpack.c.b16 %v413, %v412
        %v433 = vpack.c.b16 %v415, %v414
        %v434 = vpack.c.b16 %v417, %v416
        %v435 = vpack.c.b16 %v419, %v418
        %vm436 = vcmask 31744
        %v438 = vsel %vm436, %v420, 0
        %v441 = vsel %vm436, %v421, 0
        %v444 = vsel %vm436, %v422, 0
        %v447 = vsel %vm436, %v423, 0
        %v450 = vsel %vm436, %v424, 0
        %v453 = vsel %vm436, %v425, 0
        %v456 = vsel %vm436, %v426, 0
        %v459 = vsel %vm436, %v427, 0
        %v462 = vsel %vm436, %v428, 0
        %v465 = vsel %vm436, %v429, 0
        %v468 = vsel %vm436, %v430, 0
        %v471 = vsel %vm436, %v431, 0
        %v474 = vsel %vm436, %v432, 0
        %v477 = vsel %vm436, %v433, 0
        %v480 = vsel %vm436, %v434, 0
        %v483 = vsel %vm436, %v435, 0
        %vm485 = vcmask 1041408
        %v487 = vsel %vm485, %v351, 0
        %489 = vmatpush.bf16.msra.mxu0 0
        %490 = vmatpush.bf16.msra.mxu0 0
        %491 = vmatpush.bf16.msra.mxu0 0
        %492 = vmatpush.bf16.msra.mxu0 0
        %493 = vmatpush.bf16.msra.mxu0 0
        %494 = vmatpush.bf16.msra.mxu0 0
        %495 = vmatpush.bf16.msra.mxu0 0
        %496 = vmatpush.bf16.msra.mxu0 %v487
        %497 = vmatmul.bf16.gmra.mxu0 %v438
        %v498 = vpop.f32.mrf.mxu0
        %v499 = vadd.f32 %v354, %v498
        %v500 = vpop.f32.mrf.mxu0
        %v501 = vadd.f32 %v354, %v500
        %502 = vmatmul.bf16.gmra.mxu0 %v441
        %v503 = vpop.f32.mrf.mxu0
        %v504 = vadd.f32 %v354, %v503
        %v505 = vpop.f32.mrf.mxu0
        %v506 = vadd.f32 %v354, %v505
        %507 = vmatmul.bf16.gmra.mxu0 %v444
        %v508 = vpop.f32.mrf.mxu0
        %v509 = vadd.f32 %v354, %v508
        %v510 = vpop.f32.mrf.mxu0
        %v511 = vadd.f32 %v354, %v510
        %512 = vmatmul.bf16.gmra.mxu0 %v447
        %v513 = vpop.f32.mrf.mxu0
        %v514 = vadd.f32 %v354, %v513
        %v515 = vpop.f32.mrf.mxu0
        %v516 = vadd.f32 %v354, %v515
        %517 = vmatmul.bf16.gmra.mxu0 %v450
        %v518 = vpop.f32.mrf.mxu0
        %v519 = vadd.f32 %v354, %v518
        %v520 = vpop.f32.mrf.mxu0
        %v521 = vadd.f32 %v354, %v520
        %522 = vmatmul.bf16.gmra.mxu0 %v453
        %v523 = vpop.f32.mrf.mxu0
        %v524 = vadd.f32 %v354, %v523
        %v525 = vpop.f32.mrf.mxu0
        %v526 = vadd.f32 %v354, %v525
        %527 = vmatmul.bf16.gmra.mxu0 %v456
        %v528 = vpop.f32.mrf.mxu0
        %v529 = vadd.f32 %v354, %v528
        %v530 = vpop.f32.mrf.mxu0
        %v531 = vadd.f32 %v354, %v530
        %532 = vmatmul.bf16.gmra.mxu0 %v459
        %v533 = vpop.f32.mrf.mxu0
        %v534 = vadd.f32 %v354, %v533
        %v535 = vpop.f32.mrf.mxu0
        %v536 = vadd.f32 %v354, %v535
        %537 = vmatmul.bf16.gmra.mxu0 %v462
        %v538 = vpop.f32.mrf.mxu0
        %v539 = vadd.f32 %v354, %v538
        %v540 = vpop.f32.mrf.mxu0
        %v541 = vadd.f32 %v354, %v540
        %542 = vmatmul.bf16.gmra.mxu0 %v465
        %v543 = vpop.f32.mrf.mxu0
        %v544 = vadd.f32 %v354, %v543
        %v545 = vpop.f32.mrf.mxu0
        %v546 = vadd.f32 %v354, %v545
        %547 = vmatmul.bf16.gmra.mxu0 %v468
        %v548 = vpop.f32.mrf.mxu0
        %v549 = vadd.f32 %v354, %v548
        %v550 = vpop.f32.mrf.mxu0
        %v551 = vadd.f32 %v354, %v550
        %552 = vmatmul.bf16.gmra.mxu0 %v471
        %v553 = vpop.f32.mrf.mxu0
        %v554 = vadd.f32 %v354, %v553
        %v555 = vpop.f32.mrf.mxu0
        %v556 = vadd.f32 %v354, %v555
        %557 = vmatmul.bf16.gmra.mxu0 %v474
        %v558 = vpop.f32.mrf.mxu0
        %v559 = vadd.f32 %v354, %v558
        %v560 = vpop.f32.mrf.mxu0
        %v561 = vadd.f32 %v354, %v560
        %562 = vmatmul.bf16.gmra.mxu0 %v477
        %v563 = vpop.f32.mrf.mxu0
        %v564 = vadd.f32 %v354, %v563
        %v565 = vpop.f32.mrf.mxu0
        %v566 = vadd.f32 %v354, %v565
        %567 = vmatmul.bf16.gmra.mxu0 %v480
        %v568 = vpop.f32.mrf.mxu0
        %v569 = vadd.f32 %v354, %v568
        %v570 = vpop.f32.mrf.mxu0
        %v571 = vadd.f32 %v354, %v570
        %572 = vmatmul.bf16.gmra.mxu0 %v483
        %v573 = vpop.f32.mrf.mxu0
        %v574 = vadd.f32 %v354, %v573
        %v575 = vpop.f32.mrf.mxu0
        %v576 = vadd.f32 %v354, %v575
        %577 = vdwg.mxu0
        %578 = vst [vmem:[#allocation2] sm:$0xff] %v499
        %579 = vst [vmem:[#allocation2 + $0x8] sm:$0xff] %v501
        %580 = vst [vmem:[#allocation2 + $0x10] sm:$0xff] %v504
        %581 = vst [vmem:[#allocation2 + $0x18] sm:$0xff] %v506
        %582 = vst [vmem:[#allocation2 + $0x20] sm:$0xff] %v509
        %583 = vst [vmem:[#allocation2 + $0x28] sm:$0xff] %v511
        %584 = vst [vmem:[#allocation2 + $0x30] sm:$0xff] %v514
        %585 = vst [vmem:[#allocation2 + $0x38] sm:$0xff] %v516
        %586 = vst [vmem:[#allocation2 + $0x40] sm:$0xff] %v519
        %587 = vst [vmem:[#allocation2 + $0x48] sm:$0xff] %v521
        %588 = vst [vmem:[#allocation2 + $0x50] sm:$0xff] %v524
        %589 = vst [vmem:[#allocation2 + $0x58] sm:$0xff] %v526
        %590 = vst [vmem:[#allocation2 + $0x60] sm:$0xff] %v529
        %591 = vst [vmem:[#allocation2 + $0x68] sm:$0xff] %v531
        %592 = vst [vmem:[#allocation2 + $0x70] sm:$0xff] %v534
        %593 = vst [vmem:[#allocation2 + $0x78] sm:$0xff] %v536
        %594 = vst [vmem:[#allocation2 + $0x80] sm:$0xff] %v539
        %595 = vst [vmem:[#allocation2 + $0x88] sm:$0xff] %v541
        %596 = vst [vmem:[#allocation2 + $0x90] sm:$0xff] %v544
        %597 = vst [vmem:[#allocation2 + $0x98] sm:$0xff] %v546
        %598 = vst [vmem:[#allocation2 + $0xa0] sm:$0xff] %v549
        %599 = vst [vmem:[#allocation2 + $0xa8] sm:$0xff] %v551
        %600 = vst [vmem:[#allocation2 + $0xb0] sm:$0xff] %v554
        %601 = vst [vmem:[#allocation2 + $0xb8] sm:$0xff] %v556
        %602 = vst [vmem:[#allocation2 + $0xc0] sm:$0xff] %v559
        %603 = vst [vmem:[#allocation2 + $0xc8] sm:$0xff] %v561
        %604 = vst [vmem:[#allocation2 + $0xd0] sm:$0xff] %v564
        %605 = vst [vmem:[#allocation2 + $0xd8] sm:$0xff] %v566
        %606 = vst [vmem:[#allocation2 + $0xe0] sm:$0xff] %v569
        %607 = vst [vmem:[#allocation2 + $0xe8] sm:$0xff] %v571
        %608 = vst [vmem:[#allocation2 + $0xf0] sm:$0xff] %v574
        %609 = vst [vmem:[#allocation2 + $0xf8] sm:$0xff] %v576
        %v610 = vld [vmem:[%s1] sm:$0x3]
        %v611 = vld [vmem:[#allocation2 + $0x11] sm:$0xff]
        %v612 = vld [vmem:[#allocation2 + $0x19] sm:$0xff]
        %v613 = vld [vmem:[#allocation2 + $0x21] sm:$0xff]
        %v614 = vld [vmem:[#allocation2 + $0x29] sm:$0xff]
        %v615 = vld [vmem:[#allocation2 + $0x31] sm:$0xff]
        %v616 = vld [vmem:[#allocation2 + $0x39] sm:$0xff]
        %v617 = vld [vmem:[#allocation2 + $0x41] sm:$0xff]
        %v618 = vld [vmem:[#allocation2 + $0x49] sm:$0xff]
        %v619 = vld [vmem:[#allocation2 + $0x51] sm:$0xff]
        %v620 = vld [vmem:[#allocation2 + $0x59] sm:$0xff]
        %v621 = vld [vmem:[#allocation2 + $0x61] sm:$0xff]
        %v622 = vld [vmem:[#allocation2 + $0x69] sm:$0xff]
        %v623 = vld [vmem:[#allocation2 + $0x71] sm:$0xff]
        %v624 = vld [vmem:[#allocation2 + $0x79] sm:$0xff]
        %v625 = vld [vmem:[#allocation2 + $0x81] sm:$0xff]
        %v626 = vld [vmem:[#allocation2 + $0x89] sm:$0xff]
        %v627 = vld [vmem:[#allocation2 + $0x91] sm:$0xff]
        %v628 = vld [vmem:[#allocation2 + $0x99] sm:$0xff]
        %v629 = vld [vmem:[#allocation2 + $0xa1] sm:$0xff]
        %v630 = vld [vmem:[#allocation2 + $0xa9] sm:$0xff]
        %v631 = vld [vmem:[#allocation2 + $0xb1] sm:$0xff]
        %v632 = vld [vmem:[#allocation2 + $0xb9] sm:$0xff]
        %v633 = vld [vmem:[#allocation2 + $0xc1] sm:$0xff]
        %v634 = vld [vmem:[#allocation2 + $0xc9] sm:$0xff]
        %v635 = vld [vmem:[#allocation2 + $0xd1] sm:$0xff]
        %v636 = vld [vmem:[#allocation2 + $0xd9] sm:$0xff]
        %v637 = vld [vmem:[#allocation2 + $0xe1] sm:$0xff]
        %v638 = vld [vmem:[#allocation2 + $0xe9] sm:$0xff]
        %v639 = vld [vmem:[#allocation2 + $0xf1] sm:$0xff]
        %v640 = vld [vmem:[#allocation2 + $0xf9] sm:$0x7f]
        %v671 = vunpack.c.l.b16 %v282
        %v672 = vunpack.c.l.b16 %v283
        %v673 = vunpack.c.l.b16 %v284
        %v674 = vunpack.c.l.b16 %v285
        %v675 = vunpack.c.l.b16 %v286
        %v676 = vunpack.c.l.b16 %v287
        %v677 = vunpack.c.l.b16 %v288
        %v678 = vunpack.c.l.b16 %v289
        %v679 = vunpack.c.l.b16 %v290
        %v680 = vunpack.c.l.b16 %v291
        %v681 = vunpack.c.l.b16 %v292
        %v682 = vunpack.c.l.b16 %v293
        %v683 = vunpack.c.l.b16 %v294
        %v684 = vunpack.c.l.b16 %v295
        %v685 = vunpack.c.l.b16 %v296
        %v686 = vunpack.c.l.b16 %v297
        %v687 = vunpack.c.l.b16 %v298
        %v688 = vunpack.c.l.b16 %v299
        %v689 = vunpack.c.l.b16 %v300
        %v690 = vunpack.c.l.b16 %v301
        %v691 = vunpack.c.l.b16 %v302
        %v692 = vunpack.c.l.b16 %v303
        %v693 = vunpack.c.l.b16 %v304
        %v694 = vunpack.c.l.b16 %v305
        %v695 = vunpack.c.l.b16 %v306
        %v696 = vunpack.c.l.b16 %v307
        %v697 = vunpack.c.l.b16 %v308
        %v698 = vunpack.c.l.b16 %v309
        %v699 = vunpack.c.l.b16 %v310
        %v700 = vunpack.c.l.b16 %v311
        %v701 = vpack.c.b16 %v672, %v671
        %v702 = vpack.c.b16 %v674, %v673
        %v703 = vpack.c.b16 %v676, %v675
        %v704 = vpack.c.b16 %v678, %v677
        %v705 = vpack.c.b16 %v680, %v679
        %v706 = vpack.c.b16 %v682, %v681
        %v707 = vpack.c.b16 %v684, %v683
        %v708 = vpack.c.b16 %v686, %v685
        %v709 = vpack.c.b16 %v688, %v687
        %v710 = vpack.c.b16 %v690, %v689
        %v711 = vpack.c.b16 %v692, %v691
        %v712 = vpack.c.b16 %v694, %v693
        %v713 = vpack.c.b16 %v696, %v695
        %v714 = vpack.c.b16 %v698, %v697
        %v715 = vpack.c.b16 %v700, %v699
        %v717 = vsel %vm436, %v701, 0
        %v720 = vsel %vm436, %v702, 0
        %v723 = vsel %vm436, %v703, 0
        %v726 = vsel %vm436, %v704, 0
        %v729 = vsel %vm436, %v705, 0
        %v732 = vsel %vm436, %v706, 0
        %v735 = vsel %vm436, %v707, 0
        %v738 = vsel %vm436, %v708, 0
        %v741 = vsel %vm436, %v709, 0
        %v744 = vsel %vm436, %v710, 0
        %v747 = vsel %vm436, %v711, 0
        %v750 = vsel %vm436, %v712, 0
        %v753 = vsel %vm436, %v713, 0
        %v756 = vsel %vm436, %v714, 0
        %v759 = vsel %vm436, %v715, 0
        %v762 = vsel %vm485, %v610, 0
        %764 = vmatpush.bf16.msra.mxu0 0
        %765 = vmatpush.bf16.msra.mxu0 0
        %766 = vmatpush.bf16.msra.mxu0 0
        %767 = vmatpush.bf16.msra.mxu0 0
        %768 = vmatpush.bf16.msra.mxu0 0
        %769 = vmatpush.bf16.msra.mxu0 0
        %770 = vmatpush.bf16.msra.mxu0 0
        %771 = vmatpush.bf16.msra.mxu0 %v762
        %772 = vmatmul.bf16.gmra.mxu0 %v717
        %v773 = vpop.f32.mrf.mxu0
        %v774 = vadd.f32 0.0, %v773
        %v775 = vpop.f32.mrf.mxu0
        %v776 = vadd.f32 0.0, %v775
        %777 = vmatmul.bf16.gmra.mxu0 %v720
        %v778 = vpop.f32.mrf.mxu0
        %v779 = vadd.f32 0.0, %v778
        %v780 = vpop.f32.mrf.mxu0
        %v781 = vadd.f32 0.0, %v780
        %782 = vmatmul.bf16.gmra.mxu0 %v723
        %v783 = vpop.f32.mrf.mxu0
        %v784 = vadd.f32 0.0, %v783
        %v785 = vpop.f32.mrf.mxu0
        %v786 = vadd.f32 0.0, %v785
        %787 = vmatmul.bf16.gmra.mxu0 %v726
        %v788 = vpop.f32.mrf.mxu0
        %v789 = vadd.f32 0.0, %v788
        %v790 = vpop.f32.mrf.mxu0
        %v791 = vadd.f32 0.0, %v790
        %792 = vmatmul.bf16.gmra.mxu0 %v729
        %v793 = vpop.f32.mrf.mxu0
        %v794 = vadd.f32 0.0, %v793
        %v795 = vpop.f32.mrf.mxu0
        %v796 = vadd.f32 0.0, %v795
        %797 = vmatmul.bf16.gmra.mxu0 %v732
        %v798 = vpop.f32.mrf.mxu0
        %v799 = vadd.f32 0.0, %v798
        %v800 = vpop.f32.mrf.mxu0
        %v801 = vadd.f32 0.0, %v800
        %802 = vmatmul.bf16.gmra.mxu0 %v735
        %v803 = vpop.f32.mrf.mxu0
        %v804 = vadd.f32 0.0, %v803
        %v805 = vpop.f32.mrf.mxu0
        %v806 = vadd.f32 0.0, %v805
        %807 = vmatmul.bf16.gmra.mxu0 %v738
        %v808 = vpop.f32.mrf.mxu0
        %v809 = vadd.f32 0.0, %v808
        %v810 = vpop.f32.mrf.mxu0
        %v811 = vadd.f32 0.0, %v810
        %812 = vmatmul.bf16.gmra.mxu0 %v741
        %v813 = vpop.f32.mrf.mxu0
        %v814 = vadd.f32 0.0, %v813
        %v815 = vpop.f32.mrf.mxu0
        %v816 = vadd.f32 0.0, %v815
        %817 = vmatmul.bf16.gmra.mxu0 %v744
        %v818 = vpop.f32.mrf.mxu0
        %v819 = vadd.f32 0.0, %v818
        %v820 = vpop.f32.mrf.mxu0
        %v821 = vadd.f32 0.0, %v820
        %822 = vmatmul.bf16.gmra.mxu0 %v747
        %v823 = vpop.f32.mrf.mxu0
        %v824 = vadd.f32 0.0, %v823
        %v825 = vpop.f32.mrf.mxu0
        %v826 = vadd.f32 0.0, %v825
        %827 = vmatmul.bf16.gmra.mxu0 %v750
        %v828 = vpop.f32.mrf.mxu0
        %v829 = vadd.f32 0.0, %v828
        %v830 = vpop.f32.mrf.mxu0
        %v831 = vadd.f32 0.0, %v830
        %832 = vmatmul.bf16.gmra.mxu0 %v753
        %v833 = vpop.f32.mrf.mxu0
        %v834 = vadd.f32 0.0, %v833
        %v835 = vpop.f32.mrf.mxu0
        %v836 = vadd.f32 0.0, %v835
        %837 = vmatmul.bf16.gmra.mxu0 %v756
        %v838 = vpop.f32.mrf.mxu0
        %v839 = vadd.f32 0.0, %v838
        %v840 = vpop.f32.mrf.mxu0
        %v841 = vadd.f32 0.0, %v840
        %842 = vmatmul.bf16.gmra.mxu0 %v759
        %v843 = vpop.f32.mrf.mxu0
        %v844 = vadd.f32 0.0, %v843
        %v845 = vpop.f32.mrf.mxu0
        %v846 = vadd.f32 0.0, %v845
        %847 = vdwg.mxu0
        %v848 = vadd.f32 %v611, %v774
        %v849 = vadd.f32 %v612, %v776
        %v850 = vadd.f32 %v613, %v779
        %v851 = vadd.f32 %v614, %v781
        %v852 = vadd.f32 %v615, %v784
        %v853 = vadd.f32 %v616, %v786
        %v854 = vadd.f32 %v617, %v789
        %v855 = vadd.f32 %v618, %v791
        %v856 = vadd.f32 %v619, %v794
        %v857 = vadd.f32 %v620, %v796
        %v858 = vadd.f32 %v621, %v799
        %v859 = vadd.f32 %v622, %v801
        %v860 = vadd.f32 %v623, %v804
        %v861 = vadd.f32 %v624, %v806
        %v862 = vadd.f32 %v625, %v809
        %v863 = vadd.f32 %v626, %v811
        %v864 = vadd.f32 %v627, %v814
        %v865 = vadd.f32 %v628, %v816
        %v866 = vadd.f32 %v629, %v819
        %v867 = vadd.f32 %v630, %v821
        %v868 = vadd.f32 %v631, %v824
        %v869 = vadd.f32 %v632, %v826
        %v870 = vadd.f32 %v633, %v829
        %v871 = vadd.f32 %v634, %v831
        %v872 = vadd.f32 %v635, %v834
        %v873 = vadd.f32 %v636, %v836
        %v874 = vadd.f32 %v637, %v839
        %v875 = vadd.f32 %v638, %v841
        %v876 = vadd.f32 %v639, %v844
        %v877 = vadd.f32 %v640, %v846
        %878 = vst [vmem:[#allocation2 + $0x11] sm:$0xff] %v848
        %879 = vst [vmem:[#allocation2 + $0x19] sm:$0xff] %v849
        %880 = vst [vmem:[#allocation2 + $0x21] sm:$0xff] %v850
        %881 = vst [vmem:[#allocation2 + $0x29] sm:$0xff] %v851
        %882 = vst [vmem:[#allocation2 + $0x31] sm:$0xff] %v852
        %883 = vst [vmem:[#allocation2 + $0x39] sm:$0xff] %v853
        %884 = vst [vmem:[#allocation2 + $0x41] sm:$0xff] %v854
        %885 = vst [vmem:[#allocation2 + $0x49] sm:$0xff] %v855
        %886 = vst [vmem:[#allocation2 + $0x51] sm:$0xff] %v856
        %887 = vst [vmem:[#allocation2 + $0x59] sm:$0xff] %v857
        %888 = vst [vmem:[#allocation2 + $0x61] sm:$0xff] %v858
        %889 = vst [vmem:[#allocation2 + $0x69] sm:$0xff] %v859
        %890 = vst [vmem:[#allocation2 + $0x71] sm:$0xff] %v860
        %891 = vst [vmem:[#allocation2 + $0x79] sm:$0xff] %v861
        %892 = vst [vmem:[#allocation2 + $0x81] sm:$0xff] %v862
        %893 = vst [vmem:[#allocation2 + $0x89] sm:$0xff] %v863
        %894 = vst [vmem:[#allocation2 + $0x91] sm:$0xff] %v864
        %895 = vst [vmem:[#allocation2 + $0x99] sm:$0xff] %v865
        %896 = vst [vmem:[#allocation2 + $0xa1] sm:$0xff] %v866
        %897 = vst [vmem:[#allocation2 + $0xa9] sm:$0xff] %v867
        %898 = vst [vmem:[#allocation2 + $0xb1] sm:$0xff] %v868
        %899 = vst [vmem:[#allocation2 + $0xb9] sm:$0xff] %v869
        %900 = vst [vmem:[#allocation2 + $0xc1] sm:$0xff] %v870
        %901 = vst [vmem:[#allocation2 + $0xc9] sm:$0xff] %v871
        %902 = vst [vmem:[#allocation2 + $0xd1] sm:$0xff] %v872
        %903 = vst [vmem:[#allocation2 + $0xd9] sm:$0xff] %v873
        %904 = vst [vmem:[#allocation2 + $0xe1] sm:$0xff] %v874
        %905 = vst [vmem:[#allocation2 + $0xe9] sm:$0xff] %v875
        %906 = vst [vmem:[#allocation2 + $0xf1] sm:$0xff] %v876
        %907 = vst [vmem:[#allocation2 + $0xf9] sm:$0x7f] %v877
        %s908 = scalar_lea.vmem %s1, 2
        %v909 = vld [vmem:[%s908] sm:$0x3]
        %v910 = vld [vmem:[#allocation2 + $0x10] sm:$0xff]
        %v911 = vld [vmem:[#allocation2 + $0x18] sm:$0xff]
        %v912 = vld [vmem:[#allocation2 + $0x20] sm:$0xff]
        %v913 = vld [vmem:[#allocation2 + $0x28] sm:$0xff]
        %v914 = vld [vmem:[#allocation2 + $0x30] sm:$0xff]
        %v915 = vld [vmem:[#allocation2 + $0x38] sm:$0xff]
        %v916 = vld [vmem:[#allocation2 + $0x40] sm:$0xff]
        %v917 = vld [vmem:[#allocation2 + $0x48] sm:$0xff]
        %v918 = vld [vmem:[#allocation2 + $0x50] sm:$0xff]
        %v919 = vld [vmem:[#allocation2 + $0x58] sm:$0xff]
        %v920 = vld [vmem:[#allocation2 + $0x60] sm:$0xff]
        %v921 = vld [vmem:[#allocation2 + $0x68] sm:$0xff]
        %v922 = vld [vmem:[#allocation2 + $0x70] sm:$0xff]
        %v923 = vld [vmem:[#allocation2 + $0x78] sm:$0xff]
        %v924 = vld [vmem:[#allocation2 + $0x80] sm:$0xff]
        %v925 = vld [vmem:[#allocation2 + $0x88] sm:$0xff]
        %v926 = vld [vmem:[#allocation2 + $0x90] sm:$0xff]
        %v927 = vld [vmem:[#allocation2 + $0x98] sm:$0xff]
        %v928 = vld [vmem:[#allocation2 + $0xa0] sm:$0xff]
        %v929 = vld [vmem:[#allocation2 + $0xa8] sm:$0xff]
        %v930 = vld [vmem:[#allocation2 + $0xb0] sm:$0xff]
        %v931 = vld [vmem:[#allocation2 + $0xb8] sm:$0xff]
        %v932 = vld [vmem:[#allocation2 + $0xc0] sm:$0xff]
        %v933 = vld [vmem:[#allocation2 + $0xc8] sm:$0xff]
        %v934 = vld [vmem:[#allocation2 + $0xd0] sm:$0xff]
        %v935 = vld [vmem:[#allocation2 + $0xd8] sm:$0xff]
        %v936 = vld [vmem:[#allocation2 + $0xe0] sm:$0xff]
        %v937 = vld [vmem:[#allocation2 + $0xe8] sm:$0xff]
        %v938 = vld [vmem:[#allocation2 + $0xf0] sm:$0xff]
        %v939 = vld [vmem:[#allocation2 + $0xf8] sm:$0xff]
        %v941 = vsel %vm485, %v909, 0
        %943 = vmatpush.bf16.msra.mxu0 0
        %944 = vmatpush.bf16.msra.mxu0 0
        %945 = vmatpush.bf16.msra.mxu0 0
        %946 = vmatpush.bf16.msra.mxu0 0
        %947 = vmatpush.bf16.msra.mxu0 0
        %948 = vmatpush.bf16.msra.mxu0 0
        %949 = vmatpush.bf16.msra.mxu0 0
        %950 = vmatpush.bf16.msra.mxu0 %v941
        %951 = vmatmul.bf16.gmra.mxu0 %v438
        %v952 = vpop.f32.mrf.mxu0
        %v953 = vadd.f32 0.0, %v952
        %v954 = vpop.f32.mrf.mxu0
        %v955 = vadd.f32 0.0, %v954
        %956 = vmatmul.bf16.gmra.mxu0 %v441
        %v957 = vpop.f32.mrf.mxu0
        %v958 = vadd.f32 0.0, %v957
        %v959 = vpop.f32.mrf.mxu0
        %v960 = vadd.f32 0.0, %v959
        %961 = vmatmul.bf16.gmra.mxu0 %v444
        %v962 = vpop.f32.mrf.mxu0
        %v963 = vadd.f32 0.0, %v962
        %v964 = vpop.f32.mrf.mxu0
        %v965 = vadd.f32 0.0, %v964
        %966 = vmatmul.bf16.gmra.mxu0 %v447
        %v967 = vpop.f32.mrf.mxu0
        %v968 = vadd.f32 0.0, %v967
        %v969 = vpop.f32.mrf.mxu0
        %v970 = vadd.f32 0.0, %v969
        %971 = vmatmul.bf16.gmra.mxu0 %v450
        %v972 = vpop.f32.mrf.mxu0
        %v973 = vadd.f32 0.0, %v972
        %v974 = vpop.f32.mrf.mxu0
        %v975 = vadd.f32 0.0, %v974
        %976 = vmatmul.bf16.gmra.mxu0 %v453
        %v977 = vpop.f32.mrf.mxu0
        %v978 = vadd.f32 0.0, %v977
        %v979 = vpop.f32.mrf.mxu0
        %v980 = vadd.f32 0.0, %v979
        %981 = vmatmul.bf16.gmra.mxu0 %v456
        %v982 = vpop.f32.mrf.mxu0
        %v983 = vadd.f32 0.0, %v982
        %v984 = vpop.f32.mrf.mxu0
        %v985 = vadd.f32 0.0, %v984
        %986 = vmatmul.bf16.gmra.mxu0 %v459
        %v987 = vpop.f32.mrf.mxu0
        %v988 = vadd.f32 0.0, %v987
        %v989 = vpop.f32.mrf.mxu0
        %v990 = vadd.f32 0.0, %v989
        %991 = vmatmul.bf16.gmra.mxu0 %v462
        %v992 = vpop.f32.mrf.mxu0
        %v993 = vadd.f32 0.0, %v992
        %v994 = vpop.f32.mrf.mxu0
        %v995 = vadd.f32 0.0, %v994
        %996 = vmatmul.bf16.gmra.mxu0 %v465
        %v997 = vpop.f32.mrf.mxu0
        %v998 = vadd.f32 0.0, %v997
        %v999 = vpop.f32.mrf.mxu0
        %v1000 = vadd.f32 0.0, %v999
        %1001 = vmatmul.bf16.gmra.mxu0 %v468
        %v1002 = vpop.f32.mrf.mxu0
        %v1003 = vadd.f32 0.0, %v1002
        %v1004 = vpop.f32.mrf.mxu0
        %v1005 = vadd.f32 0.0, %v1004
        %1006 = vmatmul.bf16.gmra.mxu0 %v471
        %v1007 = vpop.f32.mrf.mxu0
        %v1008 = vadd.f32 0.0, %v1007
        %v1009 = vpop.f32.mrf.mxu0
        %v1010 = vadd.f32 0.0, %v1009
        %1011 = vmatmul.bf16.gmra.mxu0 %v474
        %v1012 = vpop.f32.mrf.mxu0
        %v1013 = vadd.f32 0.0, %v1012
        %v1014 = vpop.f32.mrf.mxu0
        %v1015 = vadd.f32 0.0, %v1014
        %1016 = vmatmul.bf16.gmra.mxu0 %v477
        %v1017 = vpop.f32.mrf.mxu0
        %v1018 = vadd.f32 0.0, %v1017
        %v1019 = vpop.f32.mrf.mxu0
        %v1020 = vadd.f32 0.0, %v1019
        %1021 = vmatmul.bf16.gmra.mxu0 %v480
        %v1022 = vpop.f32.mrf.mxu0
        %v1023 = vadd.f32 0.0, %v1022
        %v1024 = vpop.f32.mrf.mxu0
        %v1025 = vadd.f32 0.0, %v1024
        %1026 = vdwg.mxu0
        %v1027 = vadd.f32 %v910, %v953
        %v1028 = vadd.f32 %v911, %v955
        %v1029 = vadd.f32 %v912, %v958
        %v1030 = vadd.f32 %v913, %v960
        %v1031 = vadd.f32 %v914, %v963
        %v1032 = vadd.f32 %v915, %v965
        %v1033 = vadd.f32 %v916, %v968
        %v1034 = vadd.f32 %v917, %v970
        %v1035 = vadd.f32 %v918, %v973
        %v1036 = vadd.f32 %v919, %v975
        %v1037 = vadd.f32 %v920, %v978
        %v1038 = vadd.f32 %v921, %v980
        %v1039 = vadd.f32 %v922, %v983
        %v1040 = vadd.f32 %v923, %v985
        %v1041 = vadd.f32 %v924, %v988
        %v1042 = vadd.f32 %v925, %v990
        %v1043 = vadd.f32 %v926, %v993
        %v1044 = vadd.f32 %v927, %v995
        %v1045 = vadd.f32 %v928, %v998
        %v1046 = vadd.f32 %v929, %v1000
        %v1047 = vadd.f32 %v930, %v1003
        %v1048 = vadd.f32 %v931, %v1005
        %v1049 = vadd.f32 %v932, %v1008
        %v1050 = vadd.f32 %v933, %v1010
        %v1051 = vadd.f32 %v934, %v1013
        %v1052 = vadd.f32 %v935, %v1015
        %v1053 = vadd.f32 %v936, %v1018
        %v1054 = vadd.f32 %v937, %v1020
        %v1055 = vadd.f32 %v938, %v1023
        %v1056 = vadd.f32 %v939, %v1025
        %1057 = vst [vmem:[#allocation2 + $0x10] sm:$0xff] %v1027
        %1058 = vst [vmem:[#allocation2 + $0x18] sm:$0xff] %v1028
        %1059 = vst [vmem:[#allocation2 + $0x20] sm:$0xff] %v1029
        %1060 = vst [vmem:[#allocation2 + $0x28] sm:$0xff] %v1030
        %1061 = vst [vmem:[#allocation2 + $0x30] sm:$0xff] %v1031
        %1062 = vst [vmem:[#allocation2 + $0x38] sm:$0xff] %v1032
        %1063 = vst [vmem:[#allocation2 + $0x40] sm:$0xff] %v1033
        %1064 = vst [vmem:[#allocation2 + $0x48] sm:$0xff] %v1034
        %1065 = vst [vmem:[#allocation2 + $0x50] sm:$0xff] %v1035
        %1066 = vst [vmem:[#allocation2 + $0x58] sm:$0xff] %v1036
        %1067 = vst [vmem:[#allocation2 + $0x60] sm:$0xff] %v1037
        %1068 = vst [vmem:[#allocation2 + $0x68] sm:$0xff] %v1038
        %1069 = vst [vmem:[#allocation2 + $0x70] sm:$0xff] %v1039
        %1070 = vst [vmem:[#allocation2 + $0x78] sm:$0xff] %v1040
        %1071 = vst [vmem:[#allocation2 + $0x80] sm:$0xff] %v1041
        %1072 = vst [vmem:[#allocation2 + $0x88] sm:$0xff] %v1042
        %1073 = vst [vmem:[#allocation2 + $0x90] sm:$0xff] %v1043
        %1074 = vst [vmem:[#allocation2 + $0x98] sm:$0xff] %v1044
        %1075 = vst [vmem:[#allocation2 + $0xa0] sm:$0xff] %v1045
        %1076 = vst [vmem:[#allocation2 + $0xa8] sm:$0xff] %v1046
        %1077 = vst [vmem:[#allocation2 + $0xb0] sm:$0xff] %v1047
        %1078 = vst [vmem:[#allocation2 + $0xb8] sm:$0xff] %v1048
        %1079 = vst [vmem:[#allocation2 + $0xc0] sm:$0xff] %v1049
        %1080 = vst [vmem:[#allocation2 + $0xc8] sm:$0xff] %v1050
        %1081 = vst [vmem:[#allocation2 + $0xd0] sm:$0xff] %v1051
        %1082 = vst [vmem:[#allocation2 + $0xd8] sm:$0xff] %v1052
        %1083 = vst [vmem:[#allocation2 + $0xe0] sm:$0xff] %v1053
        %1084 = vst [vmem:[#allocation2 + $0xe8] sm:$0xff] %v1054
        %1085 = vst [vmem:[#allocation2 + $0xf0] sm:$0xff] %v1055
        %1086 = vst [vmem:[#allocation2 + $0xf8] sm:$0xff] %v1056
        %s1087 = scalar_lea.vmem %s1, 4
        %v1088 = vld [vmem:[%s1087] sm:$0x3]
        %v1089 = vld [vmem:[#allocation2 + $0xf] sm:$0xff]
        %v1090 = vld [vmem:[#allocation2 + $0x17] sm:$0xff]
        %v1091 = vld [vmem:[#allocation2 + $0x1f] sm:$0xff]
        %v1092 = vld [vmem:[#allocation2 + $0x27] sm:$0xff]
        %v1093 = vld [vmem:[#allocation2 + $0x2f] sm:$0xff]
        %v1094 = vld [vmem:[#allocation2 + $0x37] sm:$0xff]
        %v1095 = vld [vmem:[#allocation2 + $0x3f] sm:$0xff]
        %v1096 = vld [vmem:[#allocation2 + $0x47] sm:$0xff]
        %v1097 = vld [vmem:[#allocation2 + $0x4f] sm:$0xff]
        %v1098 = vld [vmem:[#allocation2 + $0x57] sm:$0xff]
        %v1099 = vld [vmem:[#allocation2 + $0x5f] sm:$0xff]
        %v1100 = vld [vmem:[#allocation2 + $0x67] sm:$0xff]
        %v1101 = vld [vmem:[#allocation2 + $0x6f] sm:$0xff]
        %v1102 = vld [vmem:[#allocation2 + $0x77] sm:$0xff]
        %v1103 = vld [vmem:[#allocation2 + $0x7f] sm:$0xff]
        %v1104 = vld [vmem:[#allocation2 + $0x87] sm:$0xff]
        %v1105 = vld [vmem:[#allocation2 + $0x8f] sm:$0xff]
        %v1106 = vld [vmem:[#allocation2 + $0x97] sm:$0xff]
        %v1107 = vld [vmem:[#allocation2 + $0x9f] sm:$0xff]
        %v1108 = vld [vmem:[#allocation2 + $0xa7] sm:$0xff]
        %v1109 = vld [vmem:[#allocation2 + $0xaf] sm:$0xff]
        %v1110 = vld [vmem:[#allocation2 + $0xb7] sm:$0xff]
        %v1111 = vld [vmem:[#allocation2 + $0xbf] sm:$0xff]
        %v1112 = vld [vmem:[#allocation2 + $0xc7] sm:$0xff]
        %v1113 = vld [vmem:[#allocation2 + $0xcf] sm:$0xff]
        %v1114 = vld [vmem:[#allocation2 + $0xd7] sm:$0xff]
        %v1115 = vld [vmem:[#allocation2 + $0xdf] sm:$0xff]
        %v1116 = vld [vmem:[#allocation2 + $0xe7] sm:$0xff]
        %v1117 = vld [vmem:[#allocation2 + $0xef] sm:$0xff]
        %v1118 = vld [vmem:[#allocation2 + $0xf7] sm:$0xff]
        %v1119 = vld [vmem:[#allocation2 + $0xff] sm:$0x1]
        %v1151 = vunpack.c.l.b16 %v318
        %v1152 = vunpack.c.l.b16 %v319
        %v1153 = vunpack.c.l.b16 %v320
        %v1154 = vunpack.c.l.b16 %v321
        %v1155 = vunpack.c.l.b16 %v322
        %v1156 = vunpack.c.l.b16 %v323
        %v1157 = vunpack.c.l.b16 %v324
        %v1158 = vunpack.c.l.b16 %v325
        %v1159 = vunpack.c.l.b16 %v326
        %v1160 = vunpack.c.l.b16 %v327
        %v1161 = vunpack.c.l.b16 %v328
        %v1162 = vunpack.c.l.b16 %v329
        %v1163 = vunpack.c.l.b16 %v330
        %v1164 = vunpack.c.l.b16 %v331
        %v1165 = vunpack.c.l.b16 %v332
        %v1166 = vunpack.c.l.b16 %v333
        %v1167 = vunpack.c.l.b16 %v334
        %v1168 = vunpack.c.l.b16 %v335
        %v1169 = vunpack.c.l.b16 %v336
        %v1170 = vunpack.c.l.b16 %v337
        %v1171 = vunpack.c.l.b16 %v338
        %v1172 = vunpack.c.l.b16 %v339
        %v1173 = vunpack.c.l.b16 %v340
        %v1174 = vunpack.c.l.b16 %v341
        %v1175 = vunpack.c.l.b16 %v342
        %v1176 = vunpack.c.l.b16 %v343
        %v1177 = vunpack.c.l.b16 %v344
        %v1178 = vunpack.c.l.b16 %v345
        %v1179 = vunpack.c.l.b16 %v346
        %v1180 = vunpack.c.l.b16 %v347
        %v1181 = vunpack.c.l.b16 %v348
        %v1182 = vpack.c.b16 %v1152, %v1151
        %v1183 = vpack.c.b16 %v1154, %v1153
        %v1184 = vpack.c.b16 %v1156, %v1155
        %v1185 = vpack.c.b16 %v1158, %v1157
        %v1186 = vpack.c.b16 %v1160, %v1159
        %v1187 = vpack.c.b16 %v1162, %v1161
        %v1188 = vpack.c.b16 %v1164, %v1163
        %v1189 = vpack.c.b16 %v1166, %v1165
        %v1190 = vpack.c.b16 %v1168, %v1167
        %v1191 = vpack.c.b16 %v1170, %v1169
        %v1192 = vpack.c.b16 %v1172, %v1171
        %v1193 = vpack.c.b16 %v1174, %v1173
        %v1194 = vpack.c.b16 %v1176, %v1175
        %v1195 = vpack.c.b16 %v1178, %v1177
        %v1196 = vpack.c.b16 %v1180, %v1179
        %v1197 = vpack.c.b16 %v1181, %v1181
        %v1199 = vsel %vm436, %v1182, 0
        %v1202 = vsel %vm436, %v1183, 0
        %v1205 = vsel %vm436, %v1184, 0
        %v1208 = vsel %vm436, %v1185, 0
        %v1211 = vsel %vm436, %v1186, 0
        %v1214 = vsel %vm436, %v1187, 0
        %v1217 = vsel %vm436, %v1188, 0
        %v1220 = vsel %vm436, %v1189, 0
        %v1223 = vsel %vm436, %v1190, 0
        %v1226 = vsel %vm436, %v1191, 0
        %v1229 = vsel %vm436, %v1192, 0
        %v1232 = vsel %vm436, %v1193, 0
        %v1235 = vsel %vm436, %v1194, 0
        %v1238 = vsel %vm436, %v1195, 0
        %v1241 = vsel %vm436, %v1196, 0
        %v1244 = vsel %vm436, %v1197, 0
        %v1247 = vsel %vm485, %v1088, 0
        %1249 = vmatpush.bf16.msra.mxu0 0
        %1250 = vmatpush.bf16.msra.mxu0 0
        %1251 = vmatpush.bf16.msra.mxu0 0
        %1252 = vmatpush.bf16.msra.mxu0 0
        %1253 = vmatpush.bf16.msra.mxu0 0
        %1254 = vmatpush.bf16.msra.mxu0 0
        %1255 = vmatpush.bf16.msra.mxu0 0
        %1256 = vmatpush.bf16.msra.mxu0 %v1247
        %1257 = vmatmul.bf16.gmra.mxu0 %v1199
        %v1258 = vpop.f32.mrf.mxu0
        %v1259 = vadd.f32 0.0, %v1258
        %v1260 = vpop.f32.mrf.mxu0
        %v1261 = vadd.f32 0.0, %v1260
        %1262 = vmatmul.bf16.gmra.mxu0 %v1202
        %v1263 = vpop.f32.mrf.mxu0
        %v1264 = vadd.f32 0.0, %v1263
        %v1265 = vpop.f32.mrf.mxu0
        %v1266 = vadd.f32 0.0, %v1265
        %1267 = vmatmul.bf16.gmra.mxu0 %v1205
        %v1268 = vpop.f32.mrf.mxu0
        %v1269 = vadd.f32 0.0, %v1268
        %v1270 = vpop.f32.mrf.mxu0
        %v1271 = vadd.f32 0.0, %v1270
        %1272 = vmatmul.bf16.gmra.mxu0 %v1208
        %v1273 = vpop.f32.mrf.mxu0
        %v1274 = vadd.f32 0.0, %v1273
        %v1275 = vpop.f32.mrf.mxu0
        %v1276 = vadd.f32 0.0, %v1275
        %1277 = vmatmul.bf16.gmra.mxu0 %v1211
        %v1278 = vpop.f32.mrf.mxu0
        %v1279 = vadd.f32 0.0, %v1278
        %v1280 = vpop.f32.mrf.mxu0
        %v1281 = vadd.f32 0.0, %v1280
        %1282 = vmatmul.bf16.gmra.mxu0 %v1214
        %v1283 = vpop.f32.mrf.mxu0
        %v1284 = vadd.f32 0.0, %v1283
        %v1285 = vpop.f32.mrf.mxu0
        %v1286 = vadd.f32 0.0, %v1285
        %1287 = vmatmul.bf16.gmra.mxu0 %v1217
        %v1288 = vpop.f32.mrf.mxu0
        %v1289 = vadd.f32 0.0, %v1288
        %v1290 = vpop.f32.mrf.mxu0
        %v1291 = vadd.f32 0.0, %v1290
        %1292 = vmatmul.bf16.gmra.mxu0 %v1220
        %v1293 = vpop.f32.mrf.mxu0
        %v1294 = vadd.f32 0.0, %v1293
        %v1295 = vpop.f32.mrf.mxu0
        %v1296 = vadd.f32 0.0, %v1295
        %1297 = vmatmul.bf16.gmra.mxu0 %v1223
        %v1298 = vpop.f32.mrf.mxu0
        %v1299 = vadd.f32 0.0, %v1298
        %v1300 = vpop.f32.mrf.mxu0
        %v1301 = vadd.f32 0.0, %v1300
        %1302 = vmatmul.bf16.gmra.mxu0 %v1226
        %v1303 = vpop.f32.mrf.mxu0
        %v1304 = vadd.f32 0.0, %v1303
        %v1305 = vpop.f32.mrf.mxu0
        %v1306 = vadd.f32 0.0, %v1305
        %1307 = vmatmul.bf16.gmra.mxu0 %v1229
        %v1308 = vpop.f32.mrf.mxu0
        %v1309 = vadd.f32 0.0, %v1308
        %v1310 = vpop.f32.mrf.mxu0
        %v1311 = vadd.f32 0.0, %v1310
        %1312 = vmatmul.bf16.gmra.mxu0 %v1232
        %v1313 = vpop.f32.mrf.mxu0
        %v1314 = vadd.f32 0.0, %v1313
        %v1315 = vpop.f32.mrf.mxu0
        %v1316 = vadd.f32 0.0, %v1315
        %1317 = vmatmul.bf16.gmra.mxu0 %v1235
        %v1318 = vpop.f32.mrf.mxu0
        %v1319 = vadd.f32 0.0, %v1318
        %v1320 = vpop.f32.mrf.mxu0
        %v1321 = vadd.f32 0.0, %v1320
        %1322 = vmatmul.bf16.gmra.mxu0 %v1238
        %v1323 = vpop.f32.mrf.mxu0
        %v1324 = vadd.f32 0.0, %v1323
        %v1325 = vpop.f32.mrf.mxu0
        %v1326 = vadd.f32 0.0, %v1325
        %1327 = vmatmul.bf16.gmra.mxu0 %v1241
        %v1328 = vpop.f32.mrf.mxu0
        %v1329 = vadd.f32 0.0, %v1328
        %v1330 = vpop.f32.mrf.mxu0
        %v1331 = vadd.f32 0.0, %v1330
        %1332 = vmatmul.bf16.gmra.mxu0 %v1244
        %v1333 = vpop.f32.mrf.mxu0
        %v1334 = vadd.f32 0.0, %v1333
        %v1335 = vpop.f32.mrf.mxu0
        %1336 = vdwg.mxu0
        %v1337 = vadd.f32 %v1089, %v1259
        %v1338 = vadd.f32 %v1090, %v1261
        %v1339 = vadd.f32 %v1091, %v1264
        %v1340 = vadd.f32 %v1092, %v1266
        %v1341 = vadd.f32 %v1093, %v1269
        %v1342 = vadd.f32 %v1094, %v1271
        %v1343 = vadd.f32 %v1095, %v1274
        %v1344 = vadd.f32 %v1096, %v1276
        %v1345 = vadd.f32 %v1097, %v1279
        %v1346 = vadd.f32 %v1098, %v1281
        %v1347 = vadd.f32 %v1099, %v1284
        %v1348 = vadd.f32 %v1100, %v1286
        %v1349 = vadd.f32 %v1101, %v1289
        %v1350 = vadd.f32 %v1102, %v1291
        %v1351 = vadd.f32 %v1103, %v1294
        %v1352 = vadd.f32 %v1104, %v1296
        %v1353 = vadd.f32 %v1105, %v1299
        %v1354 = vadd.f32 %v1106, %v1301
        %v1355 = vadd.f32 %v1107, %v1304
        %v1356 = vadd.f32 %v1108, %v1306
        %v1357 = vadd.f32 %v1109, %v1309
        %v1358 = vadd.f32 %v1110, %v1311
        %v1359 = vadd.f32 %v1111, %v1314
        %v1360 = vadd.f32 %v1112, %v1316
        %v1361 = vadd.f32 %v1113, %v1319
        %v1362 = vadd.f32 %v1114, %v1321
        %v1363 = vadd.f32 %v1115, %v1324
        %v1364 = vadd.f32 %v1116, %v1326
        %v1365 = vadd.f32 %v1117, %v1329
        %v1366 = vadd.f32 %v1118, %v1331
        %v1367 = vadd.f32 %v1119, %v1334
        %1368 = vst [vmem:[#allocation2 + $0xf] sm:$0xff] %v1337
        %1369 = vst [vmem:[#allocation2 + $0x17] sm:$0xff] %v1338
        %1370 = vst [vmem:[#allocation2 + $0x1f] sm:$0xff] %v1339
        %1371 = vst [vmem:[#allocation2 + $0x27] sm:$0xff] %v1340
        %1372 = vst [vmem:[#allocation2 + $0x2f] sm:$0xff] %v1341
        %1373 = vst [vmem:[#allocation2 + $0x37] sm:$0xff] %v1342
        %1374 = vst [vmem:[#allocation2 + $0x3f] sm:$0xff] %v1343
        %1375 = vst [vmem:[#allocation2 + $0x47] sm:$0xff] %v1344
        %1376 = vst [vmem:[#allocation2 + $0x4f] sm:$0xff] %v1345
        %1377 = vst [vmem:[#allocation2 + $0x57] sm:$0xff] %v1346
        %1378 = vst [vmem:[#allocation2 + $0x5f] sm:$0xff] %v1347
        %1379 = vst [vmem:[#allocation2 + $0x67] sm:$0xff] %v1348
        %1380 = vst [vmem:[#allocation2 + $0x6f] sm:$0xff] %v1349
        %1381 = vst [vmem:[#allocation2 + $0x77] sm:$0xff] %v1350
        %1382 = vst [vmem:[#allocation2 + $0x7f] sm:$0xff] %v1351
        %1383 = vst [vmem:[#allocation2 + $0x87] sm:$0xff] %v1352
        %1384 = vst [vmem:[#allocation2 + $0x8f] sm:$0xff] %v1353
        %1385 = vst [vmem:[#allocation2 + $0x97] sm:$0xff] %v1354
        %1386 = vst [vmem:[#allocation2 + $0x9f] sm:$0xff] %v1355
        %1387 = vst [vmem:[#allocation2 + $0xa7] sm:$0xff] %v1356
        %1388 = vst [vmem:[#allocation2 + $0xaf] sm:$0xff] %v1357
        %1389 = vst [vmem:[#allocation2 + $0xb7] sm:$0xff] %v1358
        %1390 = vst [vmem:[#allocation2 + $0xbf] sm:$0xff] %v1359
        %1391 = vst [vmem:[#allocation2 + $0xc7] sm:$0xff] %v1360
        %1392 = vst [vmem:[#allocation2 + $0xcf] sm:$0xff] %v1361
        %1393 = vst [vmem:[#allocation2 + $0xd7] sm:$0xff] %v1362
        %1394 = vst [vmem:[#allocation2 + $0xdf] sm:$0xff] %v1363
        %1395 = vst [vmem:[#allocation2 + $0xe7] sm:$0xff] %v1364
        %1396 = vst [vmem:[#allocation2 + $0xef] sm:$0xff] %v1365
        %1397 = vst [vmem:[#allocation2 + $0xf7] sm:$0xff] %v1366
        %1398 = vst [vmem:[#allocation2 + $0xff] sm:$0x1] %v1367
        %s1399 = scalar_lea.vmem %s1, 6
        %v1400 = vld [vmem:[%s1399] sm:$0x3]
        %v1401 = vld [vmem:[#allocation2 + $0x1] sm:$0xff]
        %v1402 = vld [vmem:[#allocation2 + $0x9] sm:$0xff]
        %v1403 = vld [vmem:[#allocation2 + $0x11] sm:$0xff]
        %v1404 = vld [vmem:[#allocation2 + $0x19] sm:$0xff]
        %v1405 = vld [vmem:[#allocation2 + $0x21] sm:$0xff]
        %v1406 = vld [vmem:[#allocation2 + $0x29] sm:$0xff]
        %v1407 = vld [vmem:[#allocation2 + $0x31] sm:$0xff]
        %v1408 = vld [vmem:[#allocation2 + $0x39] sm:$0xff]
        %v1409 = vld [vmem:[#allocation2 + $0x41] sm:$0xff]
        %v1410 = vld [vmem:[#allocation2 + $0x49] sm:$0xff]
        %v1411 = vld [vmem:[#allocation2 + $0x51] sm:$0xff]
        %v1412 = vld [vmem:[#allocation2 + $0x59] sm:$0xff]
        %v1413 = vld [vmem:[#allocation2 + $0x61] sm:$0xff]
        %v1414 = vld [vmem:[#allocation2 + $0x69] sm:$0xff]
        %v1415 = vld [vmem:[#allocation2 + $0x71] sm:$0xff]
        %v1416 = vld [vmem:[#allocation2 + $0x79] sm:$0xff]
        %v1417 = vld [vmem:[#allocation2 + $0x81] sm:$0xff]
        %v1418 = vld [vmem:[#allocation2 + $0x89] sm:$0xff]
        %v1419 = vld [vmem:[#allocation2 + $0x91] sm:$0xff]
        %v1420 = vld [vmem:[#allocation2 + $0x99] sm:$0xff]
        %v1421 = vld [vmem:[#allocation2 + $0xa1] sm:$0xff]
        %v1422 = vld [vmem:[#allocation2 + $0xa9] sm:$0xff]
        %v1423 = vld [vmem:[#allocation2 + $0xb1] sm:$0xff]
        %v1424 = vld [vmem:[#allocation2 + $0xb9] sm:$0xff]
        %v1425 = vld [vmem:[#allocation2 + $0xc1] sm:$0xff]
        %v1426 = vld [vmem:[#allocation2 + $0xc9] sm:$0xff]
        %v1427 = vld [vmem:[#allocation2 + $0xd1] sm:$0xff]
        %v1428 = vld [vmem:[#allocation2 + $0xd9] sm:$0xff]
        %v1429 = vld [vmem:[#allocation2 + $0xe1] sm:$0xff]
        %v1430 = vld [vmem:[#allocation2 + $0xe9] sm:$0xff]
        %v1431 = vld [vmem:[#allocation2 + $0xf1] sm:$0xff]
        %v1432 = vld [vmem:[#allocation2 + $0xf9] sm:$0x7f]
        %v1435 = vunpack.c.l.b16 %v312
        %v1436 = vunpack.c.l.b16 %v313
        %v1437 = vpack.c.b16 %v1436, %v1435
        %v1439 = vsel %vm436, %v1437, 0
        %v1442 = vsel %vm485, %v1400, 0
        %1444 = vmatpush.bf16.msra.mxu0 0
        %1445 = vmatpush.bf16.msra.mxu0 0
        %1446 = vmatpush.bf16.msra.mxu0 0
        %1447 = vmatpush.bf16.msra.mxu0 0
        %1448 = vmatpush.bf16.msra.mxu0 0
        %1449 = vmatpush.bf16.msra.mxu0 0
        %1450 = vmatpush.bf16.msra.mxu0 0
        %1451 = vmatpush.bf16.msra.mxu0 %v1442
        %1452 = vmatmul.bf16.gmra.mxu0 %v717
        %v1453 = vpop.f32.mrf.mxu0
        %v1454 = vadd.f32 0.0, %v1453
        %v1455 = vpop.f32.mrf.mxu0
        %v1456 = vadd.f32 0.0, %v1455
        %1457 = vmatmul.bf16.gmra.mxu0 %v720
        %v1458 = vpop.f32.mrf.mxu0
        %v1459 = vadd.f32 0.0, %v1458
        %v1460 = vpop.f32.mrf.mxu0
        %v1461 = vadd.f32 0.0, %v1460
        %1462 = vmatmul.bf16.gmra.mxu0 %v723
        %v1463 = vpop.f32.mrf.mxu0
        %v1464 = vadd.f32 0.0, %v1463
        %v1465 = vpop.f32.mrf.mxu0
        %v1466 = vadd.f32 0.0, %v1465
        %1467 = vmatmul.bf16.gmra.mxu0 %v726
        %v1468 = vpop.f32.mrf.mxu0
        %v1469 = vadd.f32 0.0, %v1468
        %v1470 = vpop.f32.mrf.mxu0
        %v1471 = vadd.f32 0.0, %v1470
        %1472 = vmatmul.bf16.gmra.mxu0 %v729
        %v1473 = vpop.f32.mrf.mxu0
        %v1474 = vadd.f32 0.0, %v1473
        %v1475 = vpop.f32.mrf.mxu0
        %v1476 = vadd.f32 0.0, %v1475
        %1477 = vmatmul.bf16.gmra.mxu0 %v732
        %v1478 = vpop.f32.mrf.mxu0
        %v1479 = vadd.f32 0.0, %v1478
        %v1480 = vpop.f32.mrf.mxu0
        %v1481 = vadd.f32 0.0, %v1480
        %1482 = vmatmul.bf16.gmra.mxu0 %v735
        %v1483 = vpop.f32.mrf.mxu0
        %v1484 = vadd.f32 0.0, %v1483
        %v1485 = vpop.f32.mrf.mxu0
        %v1486 = vadd.f32 0.0, %v1485
        %1487 = vmatmul.bf16.gmra.mxu0 %v738
        %v1488 = vpop.f32.mrf.mxu0
        %v1489 = vadd.f32 0.0, %v1488
        %v1490 = vpop.f32.mrf.mxu0
        %v1491 = vadd.f32 0.0, %v1490
        %1492 = vmatmul.bf16.gmra.mxu0 %v741
        %v1493 = vpop.f32.mrf.mxu0
        %v1494 = vadd.f32 0.0, %v1493
        %v1495 = vpop.f32.mrf.mxu0
        %v1496 = vadd.f32 0.0, %v1495
        %1497 = vmatmul.bf16.gmra.mxu0 %v744
        %v1498 = vpop.f32.mrf.mxu0
        %v1499 = vadd.f32 0.0, %v1498
        %v1500 = vpop.f32.mrf.mxu0
        %v1501 = vadd.f32 0.0, %v1500
        %1502 = vmatmul.bf16.gmra.mxu0 %v747
        %v1503 = vpop.f32.mrf.mxu0
        %v1504 = vadd.f32 0.0, %v1503
        %v1505 = vpop.f32.mrf.mxu0
        %v1506 = vadd.f32 0.0, %v1505
        %1507 = vmatmul.bf16.gmra.mxu0 %v750
        %v1508 = vpop.f32.mrf.mxu0
        %v1509 = vadd.f32 0.0, %v1508
        %v1510 = vpop.f32.mrf.mxu0
        %v1511 = vadd.f32 0.0, %v1510
        %1512 = vmatmul.bf16.gmra.mxu0 %v753
        %v1513 = vpop.f32.mrf.mxu0
        %v1514 = vadd.f32 0.0, %v1513
        %v1515 = vpop.f32.mrf.mxu0
        %v1516 = vadd.f32 0.0, %v1515
        %1517 = vmatmul.bf16.gmra.mxu0 %v756
        %v1518 = vpop.f32.mrf.mxu0
        %v1519 = vadd.f32 0.0, %v1518
        %v1520 = vpop.f32.mrf.mxu0
        %v1521 = vadd.f32 0.0, %v1520
        %1522 = vmatmul.bf16.gmra.mxu0 %v759
        %v1523 = vpop.f32.mrf.mxu0
        %v1524 = vadd.f32 0.0, %v1523
        %v1525 = vpop.f32.mrf.mxu0
        %v1526 = vadd.f32 0.0, %v1525
        %1527 = vmatmul.bf16.gmra.mxu0 %v1439
        %v1528 = vpop.f32.mrf.mxu0
        %v1529 = vadd.f32 0.0, %v1528
        %v1530 = vpop.f32.mrf.mxu0
        %v1531 = vadd.f32 0.0, %v1530
        %1532 = vdwg.mxu0
        %v1533 = vadd.f32 %v1401, %v1454
        %v1534 = vadd.f32 %v1402, %v1456
        %v1535 = vadd.f32 %v1403, %v1459
        %v1536 = vadd.f32 %v1404, %v1461
        %v1537 = vadd.f32 %v1405, %v1464
        %v1538 = vadd.f32 %v1406, %v1466
        %v1539 = vadd.f32 %v1407, %v1469
        %v1540 = vadd.f32 %v1408, %v1471
        %v1541 = vadd.f32 %v1409, %v1474
        %v1542 = vadd.f32 %v1410, %v1476
        %v1543 = vadd.f32 %v1411, %v1479
        %v1544 = vadd.f32 %v1412, %v1481
        %v1545 = vadd.f32 %v1413, %v1484
        %v1546 = vadd.f32 %v1414, %v1486
        %v1547 = vadd.f32 %v1415, %v1489
        %v1548 = vadd.f32 %v1416, %v1491
        %v1549 = vadd.f32 %v1417, %v1494
        %v1550 = vadd.f32 %v1418, %v1496
        %v1551 = vadd.f32 %v1419, %v1499
        %v1552 = vadd.f32 %v1420, %v1501
        %v1553 = vadd.f32 %v1421, %v1504
        %v1554 = vadd.f32 %v1422, %v1506
        %v1555 = vadd.f32 %v1423, %v1509
        %v1556 = vadd.f32 %v1424, %v1511
        %v1557 = vadd.f32 %v1425, %v1514
        %v1558 = vadd.f32 %v1426, %v1516
        %v1559 = vadd.f32 %v1427, %v1519
        %v1560 = vadd.f32 %v1428, %v1521
        %v1561 = vadd.f32 %v1429, %v1524
        %v1562 = vadd.f32 %v1430, %v1526
        %v1563 = vadd.f32 %v1431, %v1529
        %v1564 = vadd.f32 %v1432, %v1531
        %1565 = vst [vmem:[#allocation2 + $0x1] sm:$0xff] %v1533
        %1566 = vst [vmem:[#allocation2 + $0x9] sm:$0xff] %v1534
        %1567 = vst [vmem:[#allocation2 + $0x11] sm:$0xff] %v1535
        %1568 = vst [vmem:[#allocation2 + $0x19] sm:$0xff] %v1536
        %1569 = vst [vmem:[#allocation2 + $0x21] sm:$0xff] %v1537
        %1570 = vst [vmem:[#allocation2 + $0x29] sm:$0xff] %v1538
        %1571 = vst [vmem:[#allocation2 + $0x31] sm:$0xff] %v1539
        %1572 = vst [vmem:[#allocation2 + $0x39] sm:$0xff] %v1540
        %1573 = vst [vmem:[#allocation2 + $0x41] sm:$0xff] %v1541
        %1574 = vst [vmem:[#allocation2 + $0x49] sm:$0xff] %v1542
        %1575 = vst [vmem:[#allocation2 + $0x51] sm:$0xff] %v1543
        %1576 = vst [vmem:[#allocation2 + $0x59] sm:$0xff] %v1544
        %1577 = vst [vmem:[#allocation2 + $0x61] sm:$0xff] %v1545
        %1578 = vst [vmem:[#allocation2 + $0x69] sm:$0xff] %v1546
        %1579 = vst [vmem:[#allocation2 + $0x71] sm:$0xff] %v1547
        %1580 = vst [vmem:[#allocation2 + $0x79] sm:$0xff] %v1548
        %1581 = vst [vmem:[#allocation2 + $0x81] sm:$0xff] %v1549
        %1582 = vst [vmem:[#allocation2 + $0x89] sm:$0xff] %v1550
        %1583 = vst [vmem:[#allocation2 + $0x91] sm:$0xff] %v1551
        %1584 = vst [vmem:[#allocation2 + $0x99] sm:$0xff] %v1552
        %1585 = vst [vmem:[#allocation2 + $0xa1] sm:$0xff] %v1553
        %1586 = vst [vmem:[#allocation2 + $0xa9] sm:$0xff] %v1554
        %1587 = vst [vmem:[#allocation2 + $0xb1] sm:$0xff] %v1555
        %1588 = vst [vmem:[#allocation2 + $0xb9] sm:$0xff] %v1556
        %1589 = vst [vmem:[#allocation2 + $0xc1] sm:$0xff] %v1557
        %1590 = vst [vmem:[#allocation2 + $0xc9] sm:$0xff] %v1558
        %1591 = vst [vmem:[#allocation2 + $0xd1] sm:$0xff] %v1559
        %1592 = vst [vmem:[#allocation2 + $0xd9] sm:$0xff] %v1560
        %1593 = vst [vmem:[#allocation2 + $0xe1] sm:$0xff] %v1561
        %1594 = vst [vmem:[#allocation2 + $0xe9] sm:$0xff] %v1562
        %1595 = vst [vmem:[#allocation2 + $0xf1] sm:$0xff] %v1563
        %1596 = vst [vmem:[#allocation2 + $0xf9] sm:$0x7f] %v1564
        %s1597 = scalar_lea.vmem %s1, 10
        %v1598 = vld [vmem:[%s1597] sm:$0x3]
        %v1599 = vld [vmem:[#allocation2] sm:$0xff]
        %v1600 = vld [vmem:[#allocation2 + $0x8] sm:$0xff]
        %v1601 = vld [vmem:[#allocation2 + $0x10] sm:$0xff]
        %v1602 = vld [vmem:[#allocation2 + $0x18] sm:$0xff]
        %v1603 = vld [vmem:[#allocation2 + $0x20] sm:$0xff]
        %v1604 = vld [vmem:[#allocation2 + $0x28] sm:$0xff]
        %v1605 = vld [vmem:[#allocation2 + $0x30] sm:$0xff]
        %v1606 = vld [vmem:[#allocation2 + $0x38] sm:$0xff]
        %v1607 = vld [vmem:[#allocation2 + $0x40] sm:$0xff]
        %v1608 = vld [vmem:[#allocation2 + $0x48] sm:$0xff]
        %v1609 = vld [vmem:[#allocation2 + $0x50] sm:$0xff]
        %v1610 = vld [vmem:[#allocation2 + $0x58] sm:$0xff]
        %v1611 = vld [vmem:[#allocation2 + $0x60] sm:$0xff]
        %v1612 = vld [vmem:[#allocation2 + $0x68] sm:$0xff]
        %v1613 = vld [vmem:[#allocation2 + $0x70] sm:$0xff]
        %v1614 = vld [vmem:[#allocation2 + $0x78] sm:$0xff]
        %v1615 = vld [vmem:[#allocation2 + $0x80] sm:$0xff]
        %v1616 = vld [vmem:[#allocation2 + $0x88] sm:$0xff]
        %v1617 = vld [vmem:[#allocation2 + $0x90] sm:$0xff]
        %v1618 = vld [vmem:[#allocation2 + $0x98] sm:$0xff]
        %v1619 = vld [vmem:[#allocation2 + $0xa0] sm:$0xff]
        %v1620 = vld [vmem:[#allocation2 + $0xa8] sm:$0xff]
        %v1621 = vld [vmem:[#allocation2 + $0xb0] sm:$0xff]
        %v1622 = vld [vmem:[#allocation2 + $0xb8] sm:$0xff]
        %v1623 = vld [vmem:[#allocation2 + $0xc0] sm:$0xff]
        %v1624 = vld [vmem:[#allocation2 + $0xc8] sm:$0xff]
        %v1625 = vld [vmem:[#allocation2 + $0xd0] sm:$0xff]
        %v1626 = vld [vmem:[#allocation2 + $0xd8] sm:$0xff]
        %v1627 = vld [vmem:[#allocation2 + $0xe0] sm:$0xff]
        %v1628 = vld [vmem:[#allocation2 + $0xe8] sm:$0xff]
        %v1629 = vld [vmem:[#allocation2 + $0xf0] sm:$0xff]
        %v1630 = vld [vmem:[#allocation2 + $0xf8] sm:$0x7f]
        %v1632 = vunpack.c.l.b16 %v349
        %v1633 = vpack.c.b16 %v1632, %v1181
        %vm1634 = vsmask.f32 7424
        %v1635 = vshrl.u32 %v1182, 16
        %v1637 = vshll.u32 %v1182, 16
        %v1639 = vrot.slane %v1637, 1
        %v1640 = vor.u32 %v1635, %v1639
        %v1641 = vshll.u32 %v1183, 16
        %v1643 = vrot.slane %v1641, 1
        %v1644 = vsel %vm1634, %v1640, %v1643
        %v1645 = vshrl.u32 %v1183, 16
        %v1647 = vor.u32 %v1645, %v1643
        %v1648 = vshll.u32 %v1184, 16
        %v1650 = vrot.slane %v1648, 1
        %v1651 = vsel %vm1634, %v1647, %v1650
        %v1652 = vshrl.u32 %v1184, 16
        %v1654 = vor.u32 %v1652, %v1650
        %v1655 = vshll.u32 %v1185, 16
        %v1657 = vrot.slane %v1655, 1
        %v1658 = vsel %vm1634, %v1654, %v1657
        %v1659 = vshrl.u32 %v1185, 16
        %v1661 = vor.u32 %v1659, %v1657
        %v1662 = vshll.u32 %v1186, 16
        %v1664 = vrot.slane %v1662, 1
        %v1665 = vsel %vm1634, %v1661, %v1664
        %v1666 = vshrl.u32 %v1186, 16
        %v1668 = vor.u32 %v1666, %v1664
        %v1669 = vshll.u32 %v1187, 16
        %v1671 = vrot.slane %v1669, 1
        %v1672 = vsel %vm1634, %v1668, %v1671
        %v1673 = vshrl.u32 %v1187, 16
        %v1675 = vor.u32 %v1673, %v1671
        %v1676 = vshll.u32 %v1188, 16
        %v1678 = vrot.slane %v1676, 1
        %v1679 = vsel %vm1634, %v1675, %v1678
        %v1680 = vshrl.u32 %v1188, 16
        %v1682 = vor.u32 %v1680, %v1678
        %v1683 = vshll.u32 %v1189, 16
        %v1685 = vrot.slane %v1683, 1
        %v1686 = vsel %vm1634, %v1682, %v1685
        %v1687 = vshrl.u32 %v1189, 16
        %v1689 = vor.u32 %v1687, %v1685
        %v1690 = vshll.u32 %v1190, 16
        %v1692 = vrot.slane %v1690, 1
        %v1693 = vsel %vm1634, %v1689, %v1692
        %v1694 = vshrl.u32 %v1190, 16
        %v1696 = vor.u32 %v1694, %v1692
        %v1697 = vshll.u32 %v1191, 16
        %v1699 = vrot.slane %v1697, 1
        %v1700 = vsel %vm1634, %v1696, %v1699
        %v1701 = vshrl.u32 %v1191, 16
        %v1703 = vor.u32 %v1701, %v1699
        %v1704 = vshll.u32 %v1192, 16
        %v1706 = vrot.slane %v1704, 1
        %v1707 = vsel %vm1634, %v1703, %v1706
        %v1708 = vshrl.u32 %v1192, 16
        %v1710 = vor.u32 %v1708, %v1706
        %v1711 = vshll.u32 %v1193, 16
        %v1713 = vrot.slane %v1711, 1
        %v1714 = vsel %vm1634, %v1710, %v1713
        %v1715 = vshrl.u32 %v1193, 16
        %v1717 = vor.u32 %v1715, %v1713
        %v1718 = vshll.u32 %v1194, 16
        %v1720 = vrot.slane %v1718, 1
        %v1721 = vsel %vm1634, %v1717, %v1720
        %v1722 = vshrl.u32 %v1194, 16
        %v1724 = vor.u32 %v1722, %v1720
        %v1725 = vshll.u32 %v1195, 16
        %v1727 = vrot.slane %v1725, 1
        %v1728 = vsel %vm1634, %v1724, %v1727
        %v1729 = vshrl.u32 %v1195, 16
        %v1731 = vor.u32 %v1729, %v1727
        %v1732 = vshll.u32 %v1196, 16
        %v1734 = vrot.slane %v1732, 1
        %v1735 = vsel %vm1634, %v1731, %v1734
        %v1736 = vshrl.u32 %v1196, 16
        %v1738 = vor.u32 %v1736, %v1734
        %v1740 = vshll.u32 %v1633, 16
        %v1742 = vrot.slane %v1740, 1
        %v1743 = vsel %vm1634, %v1738, %v1742
        %v1744 = vshrl.u32 %v1633, 16
        %v1746 = vor.u32 %v1744, %v1742
        %v1748 = vsel %vm436, %v1644, 0
        %v1751 = vsel %vm436, %v1651, 0
        %v1754 = vsel %vm436, %v1658, 0
        %v1757 = vsel %vm436, %v1665, 0
        %v1760 = vsel %vm436, %v1672, 0
        %v1763 = vsel %vm436, %v1679, 0
        %v1766 = vsel %vm436, %v1686, 0
        %v1769 = vsel %vm436, %v1693, 0
        %v1772 = vsel %vm436, %v1700, 0
        %v1775 = vsel %vm436, %v1707, 0
        %v1778 = vsel %vm436, %v1714, 0
        %v1781 = vsel %vm436, %v1721, 0
        %v1784 = vsel %vm436, %v1728, 0
        %v1787 = vsel %vm436, %v1735, 0
        %v1790 = vsel %vm436, %v1743, 0
        %v1793 = vsel %vm436, %v1746, 0
        %v1796 = vsel %vm485, %v1598, 0
        %1798 = vmatpush.bf16.msra.mxu0 0
        %1799 = vmatpush.bf16.msra.mxu0 0
        %1800 = vmatpush.bf16.msra.mxu0 0
        %1801 = vmatpush.bf16.msra.mxu0 0
        %1802 = vmatpush.bf16.msra.mxu0 0
        %1803 = vmatpush.bf16.msra.mxu0 0
        %1804 = vmatpush.bf16.msra.mxu0 0
        %1805 = vmatpush.bf16.msra.mxu0 %v1796
        %1806 = vmatmul.bf16.gmra.mxu0 %v1748
        %v1807 = vpop.f32.mrf.mxu0
        %v1808 = vadd.f32 0.0, %v1807
        %v1809 = vpop.f32.mrf.mxu0
        %v1810 = vadd.f32 0.0, %v1809
        %1811 = vmatmul.bf16.gmra.mxu0 %v1751
        %v1812 = vpop.f32.mrf.mxu0
        %v1813 = vadd.f32 0.0, %v1812
        %v1814 = vpop.f32.mrf.mxu0
        %v1815 = vadd.f32 0.0, %v1814
        %1816 = vmatmul.bf16.gmra.mxu0 %v1754
        %v1817 = vpop.f32.mrf.mxu0
        %v1818 = vadd.f32 0.0, %v1817
        %v1819 = vpop.f32.mrf.mxu0
        %v1820 = vadd.f32 0.0, %v1819
        %1821 = vmatmul.bf16.gmra.mxu0 %v1757
        %v1822 = vpop.f32.mrf.mxu0
        %v1823 = vadd.f32 0.0, %v1822
        %v1824 = vpop.f32.mrf.mxu0
        %v1825 = vadd.f32 0.0, %v1824
        %1826 = vmatmul.bf16.gmra.mxu0 %v1760
        %v1827 = vpop.f32.mrf.mxu0
        %v1828 = vadd.f32 0.0, %v1827
        %v1829 = vpop.f32.mrf.mxu0
        %v1830 = vadd.f32 0.0, %v1829
        %1831 = vmatmul.bf16.gmra.mxu0 %v1763
        %v1832 = vpop.f32.mrf.mxu0
        %v1833 = vadd.f32 0.0, %v1832
        %v1834 = vpop.f32.mrf.mxu0
        %v1835 = vadd.f32 0.0, %v1834
        %1836 = vmatmul.bf16.gmra.mxu0 %v1766
        %v1837 = vpop.f32.mrf.mxu0
        %v1838 = vadd.f32 0.0, %v1837
        %v1839 = vpop.f32.mrf.mxu0
        %v1840 = vadd.f32 0.0, %v1839
        %1841 = vmatmul.bf16.gmra.mxu0 %v1769
        %v1842 = vpop.f32.mrf.mxu0
        %v1843 = vadd.f32 0.0, %v1842
        %v1844 = vpop.f32.mrf.mxu0
        %v1845 = vadd.f32 0.0, %v1844
        %1846 = vmatmul.bf16.gmra.mxu0 %v1772
        %v1847 = vpop.f32.mrf.mxu0
        %v1848 = vadd.f32 0.0, %v1847
        %v1849 = vpop.f32.mrf.mxu0
        %v1850 = vadd.f32 0.0, %v1849
        %1851 = vmatmul.bf16.gmra.mxu0 %v1775
        %v1852 = vpop.f32.mrf.mxu0
        %v1853 = vadd.f32 0.0, %v1852
        %v1854 = vpop.f32.mrf.mxu0
        %v1855 = vadd.f32 0.0, %v1854
        %1856 = vmatmul.bf16.gmra.mxu0 %v1778
        %v1857 = vpop.f32.mrf.mxu0
        %v1858 = vadd.f32 0.0, %v1857
        %v1859 = vpop.f32.mrf.mxu0
        %v1860 = vadd.f32 0.0, %v1859
        %1861 = vmatmul.bf16.gmra.mxu0 %v1781
        %v1862 = vpop.f32.mrf.mxu0
        %v1863 = vadd.f32 0.0, %v1862
        %v1864 = vpop.f32.mrf.mxu0
        %v1865 = vadd.f32 0.0, %v1864
        %1866 = vmatmul.bf16.gmra.mxu0 %v1784
        %v1867 = vpop.f32.mrf.mxu0
        %v1868 = vadd.f32 0.0, %v1867
        %v1869 = vpop.f32.mrf.mxu0
        %v1870 = vadd.f32 0.0, %v1869
        %1871 = vmatmul.bf16.gmra.mxu0 %v1787
        %v1872 = vpop.f32.mrf.mxu0
        %v1873 = vadd.f32 0.0, %v1872
        %v1874 = vpop.f32.mrf.mxu0
        %v1875 = vadd.f32 0.0, %v1874
        %1876 = vmatmul.bf16.gmra.mxu0 %v1790
        %v1877 = vpop.f32.mrf.mxu0
        %v1878 = vadd.f32 0.0, %v1877
        %v1879 = vpop.f32.mrf.mxu0
        %v1880 = vadd.f32 0.0, %v1879
        %1881 = vmatmul.bf16.gmra.mxu0 %v1793
        %v1882 = vpop.f32.mrf.mxu0
        %v1883 = vadd.f32 0.0, %v1882
        %v1884 = vpop.f32.mrf.mxu0
        %v1885 = vadd.f32 0.0, %v1884
        %1886 = vdwg.mxu0
        %v1887 = vadd.f32 %v1599, %v1808
        %v1888 = vadd.f32 %v1600, %v1810
        %v1889 = vadd.f32 %v1601, %v1813
        %v1890 = vadd.f32 %v1602, %v1815
        %v1891 = vadd.f32 %v1603, %v1818
        %v1892 = vadd.f32 %v1604, %v1820
        %v1893 = vadd.f32 %v1605, %v1823
        %v1894 = vadd.f32 %v1606, %v1825
        %v1895 = vadd.f32 %v1607, %v1828
        %v1896 = vadd.f32 %v1608, %v1830
        %v1897 = vadd.f32 %v1609, %v1833
        %v1898 = vadd.f32 %v1610, %v1835
        %v1899 = vadd.f32 %v1611, %v1838
        %v1900 = vadd.f32 %v1612, %v1840
        %v1901 = vadd.f32 %v1613, %v1843
        %v1902 = vadd.f32 %v1614, %v1845
        %v1903 = vadd.f32 %v1615, %v1848
        %v1904 = vadd.f32 %v1616, %v1850
        %v1905 = vadd.f32 %v1617, %v1853
        %v1906 = vadd.f32 %v1618, %v1855
        %v1907 = vadd.f32 %v1619, %v1858
        %v1908 = vadd.f32 %v1620, %v1860
        %v1909 = vadd.f32 %v1621, %v1863
        %v1910 = vadd.f32 %v1622, %v1865
        %v1911 = vadd.f32 %v1623, %v1868
        %v1912 = vadd.f32 %v1624, %v1870
        %v1913 = vadd.f32 %v1625, %v1873
        %v1914 = vadd.f32 %v1626, %v1875
        %v1915 = vadd.f32 %v1627, %v1878
        %v1916 = vadd.f32 %v1628, %v1880
        %v1917 = vadd.f32 %v1629, %v1883
        %v1918 = vadd.f32 %v1630, %v1885
        %1919 = vst [vmem:[#allocation2] sm:$0xff] %v1887
        %1920 = vst [vmem:[#allocation2 + $0x8] sm:$0xff] %v1888
        %1921 = vst [vmem:[#allocation2 + $0x10] sm:$0xff] %v1889
        %1922 = vst [vmem:[#allocation2 + $0x18] sm:$0xff] %v1890
        %1923 = vst [vmem:[#allocation2 + $0x20] sm:$0xff] %v1891
        %1924 = vst [vmem:[#allocation2 + $0x28] sm:$0xff] %v1892
        %1925 = vst [vmem:[#allocation2 + $0x30] sm:$0xff] %v1893
        %1926 = vst [vmem:[#allocation2 + $0x38] sm:$0xff] %v1894
        %1927 = vst [vmem:[#allocation2 + $0x40] sm:$0xff] %v1895
        %1928 = vst [vmem:[#allocation2 + $0x48] sm:$0xff] %v1896
        %1929 = vst [vmem:[#allocation2 + $0x50] sm:$0xff] %v1897
        %1930 = vst [vmem:[#allocation2 + $0x58] sm:$0xff] %v1898
        %1931 = vst [vmem:[#allocation2 + $0x60] sm:$0xff] %v1899
        %1932 = vst [vmem:[#allocation2 + $0x68] sm:$0xff] %v1900
        %1933 = vst [vmem:[#allocation2 + $0x70] sm:$0xff] %v1901
        %1934 = vst [vmem:[#allocation2 + $0x78] sm:$0xff] %v1902
        %1935 = vst [vmem:[#allocation2 + $0x80] sm:$0xff] %v1903
        %1936 = vst [vmem:[#allocation2 + $0x88] sm:$0xff] %v1904
        %1937 = vst [vmem:[#allocation2 + $0x90] sm:$0xff] %v1905
        %1938 = vst [vmem:[#allocation2 + $0x98] sm:$0xff] %v1906
        %1939 = vst [vmem:[#allocation2 + $0xa0] sm:$0xff] %v1907
        %1940 = vst [vmem:[#allocation2 + $0xa8] sm:$0xff] %v1908
        %1941 = vst [vmem:[#allocation2 + $0xb0] sm:$0xff] %v1909
        %1942 = vst [vmem:[#allocation2 + $0xb8] sm:$0xff] %v1910
        %1943 = vst [vmem:[#allocation2 + $0xc0] sm:$0xff] %v1911
        %1944 = vst [vmem:[#allocation2 + $0xc8] sm:$0xff] %v1912
        %1945 = vst [vmem:[#allocation2 + $0xd0] sm:$0xff] %v1913
        %1946 = vst [vmem:[#allocation2 + $0xd8] sm:$0xff] %v1914
        %1947 = vst [vmem:[#allocation2 + $0xe0] sm:$0xff] %v1915
        %1948 = vst [vmem:[#allocation2 + $0xe8] sm:$0xff] %v1916
        %1949 = vst [vmem:[#allocation2 + $0xf0] sm:$0xff] %v1917
        %1950 = vst [vmem:[#allocation2 + $0xf8] sm:$0x7f] %v1918
        %s1951 = scalar_lea.vmem %s1, 12
        %v1952 = vld [vmem:[%s1951] sm:$0x3]
        %v1953 = vld [vmem:[#allocation2] sm:$0xff]
        %v1954 = vld [vmem:[#allocation2 + $0x8] sm:$0xff]
        %v1955 = vld [vmem:[#allocation2 + $0x10] sm:$0xff]
        %v1956 = vld [vmem:[#allocation2 + $0x18] sm:$0xff]
        %v1957 = vld [vmem:[#allocation2 + $0x20] sm:$0xff]
        %v1958 = vld [vmem:[#allocation2 + $0x28] sm:$0xff]
        %v1959 = vld [vmem:[#allocation2 + $0x30] sm:$0xff]
        %v1960 = vld [vmem:[#allocation2 + $0x38] sm:$0xff]
        %v1961 = vld [vmem:[#allocation2 + $0x40] sm:$0xff]
        %v1962 = vld [vmem:[#allocation2 + $0x48] sm:$0xff]
        %v1963 = vld [vmem:[#allocation2 + $0x50] sm:$0xff]
        %v1964 = vld [vmem:[#allocation2 + $0x58] sm:$0xff]
        %v1965 = vld [vmem:[#allocation2 + $0x60] sm:$0xff]
        %v1966 = vld [vmem:[#allocation2 + $0x68] sm:$0xff]
        %v1967 = vld [vmem:[#allocation2 + $0x70] sm:$0xff]
        %v1968 = vld [vmem:[#allocation2 + $0x78] sm:$0xff]
        %v1969 = vld [vmem:[#allocation2 + $0x80] sm:$0xff]
        %v1970 = vld [vmem:[#allocation2 + $0x88] sm:$0xff]
        %v1971 = vld [vmem:[#allocation2 + $0x90] sm:$0xff]
        %v1972 = vld [vmem:[#allocation2 + $0x98] sm:$0xff]
        %v1973 = vld [vmem:[#allocation2 + $0xa0] sm:$0xff]
        %v1974 = vld [vmem:[#allocation2 + $0xa8] sm:$0xff]
        %v1975 = vld [vmem:[#allocation2 + $0xb0] sm:$0xff]
        %v1976 = vld [vmem:[#allocation2 + $0xb8] sm:$0xff]
        %v1977 = vld [vmem:[#allocation2 + $0xc0] sm:$0xff]
        %v1978 = vld [vmem:[#allocation2 + $0xc8] sm:$0xff]
        %v1979 = vld [vmem:[#allocation2 + $0xd0] sm:$0xff]
        %v1980 = vld [vmem:[#allocation2 + $0xd8] sm:$0xff]
        %v1981 = vld [vmem:[#allocation2 + $0xe0] sm:$0xff]
        %v1982 = vld [vmem:[#allocation2 + $0xe8] sm:$0xff]
        %v1983 = vld [vmem:[#allocation2 + $0xf0] sm:$0x1]
        %v1984 = vpack.c.b16 %v673, %v672
        %v1985 = vpack.c.b16 %v675, %v674
        %v1986 = vpack.c.b16 %v677, %v676
        %v1987 = vpack.c.b16 %v679, %v678
        %v1988 = vpack.c.b16 %v681, %v680
        %v1989 = vpack.c.b16 %v683, %v682
        %v1990 = vpack.c.b16 %v685, %v684
        %v1991 = vpack.c.b16 %v687, %v686
        %v1992 = vpack.c.b16 %v689, %v688
        %v1993 = vpack.c.b16 %v691, %v690
        %v1994 = vpack.c.b16 %v693, %v692
        %v1995 = vpack.c.b16 %v695, %v694
        %v1996 = vpack.c.b16 %v697, %v696
        %v1997 = vpack.c.b16 %v699, %v698
        %v1998 = vpack.c.b16 %v1435, %v700
        %v1999 = vpack.c.b16 %v1436, %v1436
        %vm2000 = vsmask.f32 4352
        %v2002 = vshrl.u32 %v1984, 16
        %v2004 = vrot.slane %v2002, 3
        %v2005 = vshll.u32 %v1984, 16
        %v2007 = vrot.slane %v2005, 4
        %v2008 = vor.u32 %v2004, %v2007
        %v2010 = vshrl.u32 %v1985, 16
        %v2012 = vrot.slane %v2010, 3
        %v2013 = vshll.u32 %v1985, 16
        %v2015 = vrot.slane %v2013, 4
        %v2016 = vor.u32 %v2012, %v2015
        %v2017 = vsel %vm2000, %v2008, %v2016
        %v2019 = vshrl.u32 %v1986, 16
        %v2021 = vrot.slane %v2019, 3
        %v2022 = vshll.u32 %v1986, 16
        %v2024 = vrot.slane %v2022, 4
        %v2025 = vor.u32 %v2021, %v2024
        %v2026 = vsel %vm2000, %v2016, %v2025
        %v2028 = vshrl.u32 %v1987, 16
        %v2030 = vrot.slane %v2028, 3
        %v2031 = vshll.u32 %v1987, 16
        %v2033 = vrot.slane %v2031, 4
        %v2034 = vor.u32 %v2030, %v2033
        %v2035 = vsel %vm2000, %v2025, %v2034
        %v2037 = vshrl.u32 %v1988, 16
        %v2039 = vrot.slane %v2037, 3
        %v2040 = vshll.u32 %v1988, 16
        %v2042 = vrot.slane %v2040, 4
        %v2043 = vor.u32 %v2039, %v2042
        %v2044 = vsel %vm2000, %v2034, %v2043
        %v2046 = vshrl.u32 %v1989, 16
        %v2048 = vrot.slane %v2046, 3
        %v2049 = vshll.u32 %v1989, 16
        %v2051 = vrot.slane %v2049, 4
        %v2052 = vor.u32 %v2048, %v2051
        %v2053 = vsel %vm2000, %v2043, %v2052
        %v2055 = vshrl.u32 %v1990, 16
        %v2057 = vrot.slane %v2055, 3
        %v2058 = vshll.u32 %v1990, 16
        %v2060 = vrot.slane %v2058, 4
        %v2061 = vor.u32 %v2057, %v2060
        %v2062 = vsel %vm2000, %v2052, %v2061
        %v2064 = vshrl.u32 %v1991, 16
        %v2066 = vrot.slane %v2064, 3
        %v2067 = vshll.u32 %v1991, 16
        %v2069 = vrot.slane %v2067, 4
        %v2070 = vor.u32 %v2066, %v2069
        %v2071 = vsel %vm2000, %v2061, %v2070
        %v2073 = vshrl.u32 %v1992, 16
        %v2075 = vrot.slane %v2073, 3
        %v2076 = vshll.u32 %v1992, 16
        %v2078 = vrot.slane %v2076, 4
        %v2079 = vor.u32 %v2075, %v2078
        %v2080 = vsel %vm2000, %v2070, %v2079
        %v2082 = vshrl.u32 %v1993, 16
        %v2084 = vrot.slane %v2082, 3
        %v2085 = vshll.u32 %v1993, 16
        %v2087 = vrot.slane %v2085, 4
        %v2088 = vor.u32 %v2084, %v2087
        %v2089 = vsel %vm2000, %v2079, %v2088
        %v2091 = vshrl.u32 %v1994, 16
        %v2093 = vrot.slane %v2091, 3
        %v2094 = vshll.u32 %v1994, 16
        %v2096 = vrot.slane %v2094, 4
        %v2097 = vor.u32 %v2093, %v2096
        %v2098 = vsel %vm2000, %v2088, %v2097
        %v2100 = vshrl.u32 %v1995, 16
        %v2102 = vrot.slane %v2100, 3
        %v2103 = vshll.u32 %v1995, 16
        %v2105 = vrot.slane %v2103, 4
        %v2106 = vor.u32 %v2102, %v2105
        %v2107 = vsel %vm2000, %v2097, %v2106
        %v2109 = vshrl.u32 %v1996, 16
        %v2111 = vrot.slane %v2109, 3
        %v2112 = vshll.u32 %v1996, 16
        %v2114 = vrot.slane %v2112, 4
        %v2115 = vor.u32 %v2111, %v2114
        %v2116 = vsel %vm2000, %v2106, %v2115
        %v2118 = vshrl.u32 %v1997, 16
        %v2120 = vrot.slane %v2118, 3
        %v2121 = vshll.u32 %v1997, 16
        %v2123 = vrot.slane %v2121, 4
        %v2124 = vor.u32 %v2120, %v2123
        %v2125 = vsel %vm2000, %v2115, %v2124
        %v2127 = vshrl.u32 %v1998, 16
        %v2129 = vrot.slane %v2127, 3
        %v2130 = vshll.u32 %v1998, 16
        %v2132 = vrot.slane %v2130, 4
        %v2133 = vor.u32 %v2129, %v2132
        %v2134 = vsel %vm2000, %v2124, %v2133
        %v2136 = vshrl.u32 %v1999, 16
        %v2138 = vrot.slane %v2136, 3
        %v2139 = vshll.u32 %v1999, 16
        %v2141 = vrot.slane %v2139, 4
        %v2142 = vor.u32 %v2138, %v2141
        %v2143 = vsel %vm2000, %v2133, %v2142
        %v2145 = vsel %vm436, %v2017, 0
        %v2148 = vsel %vm436, %v2026, 0
        %v2151 = vsel %vm436, %v2035, 0
        %v2154 = vsel %vm436, %v2044, 0
        %v2157 = vsel %vm436, %v2053, 0
        %v2160 = vsel %vm436, %v2062, 0
        %v2163 = vsel %vm436, %v2071, 0
        %v2166 = vsel %vm436, %v2080, 0
        %v2169 = vsel %vm436, %v2089, 0
        %v2172 = vsel %vm436, %v2098, 0
        %v2175 = vsel %vm436, %v2107, 0
        %v2178 = vsel %vm436, %v2116, 0
        %v2181 = vsel %vm436, %v2125, 0
        %v2184 = vsel %vm436, %v2134, 0
        %v2187 = vsel %vm436, %v2143, 0
        %v2190 = vsel %vm436, %v2138, 0
        %v2193 = vsel %vm485, %v1952, 0
        %2195 = vmatpush.bf16.msra.mxu0 0
        %2196 = vmatpush.bf16.msra.mxu0 0
        %2197 = vmatpush.bf16.msra.mxu0 0
        %2198 = vmatpush.bf16.msra.mxu0 0
        %2199 = vmatpush.bf16.msra.mxu0 0
        %2200 = vmatpush.bf16.msra.mxu0 0
        %2201 = vmatpush.bf16.msra.mxu0 0
        %2202 = vmatpush.bf16.msra.mxu0 %v2193
        %2203 = vmatmul.bf16.gmra.mxu0 %v2145
        %v2204 = vpop.f32.mrf.mxu0
        %v2205 = vadd.f32 0.0, %v2204
        %v2206 = vpop.f32.mrf.mxu0
        %v2207 = vadd.f32 0.0, %v2206
        %2208 = vmatmul.bf16.gmra.mxu0 %v2148
        %v2209 = vpop.f32.mrf.mxu0
        %v2210 = vadd.f32 0.0, %v2209
        %v2211 = vpop.f32.mrf.mxu0
        %v2212 = vadd.f32 0.0, %v2211
        %2213 = vmatmul.bf16.gmra.mxu0 %v2151
        %v2214 = vpop.f32.mrf.mxu0
        %v2215 = vadd.f32 0.0, %v2214
        %v2216 = vpop.f32.mrf.mxu0
        %v2217 = vadd.f32 0.0, %v2216
        %2218 = vmatmul.bf16.gmra.mxu0 %v2154
        %v2219 = vpop.f32.mrf.mxu0
        %v2220 = vadd.f32 0.0, %v2219
        %v2221 = vpop.f32.mrf.mxu0
        %v2222 = vadd.f32 0.0, %v2221
        %2223 = vmatmul.bf16.gmra.mxu0 %v2157
        %v2224 = vpop.f32.mrf.mxu0
        %v2225 = vadd.f32 0.0, %v2224
        %v2226 = vpop.f32.mrf.mxu0
        %v2227 = vadd.f32 0.0, %v2226
        %2228 = vmatmul.bf16.gmra.mxu0 %v2160
        %v2229 = vpop.f32.mrf.mxu0
        %v2230 = vadd.f32 0.0, %v2229
        %v2231 = vpop.f32.mrf.mxu0
        %v2232 = vadd.f32 0.0, %v2231
        %2233 = vmatmul.bf16.gmra.mxu0 %v2163
        %v2234 = vpop.f32.mrf.mxu0
        %v2235 = vadd.f32 0.0, %v2234
        %v2236 = vpop.f32.mrf.mxu0
        %v2237 = vadd.f32 0.0, %v2236
        %2238 = vmatmul.bf16.gmra.mxu0 %v2166
        %v2239 = vpop.f32.mrf.mxu0
        %v2240 = vadd.f32 0.0, %v2239
        %v2241 = vpop.f32.mrf.mxu0
        %v2242 = vadd.f32 0.0, %v2241
        %2243 = vmatmul.bf16.gmra.mxu0 %v2169
        %v2244 = vpop.f32.mrf.mxu0
        %v2245 = vadd.f32 0.0, %v2244
        %v2246 = vpop.f32.mrf.mxu0
        %v2247 = vadd.f32 0.0, %v2246
        %2248 = vmatmul.bf16.gmra.mxu0 %v2172
        %v2249 = vpop.f32.mrf.mxu0
        %v2250 = vadd.f32 0.0, %v2249
        %v2251 = vpop.f32.mrf.mxu0
        %v2252 = vadd.f32 0.0, %v2251
        %2253 = vmatmul.bf16.gmra.mxu0 %v2175
        %v2254 = vpop.f32.mrf.mxu0
        %v2255 = vadd.f32 0.0, %v2254
        %v2256 = vpop.f32.mrf.mxu0
        %v2257 = vadd.f32 0.0, %v2256
        %2258 = vmatmul.bf16.gmra.mxu0 %v2178
        %v2259 = vpop.f32.mrf.mxu0
        %v2260 = vadd.f32 0.0, %v2259
        %v2261 = vpop.f32.mrf.mxu0
        %v2262 = vadd.f32 0.0, %v2261
        %2263 = vmatmul.bf16.gmra.mxu0 %v2181
        %v2264 = vpop.f32.mrf.mxu0
        %v2265 = vadd.f32 0.0, %v2264
        %v2266 = vpop.f32.mrf.mxu0
        %v2267 = vadd.f32 0.0, %v2266
        %2268 = vmatmul.bf16.gmra.mxu0 %v2184
        %v2269 = vpop.f32.mrf.mxu0
        %v2270 = vadd.f32 0.0, %v2269
        %v2271 = vpop.f32.mrf.mxu0
        %v2272 = vadd.f32 0.0, %v2271
        %2273 = vmatmul.bf16.gmra.mxu0 %v2187
        %v2274 = vpop.f32.mrf.mxu0
        %v2275 = vadd.f32 0.0, %v2274
        %v2276 = vpop.f32.mrf.mxu0
        %v2277 = vadd.f32 0.0, %v2276
        %2278 = vmatmul.bf16.gmra.mxu0 %v2190
        %v2279 = vpop.f32.mrf.mxu0
        %v2280 = vadd.f32 0.0, %v2279
        %v2281 = vpop.f32.mrf.mxu0
        %2282 = vdwg.mxu0
        %v2283 = vadd.f32 %v1953, %v2205
        %v2284 = vadd.f32 %v1954, %v2207
        %v2285 = vadd.f32 %v1955, %v2210
        %v2286 = vadd.f32 %v1956, %v2212
        %v2287 = vadd.f32 %v1957, %v2215
        %v2288 = vadd.f32 %v1958, %v2217
        %v2289 = vadd.f32 %v1959, %v2220
        %v2290 = vadd.f32 %v1960, %v2222
        %v2291 = vadd.f32 %v1961, %v2225
        %v2292 = vadd.f32 %v1962, %v2227
        %v2293 = vadd.f32 %v1963, %v2230
        %v2294 = vadd.f32 %v1964, %v2232
        %v2295 = vadd.f32 %v1965, %v2235
        %v2296 = vadd.f32 %v1966, %v2237
        %v2297 = vadd.f32 %v1967, %v2240
        %v2298 = vadd.f32 %v1968, %v2242
        %v2299 = vadd.f32 %v1969, %v2245
        %v2300 = vadd.f32 %v1970, %v2247
        %v2301 = vadd.f32 %v1971, %v2250
        %v2302 = vadd.f32 %v1972, %v2252
        %v2303 = vadd.f32 %v1973, %v2255
        %v2304 = vadd.f32 %v1974, %v2257
        %v2305 = vadd.f32 %v1975, %v2260
        %v2306 = vadd.f32 %v1976, %v2262
        %v2307 = vadd.f32 %v1977, %v2265
        %v2308 = vadd.f32 %v1978, %v2267
        %v2309 = vadd.f32 %v1979, %v2270
        %v2310 = vadd.f32 %v1980, %v2272
        %v2311 = vadd.f32 %v1981, %v2275
        %v2312 = vadd.f32 %v1982, %v2277
        %v2313 = vadd.f32 %v1983, %v2280
        %2314 = vst [vmem:[#allocation2] sm:$0xff] %v2283
        %2315 = vst [vmem:[#allocation2 + $0x8] sm:$0xff] %v2284
        %2316 = vst [vmem:[#allocation2 + $0x10] sm:$0xff] %v2285
        %2317 = vst [vmem:[#allocation2 + $0x18] sm:$0xff] %v2286
        %2318 = vst [vmem:[#allocation2 + $0x20] sm:$0xff] %v2287
        %2319 = vst [vmem:[#allocation2 + $0x28] sm:$0xff] %v2288
        %2320 = vst [vmem:[#allocation2 + $0x30] sm:$0xff] %v2289
        %2321 = vst [vmem:[#allocation2 + $0x38] sm:$0xff] %v2290
        %2322 = vst [vmem:[#allocation2 + $0x40] sm:$0xff] %v2291
        %2323 = vst [vmem:[#allocation2 + $0x48] sm:$0xff] %v2292
        %2324 = vst [vmem:[#allocation2 + $0x50] sm:$0xff] %v2293
        %2325 = vst [vmem:[#allocation2 + $0x58] sm:$0xff] %v2294
        %2326 = vst [vmem:[#allocation2 + $0x60] sm:$0xff] %v2295
        %2327 = vst [vmem:[#allocation2 + $0x68] sm:$0xff] %v2296
        %2328 = vst [vmem:[#allocation2 + $0x70] sm:$0xff] %v2297
        %2329 = vst [vmem:[#allocation2 + $0x78] sm:$0xff] %v2298
        %2330 = vst [vmem:[#allocation2 + $0x80] sm:$0xff] %v2299
        %2331 = vst [vmem:[#allocation2 + $0x88] sm:$0xff] %v2300
        %2332 = vst [vmem:[#allocation2 + $0x90] sm:$0xff] %v2301
        %2333 = vst [vmem:[#allocation2 + $0x98] sm:$0xff] %v2302
        %2334 = vst [vmem:[#allocation2 + $0xa0] sm:$0xff] %v2303
        %2335 = vst [vmem:[#allocation2 + $0xa8] sm:$0xff] %v2304
        %2336 = vst [vmem:[#allocation2 + $0xb0] sm:$0xff] %v2305
        %2337 = vst [vmem:[#allocation2 + $0xb8] sm:$0xff] %v2306
        %2338 = vst [vmem:[#allocation2 + $0xc0] sm:$0xff] %v2307
        %2339 = vst [vmem:[#allocation2 + $0xc8] sm:$0xff] %v2308
        %2340 = vst [vmem:[#allocation2 + $0xd0] sm:$0xff] %v2309
        %2341 = vst [vmem:[#allocation2 + $0xd8] sm:$0xff] %v2310
        %2342 = vst [vmem:[#allocation2 + $0xe0] sm:$0xff] %v2311
        %2343 = vst [vmem:[#allocation2 + $0xe8] sm:$0xff] %v2312
        %2344 = vst [vmem:[#allocation2 + $0xf0] sm:$0x1] %v2313
        %s2345 = scalar_lea.vmem %s1, 14
        %v2346 = vld [vmem:[%s2345] sm:$0x3]
        %v2347 = vld [vmem:[#allocation2] sm:$0xff]
        %v2348 = vld [vmem:[#allocation2 + $0x8] sm:$0xff]
        %v2349 = vld [vmem:[#allocation2 + $0x10] sm:$0xff]
        %v2350 = vld [vmem:[#allocation2 + $0x18] sm:$0xff]
        %v2351 = vld [vmem:[#allocation2 + $0x20] sm:$0xff]
        %v2352 = vld [vmem:[#allocation2 + $0x28] sm:$0xff]
        %v2353 = vld [vmem:[#allocation2 + $0x30] sm:$0xff]
        %v2354 = vld [vmem:[#allocation2 + $0x38] sm:$0xff]
        %v2355 = vld [vmem:[#allocation2 + $0x40] sm:$0xff]
        %v2356 = vld [vmem:[#allocation2 + $0x48] sm:$0xff]
        %v2357 = vld [vmem:[#allocation2 + $0x50] sm:$0xff]
        %v2358 = vld [vmem:[#allocation2 + $0x58] sm:$0xff]
        %v2359 = vld [vmem:[#allocation2 + $0x60] sm:$0xff]
        %v2360 = vld [vmem:[#allocation2 + $0x68] sm:$0xff]
        %v2361 = vld [vmem:[#allocation2 + $0x70] sm:$0xff]
        %v2362 = vld [vmem:[#allocation2 + $0x78] sm:$0xff]
        %v2363 = vld [vmem:[#allocation2 + $0x80] sm:$0xff]
        %v2364 = vld [vmem:[#allocation2 + $0x88] sm:$0xff]
        %v2365 = vld [vmem:[#allocation2 + $0x90] sm:$0xff]
        %v2366 = vld [vmem:[#allocation2 + $0x98] sm:$0xff]
        %v2367 = vld [vmem:[#allocation2 + $0xa0] sm:$0xff]
        %v2368 = vld [vmem:[#allocation2 + $0xa8] sm:$0xff]
        %v2369 = vld [vmem:[#allocation2 + $0xb0] sm:$0xff]
        %v2370 = vld [vmem:[#allocation2 + $0xb8] sm:$0xff]
        %v2371 = vld [vmem:[#allocation2 + $0xc0] sm:$0xff]
        %v2372 = vld [vmem:[#allocation2 + $0xc8] sm:$0xff]
        %v2373 = vld [vmem:[#allocation2 + $0xd0] sm:$0xff]
        %v2374 = vld [vmem:[#allocation2 + $0xd8] sm:$0xff]
        %v2375 = vld [vmem:[#allocation2 + $0xe0] sm:$0xff]
        %v2376 = vld [vmem:[#allocation2 + $0xe8] sm:$0xff]
        %v2378 = vsel %vm485, %v2346, 0
        %2380 = vmatpush.bf16.msra.mxu0 0
        %2381 = vmatpush.bf16.msra.mxu0 0
        %2382 = vmatpush.bf16.msra.mxu0 0
        %2383 = vmatpush.bf16.msra.mxu0 0
        %2384 = vmatpush.bf16.msra.mxu0 0
        %2385 = vmatpush.bf16.msra.mxu0 0
        %2386 = vmatpush.bf16.msra.mxu0 0
        %2387 = vmatpush.bf16.msra.mxu0 %v2378
        %2388 = vmatmul.bf16.gmra.mxu0 %v441
        %v2389 = vpop.f32.mrf.mxu0
        %v2390 = vadd.f32 0.0, %v2389
        %v2391 = vpop.f32.mrf.mxu0
        %v2392 = vadd.f32 0.0, %v2391
        %2393 = vmatmul.bf16.gmra.mxu0 %v444
        %v2394 = vpop.f32.mrf.mxu0
        %v2395 = vadd.f32 0.0, %v2394
        %v2396 = vpop.f32.mrf.mxu0
        %v2397 = vadd.f32 0.0, %v2396
        %2398 = vmatmul.bf16.gmra.mxu0 %v447
        %v2399 = vpop.f32.mrf.mxu0
        %v2400 = vadd.f32 0.0, %v2399
        %v2401 = vpop.f32.mrf.mxu0
        %v2402 = vadd.f32 0.0, %v2401
        %2403 = vmatmul.bf16.gmra.mxu0 %v450
        %v2404 = vpop.f32.mrf.mxu0
        %v2405 = vadd.f32 0.0, %v2404
        %v2406 = vpop.f32.mrf.mxu0
        %v2407 = vadd.f32 0.0, %v2406
        %2408 = vmatmul.bf16.gmra.mxu0 %v453
        %v2409 = vpop.f32.mrf.mxu0
        %v2410 = vadd.f32 0.0, %v2409
        %v2411 = vpop.f32.mrf.mxu0
        %v2412 = vadd.f32 0.0, %v2411
        %2413 = vmatmul.bf16.gmra.mxu0 %v456
        %v2414 = vpop.f32.mrf.mxu0
        %v2415 = vadd.f32 0.0, %v2414
        %v2416 = vpop.f32.mrf.mxu0
        %v2417 = vadd.f32 0.0, %v2416
        %2418 = vmatmul.bf16.gmra.mxu0 %v459
        %v2419 = vpop.f32.mrf.mxu0
        %v2420 = vadd.f32 0.0, %v2419
        %v2421 = vpop.f32.mrf.mxu0
        %v2422 = vadd.f32 0.0, %v2421
        %2423 = vmatmul.bf16.gmra.mxu0 %v462
        %v2424 = vpop.f32.mrf.mxu0
        %v2425 = vadd.f32 0.0, %v2424
        %v2426 = vpop.f32.mrf.mxu0
        %v2427 = vadd.f32 0.0, %v2426
        %2428 = vmatmul.bf16.gmra.mxu0 %v465
        %v2429 = vpop.f32.mrf.mxu0
        %v2430 = vadd.f32 0.0, %v2429
        %v2431 = vpop.f32.mrf.mxu0
        %v2432 = vadd.f32 0.0, %v2431
        %2433 = vmatmul.bf16.gmra.mxu0 %v468
        %v2434 = vpop.f32.mrf.mxu0
        %v2435 = vadd.f32 0.0, %v2434
        %v2436 = vpop.f32.mrf.mxu0
        %v2437 = vadd.f32 0.0, %v2436
        %2438 = vmatmul.bf16.gmra.mxu0 %v471
        %v2439 = vpop.f32.mrf.mxu0
        %v2440 = vadd.f32 0.0, %v2439
        %v2441 = vpop.f32.mrf.mxu0
        %v2442 = vadd.f32 0.0, %v2441
        %2443 = vmatmul.bf16.gmra.mxu0 %v474
        %v2444 = vpop.f32.mrf.mxu0
        %v2445 = vadd.f32 0.0, %v2444
        %v2446 = vpop.f32.mrf.mxu0
        %v2447 = vadd.f32 0.0, %v2446
        %2448 = vmatmul.bf16.gmra.mxu0 %v477
        %v2449 = vpop.f32.mrf.mxu0
        %v2450 = vadd.f32 0.0, %v2449
        %v2451 = vpop.f32.mrf.mxu0
        %v2452 = vadd.f32 0.0, %v2451
        %2453 = vmatmul.bf16.gmra.mxu0 %v480
        %v2454 = vpop.f32.mrf.mxu0
        %v2455 = vadd.f32 0.0, %v2454
        %v2456 = vpop.f32.mrf.mxu0
        %v2457 = vadd.f32 0.0, %v2456
        %2458 = vmatmul.bf16.gmra.mxu0 %v483
        %v2459 = vpop.f32.mrf.mxu0
        %v2460 = vadd.f32 0.0, %v2459
        %v2461 = vpop.f32.mrf.mxu0
        %v2462 = vadd.f32 0.0, %v2461
        %2463 = vdwg.mxu0
        %v2464 = vadd.f32 %v2347, %v2390
        %v2465 = vadd.f32 %v2348, %v2392
        %v2466 = vadd.f32 %v2349, %v2395
        %v2467 = vadd.f32 %v2350, %v2397
        %v2468 = vadd.f32 %v2351, %v2400
        %v2469 = vadd.f32 %v2352, %v2402
        %v2470 = vadd.f32 %v2353, %v2405
        %v2471 = vadd.f32 %v2354, %v2407
        %v2472 = vadd.f32 %v2355, %v2410
        %v2473 = vadd.f32 %v2356, %v2412
        %v2474 = vadd.f32 %v2357, %v2415
        %v2475 = vadd.f32 %v2358, %v2417
        %v2476 = vadd.f32 %v2359, %v2420
        %v2477 = vadd.f32 %v2360, %v2422
        %v2478 = vadd.f32 %v2361, %v2425
        %v2479 = vadd.f32 %v2362, %v2427
        %v2480 = vadd.f32 %v2363, %v2430
        %v2481 = vadd.f32 %v2364, %v2432
        %v2482 = vadd.f32 %v2365, %v2435
        %v2483 = vadd.f32 %v2366, %v2437
        %v2484 = vadd.f32 %v2367, %v2440
        %v2485 = vadd.f32 %v2368, %v2442
        %v2486 = vadd.f32 %v2369, %v2445
        %v2487 = vadd.f32 %v2370, %v2447
        %v2488 = vadd.f32 %v2371, %v2450
        %v2489 = vadd.f32 %v2372, %v2452
        %v2490 = vadd.f32 %v2373, %v2455
        %v2491 = vadd.f32 %v2374, %v2457
        %v2492 = vadd.f32 %v2375, %v2460
        %v2493 = vadd.f32 %v2376, %v2462
        %2494 = vst [vmem:[#allocation2] sm:$0xff] %v2464
        %2495 = vst [vmem:[#allocation2 + $0x8] sm:$0xff] %v2465
        %2496 = vst [vmem:[#allocation2 + $0x10] sm:$0xff] %v2466
        %2497 = vst [vmem:[#allocation2 + $0x18] sm:$0xff] %v2467
        %2498 = vst [vmem:[#allocation2 + $0x20] sm:$0xff] %v2468
        %2499 = vst [vmem:[#allocation2 + $0x28] sm:$0xff] %v2469
        %2500 = vst [vmem:[#allocation2 + $0x30] sm:$0xff] %v2470
        %2501 = vst [vmem:[#allocation2 + $0x38] sm:$0xff] %v2471
        %2502 = vst [vmem:[#allocation2 + $0x40] sm:$0xff] %v2472
        %2503 = vst [vmem:[#allocation2 + $0x48] sm:$0xff] %v2473
        %2504 = vst [vmem:[#allocation2 + $0x50] sm:$0xff] %v2474
        %2505 = vst [vmem:[#allocation2 + $0x58] sm:$0xff] %v2475
        %2506 = vst [vmem:[#allocation2 + $0x60] sm:$0xff] %v2476
        %2507 = vst [vmem:[#allocation2 + $0x68] sm:$0xff] %v2477
        %2508 = vst [vmem:[#allocation2 + $0x70] sm:$0xff] %v2478
        %2509 = vst [vmem:[#allocation2 + $0x78] sm:$0xff] %v2479
        %2510 = vst [vmem:[#allocation2 + $0x80] sm:$0xff] %v2480
        %2511 = vst [vmem:[#allocation2 + $0x88] sm:$0xff] %v2481
        %2512 = vst [vmem:[#allocation2 + $0x90] sm:$0xff] %v2482
        %2513 = vst [vmem:[#allocation2 + $0x98] sm:$0xff] %v2483
        %2514 = vst [vmem:[#allocation2 + $0xa0] sm:$0xff] %v2484
        %2515 = vst [vmem:[#allocation2 + $0xa8] sm:$0xff] %v2485
        %2516 = vst [vmem:[#allocation2 + $0xb0] sm:$0xff] %v2486
        %2517 = vst [vmem:[#allocation2 + $0xb8] sm:$0xff] %v2487
        %2518 = vst [vmem:[#allocation2 + $0xc0] sm:$0xff] %v2488
        %2519 = vst [vmem:[#allocation2 + $0xc8] sm:$0xff] %v2489
        %2520 = vst [vmem:[#allocation2 + $0xd0] sm:$0xff] %v2490
        %2521 = vst [vmem:[#allocation2 + $0xd8] sm:$0xff] %v2491
        %2522 = vst [vmem:[#allocation2 + $0xe0] sm:$0xff] %v2492
        %2523 = vst [vmem:[#allocation2 + $0xe8] sm:$0xff] %v2493
        %s2524 = scalar_lea.vmem %s1, 16
        %v2525 = vld [vmem:[%s2524] sm:$0x3]
        %v2526 = vld [vmem:[#allocation2] sm:$0xff]
        %v2527 = vld [vmem:[#allocation2 + $0x8] sm:$0xff]
        %v2528 = vld [vmem:[#allocation2 + $0x10] sm:$0xff]
        %v2529 = vld [vmem:[#allocation2 + $0x18] sm:$0xff]
        %v2530 = vld [vmem:[#allocation2 + $0x20] sm:$0xff]
        %v2531 = vld [vmem:[#allocation2 + $0x28] sm:$0xff]
        %v2532 = vld [vmem:[#allocation2 + $0x30] sm:$0xff]
        %v2533 = vld [vmem:[#allocation2 + $0x38] sm:$0xff]
        %v2534 = vld [vmem:[#allocation2 + $0x40] sm:$0xff]
        %v2535 = vld [vmem:[#allocation2 + $0x48] sm:$0xff]
        %v2536 = vld [vmem:[#allocation2 + $0x50] sm:$0xff]
        %v2537 = vld [vmem:[#allocation2 + $0x58] sm:$0xff]
        %v2538 = vld [vmem:[#allocation2 + $0x60] sm:$0xff]
        %v2539 = vld [vmem:[#allocation2 + $0x68] sm:$0xff]
        %v2540 = vld [vmem:[#allocation2 + $0x70] sm:$0xff]
        %v2541 = vld [vmem:[#allocation2 + $0x78] sm:$0xff]
        %v2542 = vld [vmem:[#allocation2 + $0x80] sm:$0xff]
        %v2543 = vld [vmem:[#allocation2 + $0x88] sm:$0xff]
        %v2544 = vld [vmem:[#allocation2 + $0x90] sm:$0xff]
        %v2545 = vld [vmem:[#allocation2 + $0x98] sm:$0xff]
        %v2546 = vld [vmem:[#allocation2 + $0xa0] sm:$0xff]
        %v2547 = vld [vmem:[#allocation2 + $0xa8] sm:$0xff]
        %v2548 = vld [vmem:[#allocation2 + $0xb0] sm:$0xff]
        %v2549 = vld [vmem:[#allocation2 + $0xb8] sm:$0xff]
        %v2550 = vld [vmem:[#allocation2 + $0xc0] sm:$0xff]
        %v2551 = vld [vmem:[#allocation2 + $0xc8] sm:$0xff]
        %v2552 = vld [vmem:[#allocation2 + $0xd0] sm:$0xff]
        %v2553 = vld [vmem:[#allocation2 + $0xd8] sm:$0xff]
        %v2554 = vld [vmem:[#allocation2 + $0xe0] sm:$0xff]
        %v2555 = vld [vmem:[#allocation2 + $0xe8] sm:$0x7f]
        %v2557 = vsel %vm485, %v2525, 0
        %2559 = vmatpush.bf16.msra.mxu0 0
        %2560 = vmatpush.bf16.msra.mxu0 0
        %2561 = vmatpush.bf16.msra.mxu0 0
        %2562 = vmatpush.bf16.msra.mxu0 0
        %2563 = vmatpush.bf16.msra.mxu0 0
        %2564 = vmatpush.bf16.msra.mxu0 0
        %2565 = vmatpush.bf16.msra.mxu0 0
        %2566 = vmatpush.bf16.msra.mxu0 %v2557
        %2567 = vmatmul.bf16.gmra.mxu0 %v1751
        %v2568 = vpop.f32.mrf.mxu0
        %v2569 = vadd.f32 0.0, %v2568
        %v2570 = vpop.f32.mrf.mxu0
        %v2571 = vadd.f32 0.0, %v2570
        %2572 = vmatmul.bf16.gmra.mxu0 %v1754
        %v2573 = vpop.f32.mrf.mxu0
        %v2574 = vadd.f32 0.0, %v2573
        %v2575 = vpop.f32.mrf.mxu0
        %v2576 = vadd.f32 0.0, %v2575
        %2577 = vmatmul.bf16.gmra.mxu0 %v1757
        %v2578 = vpop.f32.mrf.mxu0
        %v2579 = vadd.f32 0.0, %v2578
        %v2580 = vpop.f32.mrf.mxu0
        %v2581 = vadd.f32 0.0, %v2580
        %2582 = vmatmul.bf16.gmra.mxu0 %v1760
        %v2583 = vpop.f32.mrf.mxu0
        %v2584 = vadd.f32 0.0, %v2583
        %v2585 = vpop.f32.mrf.mxu0
        %v2586 = vadd.f32 0.0, %v2585
        %2587 = vmatmul.bf16.gmra.mxu0 %v1763
        %v2588 = vpop.f32.mrf.mxu0
        %v2589 = vadd.f32 0.0, %v2588
        %v2590 = vpop.f32.mrf.mxu0
        %v2591 = vadd.f32 0.0, %v2590
        %2592 = vmatmul.bf16.gmra.mxu0 %v1766
        %v2593 = vpop.f32.mrf.mxu0
        %v2594 = vadd.f32 0.0, %v2593
        %v2595 = vpop.f32.mrf.mxu0
        %v2596 = vadd.f32 0.0, %v2595
        %2597 = vmatmul.bf16.gmra.mxu0 %v1769
        %v2598 = vpop.f32.mrf.mxu0
        %v2599 = vadd.f32 0.0, %v2598
        %v2600 = vpop.f32.mrf.mxu0
        %v2601 = vadd.f32 0.0, %v2600
        %2602 = vmatmul.bf16.gmra.mxu0 %v1772
        %v2603 = vpop.f32.mrf.mxu0
        %v2604 = vadd.f32 0.0, %v2603
        %v2605 = vpop.f32.mrf.mxu0
        %v2606 = vadd.f32 0.0, %v2605
        %2607 = vmatmul.bf16.gmra.mxu0 %v1775
        %v2608 = vpop.f32.mrf.mxu0
        %v2609 = vadd.f32 0.0, %v2608
        %v2610 = vpop.f32.mrf.mxu0
        %v2611 = vadd.f32 0.0, %v2610
        %2612 = vmatmul.bf16.gmra.mxu0 %v1778
        %v2613 = vpop.f32.mrf.mxu0
        %v2614 = vadd.f32 0.0, %v2613
        %v2615 = vpop.f32.mrf.mxu0
        %v2616 = vadd.f32 0.0, %v2615
        %2617 = vmatmul.bf16.gmra.mxu0 %v1781
        %v2618 = vpop.f32.mrf.mxu0
        %v2619 = vadd.f32 0.0, %v2618
        %v2620 = vpop.f32.mrf.mxu0
        %v2621 = vadd.f32 0.0, %v2620
        %2622 = vmatmul.bf16.gmra.mxu0 %v1784
        %v2623 = vpop.f32.mrf.mxu0
        %v2624 = vadd.f32 0.0, %v2623
        %v2625 = vpop.f32.mrf.mxu0
        %v2626 = vadd.f32 0.0, %v2625
        %2627 = vmatmul.bf16.gmra.mxu0 %v1787
        %v2628 = vpop.f32.mrf.mxu0
        %v2629 = vadd.f32 0.0, %v2628
        %v2630 = vpop.f32.mrf.mxu0
        %v2631 = vadd.f32 0.0, %v2630
        %2632 = vmatmul.bf16.gmra.mxu0 %v1790
        %v2633 = vpop.f32.mrf.mxu0
        %v2634 = vadd.f32 0.0, %v2633
        %v2635 = vpop.f32.mrf.mxu0
        %v2636 = vadd.f32 0.0, %v2635
        %2637 = vmatmul.bf16.gmra.mxu0 %v1793
        %v2638 = vpop.f32.mrf.mxu0
        %v2639 = vadd.f32 0.0, %v2638
        %v2640 = vpop.f32.mrf.mxu0
        %v2641 = vadd.f32 0.0, %v2640
        %2642 = vdwg.mxu0
        %v2643 = vadd.f32 %v2526, %v2569
        %v2644 = vadd.f32 %v2527, %v2571
        %v2645 = vadd.f32 %v2528, %v2574
        %v2646 = vadd.f32 %v2529, %v2576
        %v2647 = vadd.f32 %v2530, %v2579
        %v2648 = vadd.f32 %v2531, %v2581
        %v2649 = vadd.f32 %v2532, %v2584
        %v2650 = vadd.f32 %v2533, %v2586
        %v2651 = vadd.f32 %v2534, %v2589
        %v2652 = vadd.f32 %v2535, %v2591
        %v2653 = vadd.f32 %v2536, %v2594
        %v2654 = vadd.f32 %v2537, %v2596
        %v2655 = vadd.f32 %v2538, %v2599
        %v2656 = vadd.f32 %v2539, %v2601
        %v2657 = vadd.f32 %v2540, %v2604
        %v2658 = vadd.f32 %v2541, %v2606
        %v2659 = vadd.f32 %v2542, %v2609
        %v2660 = vadd.f32 %v2543, %v2611
        %v2661 = vadd.f32 %v2544, %v2614
        %v2662 = vadd.f32 %v2545, %v2616
        %v2663 = vadd.f32 %v2546, %v2619
        %v2664 = vadd.f32 %v2547, %v2621
        %v2665 = vadd.f32 %v2548, %v2624
        %v2666 = vadd.f32 %v2549, %v2626
        %v2667 = vadd.f32 %v2550, %v2629
        %v2668 = vadd.f32 %v2551, %v2631
        %v2669 = vadd.f32 %v2552, %v2634
        %v2670 = vadd.f32 %v2553, %v2636
        %v2671 = vadd.f32 %v2554, %v2639
        %v2672 = vadd.f32 %v2555, %v2641
        %2673 = vst [vmem:[#allocation2] sm:$0xff] %v2643
        %2674 = vst [vmem:[#allocation2 + $0x8] sm:$0xff] %v2644
        %2675 = vst [vmem:[#allocation2 + $0x10] sm:$0xff] %v2645
        %2676 = vst [vmem:[#allocation2 + $0x18] sm:$0xff] %v2646
        %2677 = vst [vmem:[#allocation2 + $0x20] sm:$0xff] %v2647
        %2678 = vst [vmem:[#allocation2 + $0x28] sm:$0xff] %v2648
        %2679 = vst [vmem:[#allocation2 + $0x30] sm:$0xff] %v2649
        %2680 = vst [vmem:[#allocation2 + $0x38] sm:$0xff] %v2650
        %2681 = vst [vmem:[#allocation2 + $0x40] sm:$0xff] %v2651
        %2682 = vst [vmem:[#allocation2 + $0x48] sm:$0xff] %v2652
        %2683 = vst [vmem:[#allocation2 + $0x50] sm:$0xff] %v2653
        %2684 = vst [vmem:[#allocation2 + $0x58] sm:$0xff] %v2654
        %2685 = vst [vmem:[#allocation2 + $0x60] sm:$0xff] %v2655
        %2686 = vst [vmem:[#allocation2 + $0x68] sm:$0xff] %v2656
        %2687 = vst [vmem:[#allocation2 + $0x70] sm:$0xff] %v2657
        %2688 = vst [vmem:[#allocation2 + $0x78] sm:$0xff] %v2658
        %2689 = vst [vmem:[#allocation2 + $0x80] sm:$0xff] %v2659
        %2690 = vst [vmem:[#allocation2 + $0x88] sm:$0xff] %v2660
        %2691 = vst [vmem:[#allocation2 + $0x90] sm:$0xff] %v2661
        %2692 = vst [vmem:[#allocation2 + $0x98] sm:$0xff] %v2662
        %2693 = vst [vmem:[#allocation2 + $0xa0] sm:$0xff] %v2663
        %2694 = vst [vmem:[#allocation2 + $0xa8] sm:$0xff] %v2664
        %2695 = vst [vmem:[#allocation2 + $0xb0] sm:$0xff] %v2665
        %2696 = vst [vmem:[#allocation2 + $0xb8] sm:$0xff] %v2666
        %2697 = vst [vmem:[#allocation2 + $0xc0] sm:$0xff] %v2667
        %2698 = vst [vmem:[#allocation2 + $0xc8] sm:$0xff] %v2668
        %2699 = vst [vmem:[#allocation2 + $0xd0] sm:$0xff] %v2669
        %2700 = vst [vmem:[#allocation2 + $0xd8] sm:$0xff] %v2670
        %2701 = vst [vmem:[#allocation2 + $0xe0] sm:$0xff] %v2671
        %2702 = vst [vmem:[#allocation2 + $0xe8] sm:$0x7f] %v2672
        %v2703 = vld [vmem:[#allocation2] sm:$0xff]
        %v2704 = vld [vmem:[#allocation2 + $0x8] sm:$0xff]
        %v2705 = vld [vmem:[#allocation2 + $0x10] sm:$0xff]
        %v2706 = vld [vmem:[#allocation2 + $0x18] sm:$0xff]
        %v2707 = vld [vmem:[#allocation2 + $0x20] sm:$0xff]
        %v2708 = vld [vmem:[#allocation2 + $0x28] sm:$0xff]
        %v2709 = vld [vmem:[#allocation2 + $0x30] sm:$0xff]
        %v2710 = vld [vmem:[#allocation2 + $0x38] sm:$0xff]
        %v2711 = vld [vmem:[#allocation2 + $0x40] sm:$0xff]
        %v2712 = vld [vmem:[#allocation2 + $0x48] sm:$0xff]
        %v2713 = vld [vmem:[#allocation2 + $0x50] sm:$0xff]
        %v2714 = vld [vmem:[#allocation2 + $0x58] sm:$0xff]
        %v2715 = vld [vmem:[#allocation2 + $0x60] sm:$0xff]
        %v2716 = vld [vmem:[#allocation2 + $0x68] sm:$0xff]
        %v2717 = vld [vmem:[#allocation2 + $0x70] sm:$0xff]
        %v2718 = vld [vmem:[#allocation2 + $0x78] sm:$0xff]
        %v2719 = vld [vmem:[#allocation2 + $0x80] sm:$0xff]
        %v2720 = vld [vmem:[#allocation2 + $0x88] sm:$0xff]
        %v2721 = vld [vmem:[#allocation2 + $0x90] sm:$0xff]
        %v2722 = vld [vmem:[#allocation2 + $0x98] sm:$0xff]
        %v2723 = vld [vmem:[#allocation2 + $0xa0] sm:$0xff]
        %v2724 = vld [vmem:[#allocation2 + $0xa8] sm:$0xff]
        %v2725 = vld [vmem:[#allocation2 + $0xb0] sm:$0xff]
        %v2726 = vld [vmem:[#allocation2 + $0xb8] sm:$0xff]
        %v2727 = vld [vmem:[#allocation2 + $0xc0] sm:$0xff]
        %v2728 = vld [vmem:[#allocation2 + $0xc8] sm:$0xff]
        %v2729 = vld [vmem:[#allocation2 + $0xd0] sm:$0xff]
        %v2730 = vld [vmem:[#allocation2 + $0xd8] sm:$0xff]
        %v2731 = vld [vmem:[#allocation2 + $0xe0] sm:$0xff]
        %v2732 = vld [vmem:[#allocation2 + $0xe8] sm:$0xff]
        %v2733 = vld [vmem:[#allocation2 + $0xf0] sm:$0xff]
        %v2734 = vld [vmem:[#allocation2 + $0xf8] sm:$0xff]
        %v2735 = vmax.f32 %v2703, 0.0
        %v2736 = vmax.f32 %v2704, 0.0
        %v2737 = vmax.f32 %v2705, 0.0
        %v2738 = vmax.f32 %v2706, 0.0
        %v2739 = vmax.f32 %v2707, 0.0
        %v2740 = vmax.f32 %v2708, 0.0
        %v2741 = vmax.f32 %v2709, 0.0
        %v2742 = vmax.f32 %v2710, 0.0
        %v2743 = vmax.f32 %v2711, 0.0
        %v2744 = vmax.f32 %v2712, 0.0
        %v2745 = vmax.f32 %v2713, 0.0
        %v2746 = vmax.f32 %v2714, 0.0
        %v2747 = vmax.f32 %v2715, 0.0
        %v2748 = vmax.f32 %v2716, 0.0
        %v2749 = vmax.f32 %v2717, 0.0
        %v2750 = vmax.f32 %v2718, 0.0
        %v2751 = vmax.f32 %v2719, 0.0
        %v2752 = vmax.f32 %v2720, 0.0
        %v2753 = vmax.f32 %v2721, 0.0
        %v2754 = vmax.f32 %v2722, 0.0
        %v2755 = vmax.f32 %v2723, 0.0
        %v2756 = vmax.f32 %v2724, 0.0
        %v2757 = vmax.f32 %v2725, 0.0
        %v2758 = vmax.f32 %v2726, 0.0
        %v2759 = vmax.f32 %v2727, 0.0
        %v2760 = vmax.f32 %v2728, 0.0
        %v2761 = vmax.f32 %v2729, 0.0
        %v2762 = vmax.f32 %v2730, 0.0
        %v2763 = vmax.f32 %v2731, 0.0
        %v2764 = vmax.f32 %v2732, 0.0
        %v2765 = vmax.f32 %v2733, 0.0
        %v2766 = vmax.f32 %v2734, 0.0
        %v2767 = vpack.c.bf16 %v2735, %v2735
        %v2768 = vpack.c.bf16 %v2736, %v2736
        %v2769 = vpack.c.bf16 %v2737, %v2737
        %v2770 = vpack.c.bf16 %v2738, %v2738
        %v2771 = vpack.c.bf16 %v2739, %v2739
        %v2772 = vpack.c.bf16 %v2740, %v2740
        %v2773 = vpack.c.bf16 %v2741, %v2741
        %v2774 = vpack.c.bf16 %v2742, %v2742
        %v2775 = vpack.c.bf16 %v2743, %v2743
        %v2776 = vpack.c.bf16 %v2744, %v2744
        %v2777 = vpack.c.bf16 %v2745, %v2745
        %v2778 = vpack.c.bf16 %v2746, %v2746
        %v2779 = vpack.c.bf16 %v2747, %v2747
        %v2780 = vpack.c.bf16 %v2748, %v2748
        %v2781 = vpack.c.bf16 %v2749, %v2749
        %v2782 = vpack.c.bf16 %v2750, %v2750
        %v2783 = vpack.c.bf16 %v2751, %v2751
        %v2784 = vpack.c.bf16 %v2752, %v2752
        %v2785 = vpack.c.bf16 %v2753, %v2753
        %v2786 = vpack.c.bf16 %v2754, %v2754
        %v2787 = vpack.c.bf16 %v2755, %v2755
        %v2788 = vpack.c.bf16 %v2756, %v2756
        %v2789 = vpack.c.bf16 %v2757, %v2757
        %v2790 = vpack.c.bf16 %v2758, %v2758
        %v2791 = vpack.c.bf16 %v2759, %v2759
        %v2792 = vpack.c.bf16 %v2760, %v2760
        %v2793 = vpack.c.bf16 %v2761, %v2761
        %v2794 = vpack.c.bf16 %v2762, %v2762
        %v2795 = vpack.c.bf16 %v2763, %v2763
        %v2796 = vpack.c.bf16 %v2764, %v2764
        %v2797 = vpack.c.bf16 %v2765, %v2765
        %v2798 = vpack.c.bf16 %v2766, %v2766
        %v2799 = vsel %vm280, %v2767, 0
        %v2800 = vsel %vm281, %v2768, 0
        %v2801 = vsel %vm280, %v2769, 0
        %v2802 = vsel %vm281, %v2770, 0
        %v2803 = vsel %vm280, %v2771, 0
        %v2804 = vsel %vm281, %v2772, 0
        %v2805 = vsel %vm280, %v2773, 0
        %v2806 = vsel %vm281, %v2774, 0
        %v2807 = vsel %vm280, %v2775, 0
        %v2808 = vsel %vm281, %v2776, 0
        %v2809 = vsel %vm280, %v2777, 0
        %v2810 = vsel %vm281, %v2778, 0
        %v2811 = vsel %vm280, %v2779, 0
        %v2812 = vsel %vm281, %v2780, 0
        %v2813 = vsel %vm280, %v2781, 0
        %v2814 = vsel %vm281, %v2782, 0
        %v2815 = vsel %vm280, %v2783, 0
        %v2816 = vsel %vm281, %v2784, 0
        %v2817 = vsel %vm280, %v2785, 0
        %v2818 = vsel %vm281, %v2786, 0
        %v2819 = vsel %vm280, %v2787, 0
        %v2820 = vsel %vm281, %v2788, 0
        %v2821 = vsel %vm280, %v2789, 0
        %v2822 = vsel %vm281, %v2790, 0
        %v2823 = vsel %vm280, %v2791, 0
        %v2824 = vsel %vm281, %v2792, 0
        %v2825 = vsel %vm280, %v2793, 0
        %v2826 = vsel %vm281, %v2794, 0
        %v2827 = vsel %vm280, %v2795, 0
        %v2828 = vsel %vm281, %v2796, 0
        %v2829 = vsel %vm280, %v2797, 0
        %v2830 = vsel %vm281, %v2798, 0
        %v2831 = vsel %vm316, %v2767, 0
        %v2832 = vsel %vm317, %v2768, 0
        %v2833 = vsel %vm316, %v2769, 0
        %v2834 = vsel %vm317, %v2770, 0
        %v2835 = vsel %vm316, %v2771, 0
        %v2836 = vsel %vm317, %v2772, 0
        %v2837 = vsel %vm316, %v2773, 0
        %v2838 = vsel %vm317, %v2774, 0
        %v2839 = vsel %vm316, %v2775, 0
        %v2840 = vsel %vm317, %v2776, 0
        %v2841 = vsel %vm316, %v2777, 0
        %v2842 = vsel %vm317, %v2778, 0
        %v2843 = vsel %vm316, %v2779, 0
        %v2844 = vsel %vm317, %v2780, 0
        %v2845 = vsel %vm316, %v2781, 0
        %v2846 = vsel %vm317, %v2782, 0
        %v2847 = vsel %vm316, %v2783, 0
        %v2848 = vsel %vm317, %v2784, 0
        %v2849 = vsel %vm316, %v2785, 0
        %v2850 = vsel %vm317, %v2786, 0
        %v2851 = vsel %vm316, %v2787, 0
        %v2852 = vsel %vm317, %v2788, 0
        %v2853 = vsel %vm316, %v2789, 0
        %v2854 = vsel %vm317, %v2790, 0
        %v2855 = vsel %vm316, %v2791, 0
        %v2856 = vsel %vm317, %v2792, 0
        %v2857 = vsel %vm316, %v2793, 0
        %v2858 = vsel %vm317, %v2794, 0
        %v2859 = vsel %vm316, %v2795, 0
        %v2860 = vsel %vm317, %v2796, 0
        %v2861 = vsel %vm316, %v2797, 0
        %v2862 = vsel %vm317, %v2798, 0
        %s2863 = scalar_lea.vmem [#allocation3], 256
        %v2864 = vld [vmem:[%s2863] sm:$0xf]
        %v2865 = vld [vmem:[%s2863 + $0x4] sm:$0xf]
        %v2866 = vld [vmem:[%s2863 + $0x8] sm:$0xf]
        %v2867 = vld [vmem:[%s2863 + $0xc] sm:$0xf]
        %v2868 = vld [vmem:[%s2863 + $0x10] sm:$0xf]
        %v2869 = vld [vmem:[%s2863 + $0x14] sm:$0xf]
        %v2870 = vld [vmem:[%s2863 + $0x18] sm:$0xf]
        %v2871 = vld [vmem:[%s2863 + $0x1c] sm:$0xf]
        %v2872 = vld [vmem:[%s2863 + $0x20] sm:$0xf]
        %v2873 = vld [vmem:[%s2863 + $0x24] sm:$0xf]
        %v2874 = vld [vmem:[%s2863 + $0x28] sm:$0xf]
        %v2875 = vld [vmem:[%s2863 + $0x2c] sm:$0xf]
        %v2876 = vld [vmem:[%s2863 + $0x30] sm:$0xf]
        %v2877 = vld [vmem:[%s2863 + $0x34] sm:$0xf]
        %v2878 = vld [vmem:[%s2863 + $0x38] sm:$0xf]
        %v2879 = vld [vmem:[%s2863 + $0x3c] sm:$0xf]
        %v2880 = vld [vmem:[%s4] sm:$0x1]
        %v2882 = vperm.slane %v2880, 0
        %v2916 = vunpack.c.l.b16 %v2767
        %v2917 = vunpack.c.l.b16 %v2768
        %v2918 = vunpack.c.l.b16 %v2769
        %v2919 = vunpack.c.l.b16 %v2770
        %v2920 = vunpack.c.l.b16 %v2771
        %v2921 = vunpack.c.l.b16 %v2772
        %v2922 = vunpack.c.l.b16 %v2773
        %v2923 = vunpack.c.l.b16 %v2774
        %v2924 = vunpack.c.l.b16 %v2775
        %v2925 = vunpack.c.l.b16 %v2776
        %v2926 = vunpack.c.l.b16 %v2777
        %v2927 = vunpack.c.l.b16 %v2778
        %v2928 = vunpack.c.l.b16 %v2779
        %v2929 = vunpack.c.l.b16 %v2780
        %v2930 = vunpack.c.l.b16 %v2781
        %v2931 = vunpack.c.l.b16 %v2782
        %v2932 = vunpack.c.l.b16 %v2783
        %v2933 = vunpack.c.l.b16 %v2784
        %v2934 = vunpack.c.l.b16 %v2785
        %v2935 = vunpack.c.l.b16 %v2786
        %v2936 = vunpack.c.l.b16 %v2787
        %v2937 = vunpack.c.l.b16 %v2788
        %v2938 = vunpack.c.l.b16 %v2789
        %v2939 = vunpack.c.l.b16 %v2790
        %v2940 = vunpack.c.l.b16 %v2791
        %v2941 = vunpack.c.l.b16 %v2792
        %v2942 = vunpack.c.l.b16 %v2793
        %v2943 = vunpack.c.l.b16 %v2794
        %v2944 = vunpack.c.l.b16 %v2795
        %v2945 = vunpack.c.l.b16 %v2796
        %v2946 = vunpack.c.l.b16 %v2797
        %v2947 = vunpack.c.l.b16 %v2798
        %v2948 = vpack.c.b16 %v2917, %v2916
        %v2949 = vpack.c.b16 %v2919, %v2918
        %v2950 = vpack.c.b16 %v2921, %v2920
        %v2951 = vpack.c.b16 %v2923, %v2922
        %v2952 = vpack.c.b16 %v2925, %v2924
        %v2953 = vpack.c.b16 %v2927, %v2926
        %v2954 = vpack.c.b16 %v2929, %v2928
        %v2955 = vpack.c.b16 %v2931, %v2930
        %v2956 = vpack.c.b16 %v2933, %v2932
        %v2957 = vpack.c.b16 %v2935, %v2934
        %v2958 = vpack.c.b16 %v2937, %v2936
        %v2959 = vpack.c.b16 %v2939, %v2938
        %v2960 = vpack.c.b16 %v2941, %v2940
        %v2961 = vpack.c.b16 %v2943, %v2942
        %v2962 = vpack.c.b16 %v2945, %v2944
        %v2963 = vpack.c.b16 %v2947, %v2946
        %v2996 = vunpack.c.l.b16 %v2864
        %v2997 = vunpack.c.l.b16 %v2865
        %v2998 = vunpack.c.l.b16 %v2866
        %v2999 = vunpack.c.l.b16 %v2867
        %v3000 = vunpack.c.l.b16 %v2868
        %v3001 = vunpack.c.l.b16 %v2869
        %v3002 = vunpack.c.l.b16 %v2870
        %v3003 = vunpack.c.l.b16 %v2871
        %v3004 = vunpack.c.l.b16 %v2872
        %v3005 = vunpack.c.l.b16 %v2873
        %v3006 = vunpack.c.l.b16 %v2874
        %v3007 = vunpack.c.l.b16 %v2875
        %v3008 = vunpack.c.l.b16 %v2876
        %v3009 = vunpack.c.l.b16 %v2877
        %v3010 = vunpack.c.l.b16 %v2878
        %v3011 = vunpack.c.l.b16 %v2879
        %v3012 = vpack.c.b16 %v2997, %v2996
        %v3013 = vpack.c.b16 %v2999, %v2998
        %v3014 = vpack.c.b16 %v3001, %v3000
        %v3015 = vpack.c.b16 %v3003, %v3002
        %v3016 = vpack.c.b16 %v3005, %v3004
        %v3017 = vpack.c.b16 %v3007, %v3006
        %v3018 = vpack.c.b16 %v3009, %v3008
        %v3019 = vpack.c.b16 %v3011, %v3010
        %3028 = vmatpush.bf16.msra.mxu0 %v3019
        %3029 = vmatpush.bf16.msra.mxu0 %v3018
        %3030 = vmatpush.bf16.msra.mxu0 %v3017
        %3031 = vmatpush.bf16.msra.mxu0 %v3016
        %3032 = vmatpush.bf16.msra.mxu0 %v3015
        %3033 = vmatpush.bf16.msra.mxu0 %v3014
        %3034 = vmatpush.bf16.msra.mxu0 %v3013
        %3035 = vmatpush.bf16.msra.mxu0 %v3012
        %3036 = vmatmul.bf16.gmra.mxu0 %v2948
        %v3037 = vpop.f32.mrf.mxu0
        %v3038 = vadd.f32 %v2882, %v3037
        %v3039 = vpop.f32.mrf.mxu0
        %v3040 = vadd.f32 %v2882, %v3039
        %3041 = vmatmul.bf16.gmra.mxu0 %v2949
        %v3042 = vpop.f32.mrf.mxu0
        %v3043 = vadd.f32 %v2882, %v3042
        %v3044 = vpop.f32.mrf.mxu0
        %v3045 = vadd.f32 %v2882, %v3044
        %3046 = vmatmul.bf16.gmra.mxu0 %v2950
        %v3047 = vpop.f32.mrf.mxu0
        %v3048 = vadd.f32 %v2882, %v3047
        %v3049 = vpop.f32.mrf.mxu0
        %v3050 = vadd.f32 %v2882, %v3049
        %3051 = vmatmul.bf16.gmra.mxu0 %v2951
        %v3052 = vpop.f32.mrf.mxu0
        %v3053 = vadd.f32 %v2882, %v3052
        %v3054 = vpop.f32.mrf.mxu0
        %v3055 = vadd.f32 %v2882, %v3054
        %3056 = vmatmul.bf16.gmra.mxu0 %v2952
        %v3057 = vpop.f32.mrf.mxu0
        %v3058 = vadd.f32 %v2882, %v3057
        %v3059 = vpop.f32.mrf.mxu0
        %v3060 = vadd.f32 %v2882, %v3059
        %3061 = vmatmul.bf16.gmra.mxu0 %v2953
        %v3062 = vpop.f32.mrf.mxu0
        %v3063 = vadd.f32 %v2882, %v3062
        %v3064 = vpop.f32.mrf.mxu0
        %v3065 = vadd.f32 %v2882, %v3064
        %3066 = vmatmul.bf16.gmra.mxu0 %v2954
        %v3067 = vpop.f32.mrf.mxu0
        %v3068 = vadd.f32 %v2882, %v3067
        %v3069 = vpop.f32.mrf.mxu0
        %v3070 = vadd.f32 %v2882, %v3069
        %3071 = vmatmul.bf16.gmra.mxu0 %v2955
        %v3072 = vpop.f32.mrf.mxu0
        %v3073 = vadd.f32 %v2882, %v3072
        %v3074 = vpop.f32.mrf.mxu0
        %v3075 = vadd.f32 %v2882, %v3074
        %3076 = vmatmul.bf16.gmra.mxu0 %v2956
        %v3077 = vpop.f32.mrf.mxu0
        %v3078 = vadd.f32 %v2882, %v3077
        %v3079 = vpop.f32.mrf.mxu0
        %v3080 = vadd.f32 %v2882, %v3079
        %3081 = vmatmul.bf16.gmra.mxu0 %v2957
        %v3082 = vpop.f32.mrf.mxu0
        %v3083 = vadd.f32 %v2882, %v3082
        %v3084 = vpop.f32.mrf.mxu0
        %v3085 = vadd.f32 %v2882, %v3084
        %3086 = vmatmul.bf16.gmra.mxu0 %v2958
        %v3087 = vpop.f32.mrf.mxu0
        %v3088 = vadd.f32 %v2882, %v3087
        %v3089 = vpop.f32.mrf.mxu0
        %v3090 = vadd.f32 %v2882, %v3089
        %3091 = vmatmul.bf16.gmra.mxu0 %v2959
        %v3092 = vpop.f32.mrf.mxu0
        %v3093 = vadd.f32 %v2882, %v3092
        %v3094 = vpop.f32.mrf.mxu0
        %v3095 = vadd.f32 %v2882, %v3094
        %3096 = vmatmul.bf16.gmra.mxu0 %v2960
        %v3097 = vpop.f32.mrf.mxu0
        %v3098 = vadd.f32 %v2882, %v3097
        %v3099 = vpop.f32.mrf.mxu0
        %v3100 = vadd.f32 %v2882, %v3099
        %3101 = vmatmul.bf16.gmra.mxu0 %v2961
        %v3102 = vpop.f32.mrf.mxu0
        %v3103 = vadd.f32 %v2882, %v3102
        %v3104 = vpop.f32.mrf.mxu0
        %v3105 = vadd.f32 %v2882, %v3104
        %3106 = vmatmul.bf16.gmra.mxu0 %v2962
        %v3107 = vpop.f32.mrf.mxu0
        %v3108 = vadd.f32 %v2882, %v3107
        %v3109 = vpop.f32.mrf.mxu0
        %v3110 = vadd.f32 %v2882, %v3109
        %3111 = vmatmul.bf16.gmra.mxu0 %v2963
        %v3112 = vpop.f32.mrf.mxu0
        %v3113 = vadd.f32 %v2882, %v3112
        %v3114 = vpop.f32.mrf.mxu0
        %v3115 = vadd.f32 %v2882, %v3114
        %3116 = vdwg.mxu0
        %3117 = vst [vmem:[#allocation2] sm:$0xff] %v3038
        %3118 = vst [vmem:[#allocation2 + $0x8] sm:$0xff] %v3040
        %3119 = vst [vmem:[#allocation2 + $0x10] sm:$0xff] %v3043
        %3120 = vst [vmem:[#allocation2 + $0x18] sm:$0xff] %v3045
        %3121 = vst [vmem:[#allocation2 + $0x20] sm:$0xff] %v3048
        %3122 = vst [vmem:[#allocation2 + $0x28] sm:$0xff] %v3050
        %3123 = vst [vmem:[#allocation2 + $0x30] sm:$0xff] %v3053
        %3124 = vst [vmem:[#allocation2 + $0x38] sm:$0xff] %v3055
        %3125 = vst [vmem:[#allocation2 + $0x40] sm:$0xff] %v3058
        %3126 = vst [vmem:[#allocation2 + $0x48] sm:$0xff] %v3060
        %3127 = vst [vmem:[#allocation2 + $0x50] sm:$0xff] %v3063
        %3128 = vst [vmem:[#allocation2 + $0x58] sm:$0xff] %v3065
        %3129 = vst [vmem:[#allocation2 + $0x60] sm:$0xff] %v3068
        %3130 = vst [vmem:[#allocation2 + $0x68] sm:$0xff] %v3070
        %3131 = vst [vmem:[#allocation2 + $0x70] sm:$0xff] %v3073
        %3132 = vst [vmem:[#allocation2 + $0x78] sm:$0xff] %v3075
        %3133 = vst [vmem:[#allocation2 + $0x80] sm:$0xff] %v3078
        %3134 = vst [vmem:[#allocation2 + $0x88] sm:$0xff] %v3080
        %3135 = vst [vmem:[#allocation2 + $0x90] sm:$0xff] %v3083
        %3136 = vst [vmem:[#allocation2 + $0x98] sm:$0xff] %v3085
        %3137 = vst [vmem:[#allocation2 + $0xa0] sm:$0xff] %v3088
        %3138 = vst [vmem:[#allocation2 + $0xa8] sm:$0xff] %v3090
        %3139 = vst [vmem:[#allocation2 + $0xb0] sm:$0xff] %v3093
        %3140 = vst [vmem:[#allocation2 + $0xb8] sm:$0xff] %v3095
        %3141 = vst [vmem:[#allocation2 + $0xc0] sm:$0xff] %v3098
        %3142 = vst [vmem:[#allocation2 + $0xc8] sm:$0xff] %v3100
        %3143 = vst [vmem:[#allocation2 + $0xd0] sm:$0xff] %v3103
        %3144 = vst [vmem:[#allocation2 + $0xd8] sm:$0xff] %v3105
        %3145 = vst [vmem:[#allocation2 + $0xe0] sm:$0xff] %v3108
        %3146 = vst [vmem:[#allocation2 + $0xe8] sm:$0xff] %v3110
        %3147 = vst [vmem:[#allocation2 + $0xf0] sm:$0xff] %v3113
        %3148 = vst [vmem:[#allocation2 + $0xf8] sm:$0xff] %v3115
        %v3149 = vld [vmem:[#allocation3] sm:$0xf]
        %v3150 = vld [vmem:[#allocation3 + $0x4] sm:$0xf]
        %v3151 = vld [vmem:[#allocation3 + $0x8] sm:$0xf]
        %v3152 = vld [vmem:[#allocation3 + $0xc] sm:$0xf]
        %v3153 = vld [vmem:[#allocation3 + $0x10] sm:$0xf]
        %v3154 = vld [vmem:[#allocation3 + $0x14] sm:$0xf]
        %v3155 = vld [vmem:[#allocation3 + $0x18] sm:$0xf]
        %v3156 = vld [vmem:[#allocation3 + $0x1c] sm:$0xf]
        %v3157 = vld [vmem:[#allocation3 + $0x20] sm:$0xf]
        %v3158 = vld [vmem:[#allocation3 + $0x24] sm:$0xf]
        %v3159 = vld [vmem:[#allocation3 + $0x28] sm:$0xf]
        %v3160 = vld [vmem:[#allocation3 + $0x2c] sm:$0xf]
        %v3161 = vld [vmem:[#allocation3 + $0x30] sm:$0xf]
        %v3162 = vld [vmem:[#allocation3 + $0x34] sm:$0xf]
        %v3163 = vld [vmem:[#allocation3 + $0x38] sm:$0xf]
        %v3164 = vld [vmem:[#allocation3 + $0x3c] sm:$0xf]
        %v3165 = vld [vmem:[#allocation2 + $0x11] sm:$0xff]
        %v3166 = vld [vmem:[#allocation2 + $0x19] sm:$0xff]
        %v3167 = vld [vmem:[#allocation2 + $0x21] sm:$0xff]
        %v3168 = vld [vmem:[#allocation2 + $0x29] sm:$0xff]
        %v3169 = vld [vmem:[#allocation2 + $0x31] sm:$0xff]
        %v3170 = vld [vmem:[#allocation2 + $0x39] sm:$0xff]
        %v3171 = vld [vmem:[#allocation2 + $0x41] sm:$0xff]
        %v3172 = vld [vmem:[#allocation2 + $0x49] sm:$0xff]
        %v3173 = vld [vmem:[#allocation2 + $0x51] sm:$0xff]
        %v3174 = vld [vmem:[#allocation2 + $0x59] sm:$0xff]
        %v3175 = vld [vmem:[#allocation2 + $0x61] sm:$0xff]
        %v3176 = vld [vmem:[#allocation2 + $0x69] sm:$0xff]
        %v3177 = vld [vmem:[#allocation2 + $0x71] sm:$0xff]
        %v3178 = vld [vmem:[#allocation2 + $0x79] sm:$0xff]
        %v3179 = vld [vmem:[#allocation2 + $0x81] sm:$0xff]
        %v3180 = vld [vmem:[#allocation2 + $0x89] sm:$0xff]
        %v3181 = vld [vmem:[#allocation2 + $0x91] sm:$0xff]
        %v3182 = vld [vmem:[#allocation2 + $0x99] sm:$0xff]
        %v3183 = vld [vmem:[#allocation2 + $0xa1] sm:$0xff]
        %v3184 = vld [vmem:[#allocation2 + $0xa9] sm:$0xff]
        %v3185 = vld [vmem:[#allocation2 + $0xb1] sm:$0xff]
        %v3186 = vld [vmem:[#allocation2 + $0xb9] sm:$0xff]
        %v3187 = vld [vmem:[#allocation2 + $0xc1] sm:$0xff]
        %v3188 = vld [vmem:[#allocation2 + $0xc9] sm:$0xff]
        %v3189 = vld [vmem:[#allocation2 + $0xd1] sm:$0xff]
        %v3190 = vld [vmem:[#allocation2 + $0xd9] sm:$0xff]
        %v3191 = vld [vmem:[#allocation2 + $0xe1] sm:$0xff]
        %v3192 = vld [vmem:[#allocation2 + $0xe9] sm:$0xff]
        %v3193 = vld [vmem:[#allocation2 + $0xf1] sm:$0xff]
        %v3194 = vld [vmem:[#allocation2 + $0xf9] sm:$0x7f]
        %v3225 = vunpack.c.l.b16 %v2799
        %v3226 = vunpack.c.l.b16 %v2800
        %v3227 = vunpack.c.l.b16 %v2801
        %v3228 = vunpack.c.l.b16 %v2802
        %v3229 = vunpack.c.l.b16 %v2803
        %v3230 = vunpack.c.l.b16 %v2804
        %v3231 = vunpack.c.l.b16 %v2805
        %v3232 = vunpack.c.l.b16 %v2806
        %v3233 = vunpack.c.l.b16 %v2807
        %v3234 = vunpack.c.l.b16 %v2808
        %v3235 = vunpack.c.l.b16 %v2809
        %v3236 = vunpack.c.l.b16 %v2810
        %v3237 = vunpack.c.l.b16 %v2811
        %v3238 = vunpack.c.l.b16 %v2812
        %v3239 = vunpack.c.l.b16 %v2813
        %v3240 = vunpack.c.l.b16 %v2814
        %v3241 = vunpack.c.l.b16 %v2815
        %v3242 = vunpack.c.l.b16 %v2816
        %v3243 = vunpack.c.l.b16 %v2817
        %v3244 = vunpack.c.l.b16 %v2818
        %v3245 = vunpack.c.l.b16 %v2819
        %v3246 = vunpack.c.l.b16 %v2820
        %v3247 = vunpack.c.l.b16 %v2821
        %v3248 = vunpack.c.l.b16 %v2822
        %v3249 = vunpack.c.l.b16 %v2823
        %v3250 = vunpack.c.l.b16 %v2824
        %v3251 = vunpack.c.l.b16 %v2825
        %v3252 = vunpack.c.l.b16 %v2826
        %v3253 = vunpack.c.l.b16 %v2827
        %v3254 = vunpack.c.l.b16 %v2828
        %v3255 = vpack.c.b16 %v3226, %v3225
        %v3256 = vpack.c.b16 %v3228, %v3227
        %v3257 = vpack.c.b16 %v3230, %v3229
        %v3258 = vpack.c.b16 %v3232, %v3231
        %v3259 = vpack.c.b16 %v3234, %v3233
        %v3260 = vpack.c.b16 %v3236, %v3235
        %v3261 = vpack.c.b16 %v3238, %v3237
        %v3262 = vpack.c.b16 %v3240, %v3239
        %v3263 = vpack.c.b16 %v3242, %v3241
        %v3264 = vpack.c.b16 %v3244, %v3243
        %v3265 = vpack.c.b16 %v3246, %v3245
        %v3266 = vpack.c.b16 %v3248, %v3247
        %v3267 = vpack.c.b16 %v3250, %v3249
        %v3268 = vpack.c.b16 %v3252, %v3251
        %v3269 = vpack.c.b16 %v3254, %v3253
        %v3301 = vunpack.c.l.b16 %v3149
        %v3302 = vunpack.c.l.b16 %v3150
        %v3303 = vunpack.c.l.b16 %v3151
        %v3304 = vunpack.c.l.b16 %v3152
        %v3305 = vunpack.c.l.b16 %v3153
        %v3306 = vunpack.c.l.b16 %v3154
        %v3307 = vunpack.c.l.b16 %v3155
        %v3308 = vunpack.c.l.b16 %v3156
        %v3309 = vunpack.c.l.b16 %v3157
        %v3310 = vunpack.c.l.b16 %v3158
        %v3311 = vunpack.c.l.b16 %v3159
        %v3312 = vunpack.c.l.b16 %v3160
        %v3313 = vunpack.c.l.b16 %v3161
        %v3314 = vunpack.c.l.b16 %v3162
        %v3315 = vunpack.c.l.b16 %v3163
        %v3316 = vunpack.c.l.b16 %v3164
        %v3317 = vpack.c.b16 %v3302, %v3301
        %v3318 = vpack.c.b16 %v3304, %v3303
        %v3319 = vpack.c.b16 %v3306, %v3305
        %v3320 = vpack.c.b16 %v3308, %v3307
        %v3321 = vpack.c.b16 %v3310, %v3309
        %v3322 = vpack.c.b16 %v3312, %v3311
        %v3323 = vpack.c.b16 %v3314, %v3313
        %v3324 = vpack.c.b16 %v3316, %v3315
        %3333 = vmatpush.bf16.msra.mxu0 %v3324
        %3334 = vmatpush.bf16.msra.mxu0 %v3323
        %3335 = vmatpush.bf16.msra.mxu0 %v3322
        %3336 = vmatpush.bf16.msra.mxu0 %v3321
        %3337 = vmatpush.bf16.msra.mxu0 %v3320
        %3338 = vmatpush.bf16.msra.mxu0 %v3319
        %3339 = vmatpush.bf16.msra.mxu0 %v3318
        %3340 = vmatpush.bf16.msra.mxu0 %v3317
        %3341 = vmatmul.bf16.gmra.mxu0 %v3255
        %v3342 = vpop.f32.mrf.mxu0
        %v3343 = vadd.f32 0.0, %v3342
        %v3344 = vpop.f32.mrf.mxu0
        %v3345 = vadd.f32 0.0, %v3344
        %3346 = vmatmul.bf16.gmra.mxu0 %v3256
        %v3347 = vpop.f32.mrf.mxu0
        %v3348 = vadd.f32 0.0, %v3347
        %v3349 = vpop.f32.mrf.mxu0
        %v3350 = vadd.f32 0.0, %v3349
        %3351 = vmatmul.bf16.gmra.mxu0 %v3257
        %v3352 = vpop.f32.mrf.mxu0
        %v3353 = vadd.f32 0.0, %v3352
        %v3354 = vpop.f32.mrf.mxu0
        %v3355 = vadd.f32 0.0, %v3354
        %3356 = vmatmul.bf16.gmra.mxu0 %v3258
        %v3357 = vpop.f32.mrf.mxu0
        %v3358 = vadd.f32 0.0, %v3357
        %v3359 = vpop.f32.mrf.mxu0
        %v3360 = vadd.f32 0.0, %v3359
        %3361 = vmatmul.bf16.gmra.mxu0 %v3259
        %v3362 = vpop.f32.mrf.mxu0
        %v3363 = vadd.f32 0.0, %v3362
        %v3364 = vpop.f32.mrf.mxu0
        %v3365 = vadd.f32 0.0, %v3364
        %3366 = vmatmul.bf16.gmra.mxu0 %v3260
        %v3367 = vpop.f32.mrf.mxu0
        %v3368 = vadd.f32 0.0, %v3367
        %v3369 = vpop.f32.mrf.mxu0
        %v3370 = vadd.f32 0.0, %v3369
        %3371 = vmatmul.bf16.gmra.mxu0 %v3261
        %v3372 = vpop.f32.mrf.mxu0
        %v3373 = vadd.f32 0.0, %v3372
        %v3374 = vpop.f32.mrf.mxu0
        %v3375 = vadd.f32 0.0, %v3374
        %3376 = vmatmul.bf16.gmra.mxu0 %v3262
        %v3377 = vpop.f32.mrf.mxu0
        %v3378 = vadd.f32 0.0, %v3377
        %v3379 = vpop.f32.mrf.mxu0
        %v3380 = vadd.f32 0.0, %v3379
        %3381 = vmatmul.bf16.gmra.mxu0 %v3263
        %v3382 = vpop.f32.mrf.mxu0
        %v3383 = vadd.f32 0.0, %v3382
        %v3384 = vpop.f32.mrf.mxu0
        %v3385 = vadd.f32 0.0, %v3384
        %3386 = vmatmul.bf16.gmra.mxu0 %v3264
        %v3387 = vpop.f32.mrf.mxu0
        %v3388 = vadd.f32 0.0, %v3387
        %v3389 = vpop.f32.mrf.mxu0
        %v3390 = vadd.f32 0.0, %v3389
        %3391 = vmatmul.bf16.gmra.mxu0 %v3265
        %v3392 = vpop.f32.mrf.mxu0
        %v3393 = vadd.f32 0.0, %v3392
        %v3394 = vpop.f32.mrf.mxu0
        %v3395 = vadd.f32 0.0, %v3394
        %3396 = vmatmul.bf16.gmra.mxu0 %v3266
        %v3397 = vpop.f32.mrf.mxu0
        %v3398 = vadd.f32 0.0, %v3397
        %v3399 = vpop.f32.mrf.mxu0
        %v3400 = vadd.f32 0.0, %v3399
        %3401 = vmatmul.bf16.gmra.mxu0 %v3267
        %v3402 = vpop.f32.mrf.mxu0
        %v3403 = vadd.f32 0.0, %v3402
        %v3404 = vpop.f32.mrf.mxu0
        %v3405 = vadd.f32 0.0, %v3404
        %3406 = vmatmul.bf16.gmra.mxu0 %v3268
        %v3407 = vpop.f32.mrf.mxu0
        %v3408 = vadd.f32 0.0, %v3407
        %v3409 = vpop.f32.mrf.mxu0
        %v3410 = vadd.f32 0.0, %v3409
        %3411 = vmatmul.bf16.gmra.mxu0 %v3269
        %v3412 = vpop.f32.mrf.mxu0
        %v3413 = vadd.f32 0.0, %v3412
        %v3414 = vpop.f32.mrf.mxu0
        %v3415 = vadd.f32 0.0, %v3414
        %3416 = vdwg.mxu0
        %v3417 = vadd.f32 %v3165, %v3343
        %v3418 = vadd.f32 %v3166, %v3345
        %v3419 = vadd.f32 %v3167, %v3348
        %v3420 = vadd.f32 %v3168, %v3350
        %v3421 = vadd.f32 %v3169, %v3353
        %v3422 = vadd.f32 %v3170, %v3355
        %v3423 = vadd.f32 %v3171, %v3358
        %v3424 = vadd.f32 %v3172, %v3360
        %v3425 = vadd.f32 %v3173, %v3363
        %v3426 = vadd.f32 %v3174, %v3365
        %v3427 = vadd.f32 %v3175, %v3368
        %v3428 = vadd.f32 %v3176, %v3370
        %v3429 = vadd.f32 %v3177, %v3373
        %v3430 = vadd.f32 %v3178, %v3375
        %v3431 = vadd.f32 %v3179, %v3378
        %v3432 = vadd.f32 %v3180, %v3380
        %v3433 = vadd.f32 %v3181, %v3383
        %v3434 = vadd.f32 %v3182, %v3385
        %v3435 = vadd.f32 %v3183, %v3388
        %v3436 = vadd.f32 %v3184, %v3390
        %v3437 = vadd.f32 %v3185, %v3393
        %v3438 = vadd.f32 %v3186, %v3395
        %v3439 = vadd.f32 %v3187, %v3398
        %v3440 = vadd.f32 %v3188, %v3400
        %v3441 = vadd.f32 %v3189, %v3403
        %v3442 = vadd.f32 %v3190, %v3405
        %v3443 = vadd.f32 %v3191, %v3408
        %v3444 = vadd.f32 %v3192, %v3410
        %v3445 = vadd.f32 %v3193, %v3413
        %v3446 = vadd.f32 %v3194, %v3415
        %3447 = vst [vmem:[#allocation2 + $0x11] sm:$0xff] %v3417
        %3448 = vst [vmem:[#allocation2 + $0x19] sm:$0xff] %v3418
        %3449 = vst [vmem:[#allocation2 + $0x21] sm:$0xff] %v3419
        %3450 = vst [vmem:[#allocation2 + $0x29] sm:$0xff] %v3420
        %3451 = vst [vmem:[#allocation2 + $0x31] sm:$0xff] %v3421
        %3452 = vst [vmem:[#allocation2 + $0x39] sm:$0xff] %v3422
        %3453 = vst [vmem:[#allocation2 + $0x41] sm:$0xff] %v3423
        %3454 = vst [vmem:[#allocation2 + $0x49] sm:$0xff] %v3424
        %3455 = vst [vmem:[#allocation2 + $0x51] sm:$0xff] %v3425
        %3456 = vst [vmem:[#allocation2 + $0x59] sm:$0xff] %v3426
        %3457 = vst [vmem:[#allocation2 + $0x61] sm:$0xff] %v3427
        %3458 = vst [vmem:[#allocation2 + $0x69] sm:$0xff] %v3428
        %3459 = vst [vmem:[#allocation2 + $0x71] sm:$0xff] %v3429
        %3460 = vst [vmem:[#allocation2 + $0x79] sm:$0xff] %v3430
        %3461 = vst [vmem:[#allocation2 + $0x81] sm:$0xff] %v3431
        %3462 = vst [vmem:[#allocation2 + $0x89] sm:$0xff] %v3432
        %3463 = vst [vmem:[#allocation2 + $0x91] sm:$0xff] %v3433
        %3464 = vst [vmem:[#allocation2 + $0x99] sm:$0xff] %v3434
        %3465 = vst [vmem:[#allocation2 + $0xa1] sm:$0xff] %v3435
        %3466 = vst [vmem:[#allocation2 + $0xa9] sm:$0xff] %v3436
        %3467 = vst [vmem:[#allocation2 + $0xb1] sm:$0xff] %v3437
        %3468 = vst [vmem:[#allocation2 + $0xb9] sm:$0xff] %v3438
        %3469 = vst [vmem:[#allocation2 + $0xc1] sm:$0xff] %v3439
        %3470 = vst [vmem:[#allocation2 + $0xc9] sm:$0xff] %v3440
        %3471 = vst [vmem:[#allocation2 + $0xd1] sm:$0xff] %v3441
        %3472 = vst [vmem:[#allocation2 + $0xd9] sm:$0xff] %v3442
        %3473 = vst [vmem:[#allocation2 + $0xe1] sm:$0xff] %v3443
        %3474 = vst [vmem:[#allocation2 + $0xe9] sm:$0xff] %v3444
        %3475 = vst [vmem:[#allocation2 + $0xf1] sm:$0xff] %v3445
        %3476 = vst [vmem:[#allocation2 + $0xf9] sm:$0x7f] %v3446
        %s3477 = scalar_lea.vmem [#allocation3], 64
        %v3478 = vld [vmem:[%s3477] sm:$0xf]
        %v3479 = vld [vmem:[%s3477 + $0x4] sm:$0xf]
        %v3480 = vld [vmem:[%s3477 + $0x8] sm:$0xf]
        %v3481 = vld [vmem:[%s3477 + $0xc] sm:$0xf]
        %v3482 = vld [vmem:[%s3477 + $0x10] sm:$0xf]
        %v3483 = vld [vmem:[%s3477 + $0x14] sm:$0xf]
        %v3484 = vld [vmem:[%s3477 + $0x18] sm:$0xf]
        %v3485 = vld [vmem:[%s3477 + $0x1c] sm:$0xf]
        %v3486 = vld [vmem:[%s3477 + $0x20] sm:$0xf]
        %v3487 = vld [vmem:[%s3477 + $0x24] sm:$0xf]
        %v3488 = vld [vmem:[%s3477 + $0x28] sm:$0xf]
        %v3489 = vld [vmem:[%s3477 + $0x2c] sm:$0xf]
        %v3490 = vld [vmem:[%s3477 + $0x30] sm:$0xf]
        %v3491 = vld [vmem:[%s3477 + $0x34] sm:$0xf]
        %v3492 = vld [vmem:[%s3477 + $0x38] sm:$0xf]
        %v3493 = vld [vmem:[%s3477 + $0x3c] sm:$0xf]
        %v3494 = vld [vmem:[#allocation2 + $0x10] sm:$0xff]
        %v3495 = vld [vmem:[#allocation2 + $0x18] sm:$0xff]
        %v3496 = vld [vmem:[#allocation2 + $0x20] sm:$0xff]
        %v3497 = vld [vmem:[#allocation2 + $0x28] sm:$0xff]
        %v3498 = vld [vmem:[#allocation2 + $0x30] sm:$0xff]
        %v3499 = vld [vmem:[#allocation2 + $0x38] sm:$0xff]
        %v3500 = vld [vmem:[#allocation2 + $0x40] sm:$0xff]
        %v3501 = vld [vmem:[#allocation2 + $0x48] sm:$0xff]
        %v3502 = vld [vmem:[#allocation2 + $0x50] sm:$0xff]
        %v3503 = vld [vmem:[#allocation2 + $0x58] sm:$0xff]
        %v3504 = vld [vmem:[#allocation2 + $0x60] sm:$0xff]
        %v3505 = vld [vmem:[#allocation2 + $0x68] sm:$0xff]
        %v3506 = vld [vmem:[#allocation2 + $0x70] sm:$0xff]
        %v3507 = vld [vmem:[#allocation2 + $0x78] sm:$0xff]
        %v3508 = vld [vmem:[#allocation2 + $0x80] sm:$0xff]
        %v3509 = vld [vmem:[#allocation2 + $0x88] sm:$0xff]
        %v3510 = vld [vmem:[#allocation2 + $0x90] sm:$0xff]
        %v3511 = vld [vmem:[#allocation2 + $0x98] sm:$0xff]
        %v3512 = vld [vmem:[#allocation2 + $0xa0] sm:$0xff]
        %v3513 = vld [vmem:[#allocation2 + $0xa8] sm:$0xff]
        %v3514 = vld [vmem:[#allocation2 + $0xb0] sm:$0xff]
        %v3515 = vld [vmem:[#allocation2 + $0xb8] sm:$0xff]
        %v3516 = vld [vmem:[#allocation2 + $0xc0] sm:$0xff]
        %v3517 = vld [vmem:[#allocation2 + $0xc8] sm:$0xff]
        %v3518 = vld [vmem:[#allocation2 + $0xd0] sm:$0xff]
        %v3519 = vld [vmem:[#allocation2 + $0xd8] sm:$0xff]
        %v3520 = vld [vmem:[#allocation2 + $0xe0] sm:$0xff]
        %v3521 = vld [vmem:[#allocation2 + $0xe8] sm:$0xff]
        %v3522 = vld [vmem:[#allocation2 + $0xf0] sm:$0xff]
        %v3523 = vld [vmem:[#allocation2 + $0xf8] sm:$0xff]
        %v3540 = vunpack.c.l.b16 %v3478
        %v3541 = vunpack.c.l.b16 %v3479
        %v3542 = vunpack.c.l.b16 %v3480
        %v3543 = vunpack.c.l.b16 %v3481
        %v3544 = vunpack.c.l.b16 %v3482
        %v3545 = vunpack.c.l.b16 %v3483
        %v3546 = vunpack.c.l.b16 %v3484
        %v3547 = vunpack.c.l.b16 %v3485
        %v3548 = vunpack.c.l.b16 %v3486
        %v3549 = vunpack.c.l.b16 %v3487
        %v3550 = vunpack.c.l.b16 %v3488
        %v3551 = vunpack.c.l.b16 %v3489
        %v3552 = vunpack.c.l.b16 %v3490
        %v3553 = vunpack.c.l.b16 %v3491
        %v3554 = vunpack.c.l.b16 %v3492
        %v3555 = vunpack.c.l.b16 %v3493
        %v3556 = vpack.c.b16 %v3541, %v3540
        %v3557 = vpack.c.b16 %v3543, %v3542
        %v3558 = vpack.c.b16 %v3545, %v3544
        %v3559 = vpack.c.b16 %v3547, %v3546
        %v3560 = vpack.c.b16 %v3549, %v3548
        %v3561 = vpack.c.b16 %v3551, %v3550
        %v3562 = vpack.c.b16 %v3553, %v3552
        %v3563 = vpack.c.b16 %v3555, %v3554
        %3572 = vmatpush.bf16.msra.mxu0 %v3563
        %3573 = vmatpush.bf16.msra.mxu0 %v3562
        %3574 = vmatpush.bf16.msra.mxu0 %v3561
        %3575 = vmatpush.bf16.msra.mxu0 %v3560
        %3576 = vmatpush.bf16.msra.mxu0 %v3559
        %3577 = vmatpush.bf16.msra.mxu0 %v3558
        %3578 = vmatpush.bf16.msra.mxu0 %v3557
        %3579 = vmatpush.bf16.msra.mxu0 %v3556
        %3580 = vmatmul.bf16.gmra.mxu0 %v2948
        %v3581 = vpop.f32.mrf.mxu0
        %v3582 = vadd.f32 0.0, %v3581
        %v3583 = vpop.f32.mrf.mxu0
        %v3584 = vadd.f32 0.0, %v3583
        %3585 = vmatmul.bf16.gmra.mxu0 %v2949
        %v3586 = vpop.f32.mrf.mxu0
        %v3587 = vadd.f32 0.0, %v3586
        %v3588 = vpop.f32.mrf.mxu0
        %v3589 = vadd.f32 0.0, %v3588
        %3590 = vmatmul.bf16.gmra.mxu0 %v2950
        %v3591 = vpop.f32.mrf.mxu0
        %v3592 = vadd.f32 0.0, %v3591
        %v3593 = vpop.f32.mrf.mxu0
        %v3594 = vadd.f32 0.0, %v3593
        %3595 = vmatmul.bf16.gmra.mxu0 %v2951
        %v3596 = vpop.f32.mrf.mxu0
        %v3597 = vadd.f32 0.0, %v3596
        %v3598 = vpop.f32.mrf.mxu0
        %v3599 = vadd.f32 0.0, %v3598
        %3600 = vmatmul.bf16.gmra.mxu0 %v2952
        %v3601 = vpop.f32.mrf.mxu0
        %v3602 = vadd.f32 0.0, %v3601
        %v3603 = vpop.f32.mrf.mxu0
        %v3604 = vadd.f32 0.0, %v3603
        %3605 = vmatmul.bf16.gmra.mxu0 %v2953
        %v3606 = vpop.f32.mrf.mxu0
        %v3607 = vadd.f32 0.0, %v3606
        %v3608 = vpop.f32.mrf.mxu0
        %v3609 = vadd.f32 0.0, %v3608
        %3610 = vmatmul.bf16.gmra.mxu0 %v2954
        %v3611 = vpop.f32.mrf.mxu0
        %v3612 = vadd.f32 0.0, %v3611
        %v3613 = vpop.f32.mrf.mxu0
        %v3614 = vadd.f32 0.0, %v3613
        %3615 = vmatmul.bf16.gmra.mxu0 %v2955
        %v3616 = vpop.f32.mrf.mxu0
        %v3617 = vadd.f32 0.0, %v3616
        %v3618 = vpop.f32.mrf.mxu0
        %v3619 = vadd.f32 0.0, %v3618
        %3620 = vmatmul.bf16.gmra.mxu0 %v2956
        %v3621 = vpop.f32.mrf.mxu0
        %v3622 = vadd.f32 0.0, %v3621
        %v3623 = vpop.f32.mrf.mxu0
        %v3624 = vadd.f32 0.0, %v3623
        %3625 = vmatmul.bf16.gmra.mxu0 %v2957
        %v3626 = vpop.f32.mrf.mxu0
        %v3627 = vadd.f32 0.0, %v3626
        %v3628 = vpop.f32.mrf.mxu0
        %v3629 = vadd.f32 0.0, %v3628
        %3630 = vmatmul.bf16.gmra.mxu0 %v2958
        %v3631 = vpop.f32.mrf.mxu0
        %v3632 = vadd.f32 0.0, %v3631
        %v3633 = vpop.f32.mrf.mxu0
        %v3634 = vadd.f32 0.0, %v3633
        %3635 = vmatmul.bf16.gmra.mxu0 %v2959
        %v3636 = vpop.f32.mrf.mxu0
        %v3637 = vadd.f32 0.0, %v3636
        %v3638 = vpop.f32.mrf.mxu0
        %v3639 = vadd.f32 0.0, %v3638
        %3640 = vmatmul.bf16.gmra.mxu0 %v2960
        %v3641 = vpop.f32.mrf.mxu0
        %v3642 = vadd.f32 0.0, %v3641
        %v3643 = vpop.f32.mrf.mxu0
        %v3644 = vadd.f32 0.0, %v3643
        %3645 = vmatmul.bf16.gmra.mxu0 %v2961
        %v3646 = vpop.f32.mrf.mxu0
        %v3647 = vadd.f32 0.0, %v3646
        %v3648 = vpop.f32.mrf.mxu0
        %v3649 = vadd.f32 0.0, %v3648
        %3650 = vmatmul.bf16.gmra.mxu0 %v2962
        %v3651 = vpop.f32.mrf.mxu0
        %v3652 = vadd.f32 0.0, %v3651
        %v3653 = vpop.f32.mrf.mxu0
        %v3654 = vadd.f32 0.0, %v3653
        %3655 = vdwg.mxu0
        %v3656 = vadd.f32 %v3494, %v3582
        %v3657 = vadd.f32 %v3495, %v3584
        %v3658 = vadd.f32 %v3496, %v3587
        %v3659 = vadd.f32 %v3497, %v3589
        %v3660 = vadd.f32 %v3498, %v3592
        %v3661 = vadd.f32 %v3499, %v3594
        %v3662 = vadd.f32 %v3500, %v3597
        %v3663 = vadd.f32 %v3501, %v3599
        %v3664 = vadd.f32 %v3502, %v3602
        %v3665 = vadd.f32 %v3503, %v3604
        %v3666 = vadd.f32 %v3504, %v3607
        %v3667 = vadd.f32 %v3505, %v3609
        %v3668 = vadd.f32 %v3506, %v3612
        %v3669 = vadd.f32 %v3507, %v3614
        %v3670 = vadd.f32 %v3508, %v3617
        %v3671 = vadd.f32 %v3509, %v3619
        %v3672 = vadd.f32 %v3510, %v3622
        %v3673 = vadd.f32 %v3511, %v3624
        %v3674 = vadd.f32 %v3512, %v3627
        %v3675 = vadd.f32 %v3513, %v3629
        %v3676 = vadd.f32 %v3514, %v3632
        %v3677 = vadd.f32 %v3515, %v3634
        %v3678 = vadd.f32 %v3516, %v3637
        %v3679 = vadd.f32 %v3517, %v3639
        %v3680 = vadd.f32 %v3518, %v3642
        %v3681 = vadd.f32 %v3519, %v3644
        %v3682 = vadd.f32 %v3520, %v3647
        %v3683 = vadd.f32 %v3521, %v3649
        %v3684 = vadd.f32 %v3522, %v3652
        %v3685 = vadd.f32 %v3523, %v3654
        %3686 = vst [vmem:[#allocation2 + $0x10] sm:$0xff] %v3656
        %3687 = vst [vmem:[#allocation2 + $0x18] sm:$0xff] %v3657
        %3688 = vst [vmem:[#allocation2 + $0x20] sm:$0xff] %v3658
        %3689 = vst [vmem:[#allocation2 + $0x28] sm:$0xff] %v3659
        %3690 = vst [vmem:[#allocation2 + $0x30] sm:$0xff] %v3660
        %3691 = vst [vmem:[#allocation2 + $0x38] sm:$0xff] %v3661
        %3692 = vst [vmem:[#allocation2 + $0x40] sm:$0xff] %v3662
        %3693 = vst [vmem:[#allocation2 + $0x48] sm:$0xff] %v3663
        %3694 = vst [vmem:[#allocation2 + $0x50] sm:$0xff] %v3664
        %3695 = vst [vmem:[#allocation2 + $0x58] sm:$0xff] %v3665
        %3696 = vst [vmem:[#allocation2 + $0x60] sm:$0xff] %v3666
        %3697 = vst [vmem:[#allocation2 + $0x68] sm:$0xff] %v3667
        %3698 = vst [vmem:[#allocation2 + $0x70] sm:$0xff] %v3668
        %3699 = vst [vmem:[#allocation2 + $0x78] sm:$0xff] %v3669
        %3700 = vst [vmem:[#allocation2 + $0x80] sm:$0xff] %v3670
        %3701 = vst [vmem:[#allocation2 + $0x88] sm:$0xff] %v3671
        %3702 = vst [vmem:[#allocation2 + $0x90] sm:$0xff] %v3672
        %3703 = vst [vmem:[#allocation2 + $0x98] sm:$0xff] %v3673
        %3704 = vst [vmem:[#allocation2 + $0xa0] sm:$0xff] %v3674
        %3705 = vst [vmem:[#allocation2 + $0xa8] sm:$0xff] %v3675
        %3706 = vst [vmem:[#allocation2 + $0xb0] sm:$0xff] %v3676
        %3707 = vst [vmem:[#allocation2 + $0xb8] sm:$0xff] %v3677
        %3708 = vst [vmem:[#allocation2 + $0xc0] sm:$0xff] %v3678
        %3709 = vst [vmem:[#allocation2 + $0xc8] sm:$0xff] %v3679
        %3710 = vst [vmem:[#allocation2 + $0xd0] sm:$0xff] %v3680
        %3711 = vst [vmem:[#allocation2 + $0xd8] sm:$0xff] %v3681
        %3712 = vst [vmem:[#allocation2 + $0xe0] sm:$0xff] %v3682
        %3713 = vst [vmem:[#allocation2 + $0xe8] sm:$0xff] %v3683
        %3714 = vst [vmem:[#allocation2 + $0xf0] sm:$0xff] %v3684
        %3715 = vst [vmem:[#allocation2 + $0xf8] sm:$0xff] %v3685
        %s3716 = scalar_lea.vmem [#allocation3], 128
        %v3717 = vld [vmem:[%s3716] sm:$0xf]
        %v3718 = vld [vmem:[%s3716 + $0x4] sm:$0xf]
        %v3719 = vld [vmem:[%s3716 + $0x8] sm:$0xf]
        %v3720 = vld [vmem:[%s3716 + $0xc] sm:$0xf]
        %v3721 = vld [vmem:[%s3716 + $0x10] sm:$0xf]
        %v3722 = vld [vmem:[%s3716 + $0x14] sm:$0xf]
        %v3723 = vld [vmem:[%s3716 + $0x18] sm:$0xf]
        %v3724 = vld [vmem:[%s3716 + $0x1c] sm:$0xf]
        %v3725 = vld [vmem:[%s3716 + $0x20] sm:$0xf]
        %v3726 = vld [vmem:[%s3716 + $0x24] sm:$0xf]
        %v3727 = vld [vmem:[%s3716 + $0x28] sm:$0xf]
        %v3728 = vld [vmem:[%s3716 + $0x2c] sm:$0xf]
        %v3729 = vld [vmem:[%s3716 + $0x30] sm:$0xf]
        %v3730 = vld [vmem:[%s3716 + $0x34] sm:$0xf]
        %v3731 = vld [vmem:[%s3716 + $0x38] sm:$0xf]
        %v3732 = vld [vmem:[%s3716 + $0x3c] sm:$0xf]
        %v3733 = vld [vmem:[#allocation2 + $0xf] sm:$0xff]
        %v3734 = vld [vmem:[#allocation2 + $0x17] sm:$0xff]
        %v3735 = vld [vmem:[#allocation2 + $0x1f] sm:$0xff]
        %v3736 = vld [vmem:[#allocation2 + $0x27] sm:$0xff]
        %v3737 = vld [vmem:[#allocation2 + $0x2f] sm:$0xff]
        %v3738 = vld [vmem:[#allocation2 + $0x37] sm:$0xff]
        %v3739 = vld [vmem:[#allocation2 + $0x3f] sm:$0xff]
        %v3740 = vld [vmem:[#allocation2 + $0x47] sm:$0xff]
        %v3741 = vld [vmem:[#allocation2 + $0x4f] sm:$0xff]
        %v3742 = vld [vmem:[#allocation2 + $0x57] sm:$0xff]
        %v3743 = vld [vmem:[#allocation2 + $0x5f] sm:$0xff]
        %v3744 = vld [vmem:[#allocation2 + $0x67] sm:$0xff]
        %v3745 = vld [vmem:[#allocation2 + $0x6f] sm:$0xff]
        %v3746 = vld [vmem:[#allocation2 + $0x77] sm:$0xff]
        %v3747 = vld [vmem:[#allocation2 + $0x7f] sm:$0xff]
        %v3748 = vld [vmem:[#allocation2 + $0x87] sm:$0xff]
        %v3749 = vld [vmem:[#allocation2 + $0x8f] sm:$0xff]
        %v3750 = vld [vmem:[#allocation2 + $0x97] sm:$0xff]
        %v3751 = vld [vmem:[#allocation2 + $0x9f] sm:$0xff]
        %v3752 = vld [vmem:[#allocation2 + $0xa7] sm:$0xff]
        %v3753 = vld [vmem:[#allocation2 + $0xaf] sm:$0xff]
        %v3754 = vld [vmem:[#allocation2 + $0xb7] sm:$0xff]
        %v3755 = vld [vmem:[#allocation2 + $0xbf] sm:$0xff]
        %v3756 = vld [vmem:[#allocation2 + $0xc7] sm:$0xff]
        %v3757 = vld [vmem:[#allocation2 + $0xcf] sm:$0xff]
        %v3758 = vld [vmem:[#allocation2 + $0xd7] sm:$0xff]
        %v3759 = vld [vmem:[#allocation2 + $0xdf] sm:$0xff]
        %v3760 = vld [vmem:[#allocation2 + $0xe7] sm:$0xff]
        %v3761 = vld [vmem:[#allocation2 + $0xef] sm:$0xff]
        %v3762 = vld [vmem:[#allocation2 + $0xf7] sm:$0xff]
        %v3763 = vld [vmem:[#allocation2 + $0xff] sm:$0x1]
        %v3795 = vunpack.c.l.b16 %v2831
        %v3796 = vunpack.c.l.b16 %v2832
        %v3797 = vunpack.c.l.b16 %v2833
        %v3798 = vunpack.c.l.b16 %v2834
        %v3799 = vunpack.c.l.b16 %v2835
        %v3800 = vunpack.c.l.b16 %v2836
        %v3801 = vunpack.c.l.b16 %v2837
        %v3802 = vunpack.c.l.b16 %v2838
        %v3803 = vunpack.c.l.b16 %v2839
        %v3804 = vunpack.c.l.b16 %v2840
        %v3805 = vunpack.c.l.b16 %v2841
        %v3806 = vunpack.c.l.b16 %v2842
        %v3807 = vunpack.c.l.b16 %v2843
        %v3808 = vunpack.c.l.b16 %v2844
        %v3809 = vunpack.c.l.b16 %v2845
        %v3810 = vunpack.c.l.b16 %v2846
        %v3811 = vunpack.c.l.b16 %v2847
        %v3812 = vunpack.c.l.b16 %v2848
        %v3813 = vunpack.c.l.b16 %v2849
        %v3814 = vunpack.c.l.b16 %v2850
        %v3815 = vunpack.c.l.b16 %v2851
        %v3816 = vunpack.c.l.b16 %v2852
        %v3817 = vunpack.c.l.b16 %v2853
        %v3818 = vunpack.c.l.b16 %v2854
        %v3819 = vunpack.c.l.b16 %v2855
        %v3820 = vunpack.c.l.b16 %v2856
        %v3821 = vunpack.c.l.b16 %v2857
        %v3822 = vunpack.c.l.b16 %v2858
        %v3823 = vunpack.c.l.b16 %v2859
        %v3824 = vunpack.c.l.b16 %v2860
        %v3825 = vunpack.c.l.b16 %v2861
        %v3826 = vpack.c.b16 %v3796, %v3795
        %v3827 = vpack.c.b16 %v3798, %v3797
        %v3828 = vpack.c.b16 %v3800, %v3799
        %v3829 = vpack.c.b16 %v3802, %v3801
        %v3830 = vpack.c.b16 %v3804, %v3803
        %v3831 = vpack.c.b16 %v3806, %v3805
        %v3832 = vpack.c.b16 %v3808, %v3807
        %v3833 = vpack.c.b16 %v3810, %v3809
        %v3834 = vpack.c.b16 %v3812, %v3811
        %v3835 = vpack.c.b16 %v3814, %v3813
        %v3836 = vpack.c.b16 %v3816, %v3815
        %v3837 = vpack.c.b16 %v3818, %v3817
        %v3838 = vpack.c.b16 %v3820, %v3819
        %v3839 = vpack.c.b16 %v3822, %v3821
        %v3840 = vpack.c.b16 %v3824, %v3823
        %v3841 = vpack.c.b16 %v3825, %v3825
        %v3874 = vunpack.c.l.b16 %v3717
        %v3875 = vunpack.c.l.b16 %v3718
        %v3876 = vunpack.c.l.b16 %v3719
        %v3877 = vunpack.c.l.b16 %v3720
        %v3878 = vunpack.c.l.b16 %v3721
        %v3879 = vunpack.c.l.b16 %v3722
        %v3880 = vunpack.c.l.b16 %v3723
        %v3881 = vunpack.c.l.b16 %v3724
        %v3882 = vunpack.c.l.b16 %v3725
        %v3883 = vunpack.c.l.b16 %v3726
        %v3884 = vunpack.c.l.b16 %v3727
        %v3885 = vunpack.c.l.b16 %v3728
        %v3886 = vunpack.c.l.b16 %v3729
        %v3887 = vunpack.c.l.b16 %v3730
        %v3888 = vunpack.c.l.b16 %v3731
        %v3889 = vunpack.c.l.b16 %v3732
        %v3890 = vpack.c.b16 %v3875, %v3874
        %v3891 = vpack.c.b16 %v3877, %v3876
        %v3892 = vpack.c.b16 %v3879, %v3878
        %v3893 = vpack.c.b16 %v3881, %v3880
        %v3894 = vpack.c.b16 %v3883, %v3882
        %v3895 = vpack.c.b16 %v3885, %v3884
        %v3896 = vpack.c.b16 %v3887, %v3886
        %v3897 = vpack.c.b16 %v3889, %v3888
        %3906 = vmatpush.bf16.msra.mxu0 %v3897
        %3907 = vmatpush.bf16.msra.mxu0 %v3896
        %3908 = vmatpush.bf16.msra.mxu0 %v3895
        %3909 = vmatpush.bf16.msra.mxu0 %v3894
        %3910 = vmatpush.bf16.msra.mxu0 %v3893
        %3911 = vmatpush.bf16.msra.mxu0 %v3892
        %3912 = vmatpush.bf16.msra.mxu0 %v3891
        %3913 = vmatpush.bf16.msra.mxu0 %v3890
        %3914 = vmatmul.bf16.gmra.mxu0 %v3826
        %v3915 = vpop.f32.mrf.mxu0
        %v3916 = vadd.f32 0.0, %v3915
        %v3917 = vpop.f32.mrf.mxu0
        %v3918 = vadd.f32 0.0, %v3917
        %3919 = vmatmul.bf16.gmra.mxu0 %v3827
        %v3920 = vpop.f32.mrf.mxu0
        %v3921 = vadd.f32 0.0, %v3920
        %v3922 = vpop.f32.mrf.mxu0
        %v3923 = vadd.f32 0.0, %v3922
        %3924 = vmatmul.bf16.gmra.mxu0 %v3828
        %v3925 = vpop.f32.mrf.mxu0
        %v3926 = vadd.f32 0.0, %v3925
        %v3927 = vpop.f32.mrf.mxu0
        %v3928 = vadd.f32 0.0, %v3927
        %3929 = vmatmul.bf16.gmra.mxu0 %v3829
        %v3930 = vpop.f32.mrf.mxu0
        %v3931 = vadd.f32 0.0, %v3930
        %v3932 = vpop.f32.mrf.mxu0
        %v3933 = vadd.f32 0.0, %v3932
        %3934 = vmatmul.bf16.gmra.mxu0 %v3830
        %v3935 = vpop.f32.mrf.mxu0
        %v3936 = vadd.f32 0.0, %v3935
        %v3937 = vpop.f32.mrf.mxu0
        %v3938 = vadd.f32 0.0, %v3937
        %3939 = vmatmul.bf16.gmra.mxu0 %v3831
        %v3940 = vpop.f32.mrf.mxu0
        %v3941 = vadd.f32 0.0, %v3940
        %v3942 = vpop.f32.mrf.mxu0
        %v3943 = vadd.f32 0.0, %v3942
        %3944 = vmatmul.bf16.gmra.mxu0 %v3832
        %v3945 = vpop.f32.mrf.mxu0
        %v3946 = vadd.f32 0.0, %v3945
        %v3947 = vpop.f32.mrf.mxu0
        %v3948 = vadd.f32 0.0, %v3947
        %3949 = vmatmul.bf16.gmra.mxu0 %v3833
        %v3950 = vpop.f32.mrf.mxu0
        %v3951 = vadd.f32 0.0, %v3950
        %v3952 = vpop.f32.mrf.mxu0
        %v3953 = vadd.f32 0.0, %v3952
        %3954 = vmatmul.bf16.gmra.mxu0 %v3834
        %v3955 = vpop.f32.mrf.mxu0
        %v3956 = vadd.f32 0.0, %v3955
        %v3957 = vpop.f32.mrf.mxu0
        %v3958 = vadd.f32 0.0, %v3957
        %3959 = vmatmul.bf16.gmra.mxu0 %v3835
        %v3960 = vpop.f32.mrf.mxu0
        %v3961 = vadd.f32 0.0, %v3960
        %v3962 = vpop.f32.mrf.mxu0
        %v3963 = vadd.f32 0.0, %v3962
        %3964 = vmatmul.bf16.gmra.mxu0 %v3836
        %v3965 = vpop.f32.mrf.mxu0
        %v3966 = vadd.f32 0.0, %v3965
        %v3967 = vpop.f32.mrf.mxu0
        %v3968 = vadd.f32 0.0, %v3967
        %3969 = vmatmul.bf16.gmra.mxu0 %v3837
        %v3970 = vpop.f32.mrf.mxu0
        %v3971 = vadd.f32 0.0, %v3970
        %v3972 = vpop.f32.mrf.mxu0
        %v3973 = vadd.f32 0.0, %v3972
        %3974 = vmatmul.bf16.gmra.mxu0 %v3838
        %v3975 = vpop.f32.mrf.mxu0
        %v3976 = vadd.f32 0.0, %v3975
        %v3977 = vpop.f32.mrf.mxu0
        %v3978 = vadd.f32 0.0, %v3977
        %3979 = vmatmul.bf16.gmra.mxu0 %v3839
        %v3980 = vpop.f32.mrf.mxu0
        %v3981 = vadd.f32 0.0, %v3980
        %v3982 = vpop.f32.mrf.mxu0
        %v3983 = vadd.f32 0.0, %v3982
        %3984 = vmatmul.bf16.gmra.mxu0 %v3840
        %v3985 = vpop.f32.mrf.mxu0
        %v3986 = vadd.f32 0.0, %v3985
        %v3987 = vpop.f32.mrf.mxu0
        %v3988 = vadd.f32 0.0, %v3987
        %3989 = vmatmul.bf16.gmra.mxu0 %v3841
        %v3990 = vpop.f32.mrf.mxu0
        %v3991 = vadd.f32 0.0, %v3990
        %v3992 = vpop.f32.mrf.mxu0
        %3993 = vdwg.mxu0
        %v3994 = vadd.f32 %v3733, %v3916
        %v3995 = vadd.f32 %v3734, %v3918
        %v3996 = vadd.f32 %v3735, %v3921
        %v3997 = vadd.f32 %v3736, %v3923
        %v3998 = vadd.f32 %v3737, %v3926
        %v3999 = vadd.f32 %v3738, %v3928
        %v4000 = vadd.f32 %v3739, %v3931
        %v4001 = vadd.f32 %v3740, %v3933
        %v4002 = vadd.f32 %v3741, %v3936
        %v4003 = vadd.f32 %v3742, %v3938
        %v4004 = vadd.f32 %v3743, %v3941
        %v4005 = vadd.f32 %v3744, %v3943
        %v4006 = vadd.f32 %v3745, %v3946
        %v4007 = vadd.f32 %v3746, %v3948
        %v4008 = vadd.f32 %v3747, %v3951
        %v4009 = vadd.f32 %v3748, %v3953
        %v4010 = vadd.f32 %v3749, %v3956
        %v4011 = vadd.f32 %v3750, %v3958
        %v4012 = vadd.f32 %v3751, %v3961
        %v4013 = vadd.f32 %v3752, %v3963
        %v4014 = vadd.f32 %v3753, %v3966
        %v4015 = vadd.f32 %v3754, %v3968
        %v4016 = vadd.f32 %v3755, %v3971
        %v4017 = vadd.f32 %v3756, %v3973
        %v4018 = vadd.f32 %v3757, %v3976
        %v4019 = vadd.f32 %v3758, %v3978
        %v4020 = vadd.f32 %v3759, %v3981
        %v4021 = vadd.f32 %v3760, %v3983
        %v4022 = vadd.f32 %v3761, %v3986
        %v4023 = vadd.f32 %v3762, %v3988
        %v4024 = vadd.f32 %v3763, %v3991
        %4025 = vst [vmem:[#allocation2 + $0xf] sm:$0xff] %v3994
        %4026 = vst [vmem:[#allocation2 + $0x17] sm:$0xff] %v3995
        %4027 = vst [vmem:[#allocation2 + $0x1f] sm:$0xff] %v3996
        %4028 = vst [vmem:[#allocation2 + $0x27] sm:$0xff] %v3997
        %4029 = vst [vmem:[#allocation2 + $0x2f] sm:$0xff] %v3998
        %4030 = vst [vmem:[#allocation2 + $0x37] sm:$0xff] %v3999
        %4031 = vst [vmem:[#allocation2 + $0x3f] sm:$0xff] %v4000
        %4032 = vst [vmem:[#allocation2 + $0x47] sm:$0xff] %v4001
        %4033 = vst [vmem:[#allocation2 + $0x4f] sm:$0xff] %v4002
        %4034 = vst [vmem:[#allocation2 + $0x57] sm:$0xff] %v4003
        %4035 = vst [vmem:[#allocation2 + $0x5f] sm:$0xff] %v4004
        %4036 = vst [vmem:[#allocation2 + $0x67] sm:$0xff] %v4005
        %4037 = vst [vmem:[#allocation2 + $0x6f] sm:$0xff] %v4006
        %4038 = vst [vmem:[#allocation2 + $0x77] sm:$0xff] %v4007
        %4039 = vst [vmem:[#allocation2 + $0x7f] sm:$0xff] %v4008
        %4040 = vst [vmem:[#allocation2 + $0x87] sm:$0xff] %v4009
        %4041 = vst [vmem:[#allocation2 + $0x8f] sm:$0xff] %v4010
        %4042 = vst [vmem:[#allocation2 + $0x97] sm:$0xff] %v4011
        %4043 = vst [vmem:[#allocation2 + $0x9f] sm:$0xff] %v4012
        %4044 = vst [vmem:[#allocation2 + $0xa7] sm:$0xff] %v4013
        %4045 = vst [vmem:[#allocation2 + $0xaf] sm:$0xff] %v4014
        %4046 = vst [vmem:[#allocation2 + $0xb7] sm:$0xff] %v4015
        %4047 = vst [vmem:[#allocation2 + $0xbf] sm:$0xff] %v4016
        %4048 = vst [vmem:[#allocation2 + $0xc7] sm:$0xff] %v4017
        %4049 = vst [vmem:[#allocation2 + $0xcf] sm:$0xff] %v4018
        %4050 = vst [vmem:[#allocation2 + $0xd7] sm:$0xff] %v4019
        %4051 = vst [vmem:[#allocation2 + $0xdf] sm:$0xff] %v4020
        %4052 = vst [vmem:[#allocation2 + $0xe7] sm:$0xff] %v4021
        %4053 = vst [vmem:[#allocation2 + $0xef] sm:$0xff] %v4022
        %4054 = vst [vmem:[#allocation2 + $0xf7] sm:$0xff] %v4023
        %4055 = vst [vmem:[#allocation2 + $0xff] sm:$0x1] %v4024
        %s4056 = scalar_lea.vmem [#allocation3], 192
        %v4057 = vld [vmem:[%s4056] sm:$0xf]
        %v4058 = vld [vmem:[%s4056 + $0x4] sm:$0xf]
        %v4059 = vld [vmem:[%s4056 + $0x8] sm:$0xf]
        %v4060 = vld [vmem:[%s4056 + $0xc] sm:$0xf]
        %v4061 = vld [vmem:[%s4056 + $0x10] sm:$0xf]
        %v4062 = vld [vmem:[%s4056 + $0x14] sm:$0xf]
        %v4063 = vld [vmem:[%s4056 + $0x18] sm:$0xf]
        %v4064 = vld [vmem:[%s4056 + $0x1c] sm:$0xf]
        %v4065 = vld [vmem:[%s4056 + $0x20] sm:$0xf]
        %v4066 = vld [vmem:[%s4056 + $0x24] sm:$0xf]
        %v4067 = vld [vmem:[%s4056 + $0x28] sm:$0xf]
        %v4068 = vld [vmem:[%s4056 + $0x2c] sm:$0xf]
        %v4069 = vld [vmem:[%s4056 + $0x30] sm:$0xf]
        %v4070 = vld [vmem:[%s4056 + $0x34] sm:$0xf]
        %v4071 = vld [vmem:[%s4056 + $0x38] sm:$0xf]
        %v4072 = vld [vmem:[%s4056 + $0x3c] sm:$0xf]
        %v4073 = vld [vmem:[#allocation2 + $0x1] sm:$0xff]
        %v4074 = vld [vmem:[#allocation2 + $0x9] sm:$0xff]
        %v4075 = vld [vmem:[#allocation2 + $0x11] sm:$0xff]
        %v4076 = vld [vmem:[#allocation2 + $0x19] sm:$0xff]
        %v4077 = vld [vmem:[#allocation2 + $0x21] sm:$0xff]
        %v4078 = vld [vmem:[#allocation2 + $0x29] sm:$0xff]
        %v4079 = vld [vmem:[#allocation2 + $0x31] sm:$0xff]
        %v4080 = vld [vmem:[#allocation2 + $0x39] sm:$0xff]
        %v4081 = vld [vmem:[#allocation2 + $0x41] sm:$0xff]
        %v4082 = vld [vmem:[#allocation2 + $0x49] sm:$0xff]
        %v4083 = vld [vmem:[#allocation2 + $0x51] sm:$0xff]
        %v4084 = vld [vmem:[#allocation2 + $0x59] sm:$0xff]
        %v4085 = vld [vmem:[#allocation2 + $0x61] sm:$0xff]
        %v4086 = vld [vmem:[#allocation2 + $0x69] sm:$0xff]
        %v4087 = vld [vmem:[#allocation2 + $0x71] sm:$0xff]
        %v4088 = vld [vmem:[#allocation2 + $0x79] sm:$0xff]
        %v4089 = vld [vmem:[#allocation2 + $0x81] sm:$0xff]
        %v4090 = vld [vmem:[#allocation2 + $0x89] sm:$0xff]
        %v4091 = vld [vmem:[#allocation2 + $0x91] sm:$0xff]
        %v4092 = vld [vmem:[#allocation2 + $0x99] sm:$0xff]
        %v4093 = vld [vmem:[#allocation2 + $0xa1] sm:$0xff]
        %v4094 = vld [vmem:[#allocation2 + $0xa9] sm:$0xff]
        %v4095 = vld [vmem:[#allocation2 + $0xb1] sm:$0xff]
        %v4096 = vld [vmem:[#allocation2 + $0xb9] sm:$0xff]
        %v4097 = vld [vmem:[#allocation2 + $0xc1] sm:$0xff]
        %v4098 = vld [vmem:[#allocation2 + $0xc9] sm:$0xff]
        %v4099 = vld [vmem:[#allocation2 + $0xd1] sm:$0xff]
        %v4100 = vld [vmem:[#allocation2 + $0xd9] sm:$0xff]
        %v4101 = vld [vmem:[#allocation2 + $0xe1] sm:$0xff]
        %v4102 = vld [vmem:[#allocation2 + $0xe9] sm:$0xff]
        %v4103 = vld [vmem:[#allocation2 + $0xf1] sm:$0xff]
        %v4104 = vld [vmem:[#allocation2 + $0xf9] sm:$0x7f]
        %v4107 = vunpack.c.l.b16 %v2829
        %v4108 = vunpack.c.l.b16 %v2830
        %v4109 = vpack.c.b16 %v4108, %v4107
        %v4127 = vunpack.c.l.b16 %v4057
        %v4128 = vunpack.c.l.b16 %v4058
        %v4129 = vunpack.c.l.b16 %v4059
        %v4130 = vunpack.c.l.b16 %v4060
        %v4131 = vunpack.c.l.b16 %v4061
        %v4132 = vunpack.c.l.b16 %v4062
        %v4133 = vunpack.c.l.b16 %v4063
        %v4134 = vunpack.c.l.b16 %v4064
        %v4135 = vunpack.c.l.b16 %v4065
        %v4136 = vunpack.c.l.b16 %v4066
        %v4137 = vunpack.c.l.b16 %v4067
        %v4138 = vunpack.c.l.b16 %v4068
        %v4139 = vunpack.c.l.b16 %v4069
        %v4140 = vunpack.c.l.b16 %v4070
        %v4141 = vunpack.c.l.b16 %v4071
        %v4142 = vunpack.c.l.b16 %v4072
        %v4143 = vpack.c.b16 %v4128, %v4127
        %v4144 = vpack.c.b16 %v4130, %v4129
        %v4145 = vpack.c.b16 %v4132, %v4131
        %v4146 = vpack.c.b16 %v4134, %v4133
        %v4147 = vpack.c.b16 %v4136, %v4135
        %v4148 = vpack.c.b16 %v4138, %v4137
        %v4149 = vpack.c.b16 %v4140, %v4139
        %v4150 = vpack.c.b16 %v4142, %v4141
        %4159 = vmatpush.bf16.msra.mxu0 %v4150
        %4160 = vmatpush.bf16.msra.mxu0 %v4149
        %4161 = vmatpush.bf16.msra.mxu0 %v4148
        %4162 = vmatpush.bf16.msra.mxu0 %v4147
        %4163 = vmatpush.bf16.msra.mxu0 %v4146
        %4164 = vmatpush.bf16.msra.mxu0 %v4145
        %4165 = vmatpush.bf16.msra.mxu0 %v4144
        %4166 = vmatpush.bf16.msra.mxu0 %v4143
        %4167 = vmatmul.bf16.gmra.mxu0 %v3255
        %v4168 = vpop.f32.mrf.mxu0
        %v4169 = vadd.f32 0.0, %v4168
        %v4170 = vpop.f32.mrf.mxu0
        %v4171 = vadd.f32 0.0, %v4170
        %4172 = vmatmul.bf16.gmra.mxu0 %v3256
        %v4173 = vpop.f32.mrf.mxu0
        %v4174 = vadd.f32 0.0, %v4173
        %v4175 = vpop.f32.mrf.mxu0
        %v4176 = vadd.f32 0.0, %v4175
        %4177 = vmatmul.bf16.gmra.mxu0 %v3257
        %v4178 = vpop.f32.mrf.mxu0
        %v4179 = vadd.f32 0.0, %v4178
        %v4180 = vpop.f32.mrf.mxu0
        %v4181 = vadd.f32 0.0, %v4180
        %4182 = vmatmul.bf16.gmra.mxu0 %v3258
        %v4183 = vpop.f32.mrf.mxu0
        %v4184 = vadd.f32 0.0, %v4183
        %v4185 = vpop.f32.mrf.mxu0
        %v4186 = vadd.f32 0.0, %v4185
        %4187 = vmatmul.bf16.gmra.mxu0 %v3259
        %v4188 = vpop.f32.mrf.mxu0
        %v4189 = vadd.f32 0.0, %v4188
        %v4190 = vpop.f32.mrf.mxu0
        %v4191 = vadd.f32 0.0, %v4190
        %4192 = vmatmul.bf16.gmra.mxu0 %v3260
        %v4193 = vpop.f32.mrf.mxu0
        %v4194 = vadd.f32 0.0, %v4193
        %v4195 = vpop.f32.mrf.mxu0
        %v4196 = vadd.f32 0.0, %v4195
        %4197 = vmatmul.bf16.gmra.mxu0 %v3261
        %v4198 = vpop.f32.mrf.mxu0
        %v4199 = vadd.f32 0.0, %v4198
        %v4200 = vpop.f32.mrf.mxu0
        %v4201 = vadd.f32 0.0, %v4200
        %4202 = vmatmul.bf16.gmra.mxu0 %v3262
        %v4203 = vpop.f32.mrf.mxu0
        %v4204 = vadd.f32 0.0, %v4203
        %v4205 = vpop.f32.mrf.mxu0
        %v4206 = vadd.f32 0.0, %v4205
        %4207 = vmatmul.bf16.gmra.mxu0 %v3263
        %v4208 = vpop.f32.mrf.mxu0
        %v4209 = vadd.f32 0.0, %v4208
        %v4210 = vpop.f32.mrf.mxu0
        %v4211 = vadd.f32 0.0, %v4210
        %4212 = vmatmul.bf16.gmra.mxu0 %v3264
        %v4213 = vpop.f32.mrf.mxu0
        %v4214 = vadd.f32 0.0, %v4213
        %v4215 = vpop.f32.mrf.mxu0
        %v4216 = vadd.f32 0.0, %v4215
        %4217 = vmatmul.bf16.gmra.mxu0 %v3265
        %v4218 = vpop.f32.mrf.mxu0
        %v4219 = vadd.f32 0.0, %v4218
        %v4220 = vpop.f32.mrf.mxu0
        %v4221 = vadd.f32 0.0, %v4220
        %4222 = vmatmul.bf16.gmra.mxu0 %v3266
        %v4223 = vpop.f32.mrf.mxu0
        %v4224 = vadd.f32 0.0, %v4223
        %v4225 = vpop.f32.mrf.mxu0
        %v4226 = vadd.f32 0.0, %v4225
        %4227 = vmatmul.bf16.gmra.mxu0 %v3267
        %v4228 = vpop.f32.mrf.mxu0
        %v4229 = vadd.f32 0.0, %v4228
        %v4230 = vpop.f32.mrf.mxu0
        %v4231 = vadd.f32 0.0, %v4230
        %4232 = vmatmul.bf16.gmra.mxu0 %v3268
        %v4233 = vpop.f32.mrf.mxu0
        %v4234 = vadd.f32 0.0, %v4233
        %v4235 = vpop.f32.mrf.mxu0
        %v4236 = vadd.f32 0.0, %v4235
        %4237 = vmatmul.bf16.gmra.mxu0 %v3269
        %v4238 = vpop.f32.mrf.mxu0
        %v4239 = vadd.f32 0.0, %v4238
        %v4240 = vpop.f32.mrf.mxu0
        %v4241 = vadd.f32 0.0, %v4240
        %4242 = vmatmul.bf16.gmra.mxu0 %v4109
        %v4243 = vpop.f32.mrf.mxu0
        %v4244 = vadd.f32 0.0, %v4243
        %v4245 = vpop.f32.mrf.mxu0
        %v4246 = vadd.f32 0.0, %v4245
        %4247 = vdwg.mxu0
        %v4248 = vadd.f32 %v4073, %v4169
        %v4249 = vadd.f32 %v4074, %v4171
        %v4250 = vadd.f32 %v4075, %v4174
        %v4251 = vadd.f32 %v4076, %v4176
        %v4252 = vadd.f32 %v4077, %v4179
        %v4253 = vadd.f32 %v4078, %v4181
        %v4254 = vadd.f32 %v4079, %v4184
        %v4255 = vadd.f32 %v4080, %v4186
        %v4256 = vadd.f32 %v4081, %v4189
        %v4257 = vadd.f32 %v4082, %v4191
        %v4258 = vadd.f32 %v4083, %v4194
        %v4259 = vadd.f32 %v4084, %v4196
        %v4260 = vadd.f32 %v4085, %v4199
        %v4261 = vadd.f32 %v4086, %v4201
        %v4262 = vadd.f32 %v4087, %v4204
        %v4263 = vadd.f32 %v4088, %v4206
        %v4264 = vadd.f32 %v4089, %v4209
        %v4265 = vadd.f32 %v4090, %v4211
        %v4266 = vadd.f32 %v4091, %v4214
        %v4267 = vadd.f32 %v4092, %v4216
        %v4268 = vadd.f32 %v4093, %v4219
        %v4269 = vadd.f32 %v4094, %v4221
        %v4270 = vadd.f32 %v4095, %v4224
        %v4271 = vadd.f32 %v4096, %v4226
        %v4272 = vadd.f32 %v4097, %v4229
        %v4273 = vadd.f32 %v4098, %v4231
        %v4274 = vadd.f32 %v4099, %v4234
        %v4275 = vadd.f32 %v4100, %v4236
        %v4276 = vadd.f32 %v4101, %v4239
        %v4277 = vadd.f32 %v4102, %v4241
        %v4278 = vadd.f32 %v4103, %v4244
        %v4279 = vadd.f32 %v4104, %v4246
        %4280 = vst [vmem:[#allocation2 + $0x1] sm:$0xff] %v4248
        %4281 = vst [vmem:[#allocation2 + $0x9] sm:$0xff] %v4249
        %4282 = vst [vmem:[#allocation2 + $0x11] sm:$0xff] %v4250
        %4283 = vst [vmem:[#allocation2 + $0x19] sm:$0xff] %v4251
        %4284 = vst [vmem:[#allocation2 + $0x21] sm:$0xff] %v4252
        %4285 = vst [vmem:[#allocation2 + $0x29] sm:$0xff] %v4253
        %4286 = vst [vmem:[#allocation2 + $0x31] sm:$0xff] %v4254
        %4287 = vst [vmem:[#allocation2 + $0x39] sm:$0xff] %v4255
        %4288 = vst [vmem:[#allocation2 + $0x41] sm:$0xff] %v4256
        %4289 = vst [vmem:[#allocation2 + $0x49] sm:$0xff] %v4257
        %4290 = vst [vmem:[#allocation2 + $0x51] sm:$0xff] %v4258
        %4291 = vst [vmem:[#allocation2 + $0x59] sm:$0xff] %v4259
        %4292 = vst [vmem:[#allocation2 + $0x61] sm:$0xff] %v4260
        %4293 = vst [vmem:[#allocation2 + $0x69] sm:$0xff] %v4261
        %4294 = vst [vmem:[#allocation2 + $0x71] sm:$0xff] %v4262
        %4295 = vst [vmem:[#allocation2 + $0x79] sm:$0xff] %v4263
        %4296 = vst [vmem:[#allocation2 + $0x81] sm:$0xff] %v4264
        %4297 = vst [vmem:[#allocation2 + $0x89] sm:$0xff] %v4265
        %4298 = vst [vmem:[#allocation2 + $0x91] sm:$0xff] %v4266
        %4299 = vst [vmem:[#allocation2 + $0x99] sm:$0xff] %v4267
        %4300 = vst [vmem:[#allocation2 + $0xa1] sm:$0xff] %v4268
        %4301 = vst [vmem:[#allocation2 + $0xa9] sm:$0xff] %v4269
        %4302 = vst [vmem:[#allocation2 + $0xb1] sm:$0xff] %v4270
        %4303 = vst [vmem:[#allocation2 + $0xb9] sm:$0xff] %v4271
        %4304 = vst [vmem:[#allocation2 + $0xc1] sm:$0xff] %v4272
        %4305 = vst [vmem:[#allocation2 + $0xc9] sm:$0xff] %v4273
        %4306 = vst [vmem:[#allocation2 + $0xd1] sm:$0xff] %v4274
        %4307 = vst [vmem:[#allocation2 + $0xd9] sm:$0xff] %v4275
        %4308 = vst [vmem:[#allocation2 + $0xe1] sm:$0xff] %v4276
        %4309 = vst [vmem:[#allocation2 + $0xe9] sm:$0xff] %v4277
        %4310 = vst [vmem:[#allocation2 + $0xf1] sm:$0xff] %v4278
        %4311 = vst [vmem:[#allocation2 + $0xf9] sm:$0x7f] %v4279
        %s4312 = scalar_lea.vmem [#allocation3], 320
        %v4313 = vld [vmem:[%s4312] sm:$0xf]
        %v4314 = vld [vmem:[%s4312 + $0x4] sm:$0xf]
        %v4315 = vld [vmem:[%s4312 + $0x8] sm:$0xf]
        %v4316 = vld [vmem:[%s4312 + $0xc] sm:$0xf]
        %v4317 = vld [vmem:[%s4312 + $0x10] sm:$0xf]
        %v4318 = vld [vmem:[%s4312 + $0x14] sm:$0xf]
        %v4319 = vld [vmem:[%s4312 + $0x18] sm:$0xf]
        %v4320 = vld [vmem:[%s4312 + $0x1c] sm:$0xf]
        %v4321 = vld [vmem:[%s4312 + $0x20] sm:$0xf]
        %v4322 = vld [vmem:[%s4312 + $0x24] sm:$0xf]
        %v4323 = vld [vmem:[%s4312 + $0x28] sm:$0xf]
        %v4324 = vld [vmem:[%s4312 + $0x2c] sm:$0xf]
        %v4325 = vld [vmem:[%s4312 + $0x30] sm:$0xf]
        %v4326 = vld [vmem:[%s4312 + $0x34] sm:$0xf]
        %v4327 = vld [vmem:[%s4312 + $0x38] sm:$0xf]
        %v4328 = vld [vmem:[%s4312 + $0x3c] sm:$0xf]
        %v4329 = vld [vmem:[#allocation2] sm:$0xff]
        %v4330 = vld [vmem:[#allocation2 + $0x8] sm:$0xff]
        %v4331 = vld [vmem:[#allocation2 + $0x10] sm:$0xff]
        %v4332 = vld [vmem:[#allocation2 + $0x18] sm:$0xff]
        %v4333 = vld [vmem:[#allocation2 + $0x20] sm:$0xff]
        %v4334 = vld [vmem:[#allocation2 + $0x28] sm:$0xff]
        %v4335 = vld [vmem:[#allocation2 + $0x30] sm:$0xff]
        %v4336 = vld [vmem:[#allocation2 + $0x38] sm:$0xff]
        %v4337 = vld [vmem:[#allocation2 + $0x40] sm:$0xff]
        %v4338 = vld [vmem:[#allocation2 + $0x48] sm:$0xff]
        %v4339 = vld [vmem:[#allocation2 + $0x50] sm:$0xff]
        %v4340 = vld [vmem:[#allocation2 + $0x58] sm:$0xff]
        %v4341 = vld [vmem:[#allocation2 + $0x60] sm:$0xff]
        %v4342 = vld [vmem:[#allocation2 + $0x68] sm:$0xff]
        %v4343 = vld [vmem:[#allocation2 + $0x70] sm:$0xff]
        %v4344 = vld [vmem:[#allocation2 + $0x78] sm:$0xff]
        %v4345 = vld [vmem:[#allocation2 + $0x80] sm:$0xff]
        %v4346 = vld [vmem:[#allocation2 + $0x88] sm:$0xff]
        %v4347 = vld [vmem:[#allocation2 + $0x90] sm:$0xff]
        %v4348 = vld [vmem:[#allocation2 + $0x98] sm:$0xff]
        %v4349 = vld [vmem:[#allocation2 + $0xa0] sm:$0xff]
        %v4350 = vld [vmem:[#allocation2 + $0xa8] sm:$0xff]
        %v4351 = vld [vmem:[#allocation2 + $0xb0] sm:$0xff]
        %v4352 = vld [vmem:[#allocation2 + $0xb8] sm:$0xff]
        %v4353 = vld [vmem:[#allocation2 + $0xc0] sm:$0xff]
        %v4354 = vld [vmem:[#allocation2 + $0xc8] sm:$0xff]
        %v4355 = vld [vmem:[#allocation2 + $0xd0] sm:$0xff]
        %v4356 = vld [vmem:[#allocation2 + $0xd8] sm:$0xff]
        %v4357 = vld [vmem:[#allocation2 + $0xe0] sm:$0xff]
        %v4358 = vld [vmem:[#allocation2 + $0xe8] sm:$0xff]
        %v4359 = vld [vmem:[#allocation2 + $0xf0] sm:$0xff]
        %v4360 = vld [vmem:[#allocation2 + $0xf8] sm:$0x7f]
        %v4362 = vunpack.c.l.b16 %v2862
        %v4363 = vpack.c.b16 %v4362, %v3825
        %v4365 = vshrl.u32 %v3826, 16
        %v4367 = vshll.u32 %v3826, 16
        %v4369 = vrot.slane %v4367, 1
        %v4370 = vor.u32 %v4365, %v4369
        %v4372 = vshll.u32 %v3827, 16
        %v4374 = vrot.slane %v4372, 1
        %v4375 = vsel %vm1634, %v4370, %v4374
        %v4376 = vshrl.u32 %v3827, 16
        %v4378 = vor.u32 %v4376, %v4374
        %v4380 = vshll.u32 %v3828, 16
        %v4382 = vrot.slane %v4380, 1
        %v4383 = vsel %vm1634, %v4378, %v4382
        %v4384 = vshrl.u32 %v3828, 16
        %v4386 = vor.u32 %v4384, %v4382
        %v4388 = vshll.u32 %v3829, 16
        %v4390 = vrot.slane %v4388, 1
        %v4391 = vsel %vm1634, %v4386, %v4390
        %v4392 = vshrl.u32 %v3829, 16
        %v4394 = vor.u32 %v4392, %v4390
        %v4396 = vshll.u32 %v3830, 16
        %v4398 = vrot.slane %v4396, 1
        %v4399 = vsel %vm1634, %v4394, %v4398
        %v4400 = vshrl.u32 %v3830, 16
        %v4402 = vor.u32 %v4400, %v4398
        %v4404 = vshll.u32 %v3831, 16
        %v4406 = vrot.slane %v4404, 1
        %v4407 = vsel %vm1634, %v4402, %v4406
        %v4408 = vshrl.u32 %v3831, 16
        %v4410 = vor.u32 %v4408, %v4406
        %v4412 = vshll.u32 %v3832, 16
        %v4414 = vrot.slane %v4412, 1
        %v4415 = vsel %vm1634, %v4410, %v4414
        %v4416 = vshrl.u32 %v3832, 16
        %v4418 = vor.u32 %v4416, %v4414
        %v4420 = vshll.u32 %v3833, 16
        %v4422 = vrot.slane %v4420, 1
        %v4423 = vsel %vm1634, %v4418, %v4422
        %v4424 = vshrl.u32 %v3833, 16
        %v4426 = vor.u32 %v4424, %v4422
        %v4428 = vshll.u32 %v3834, 16
        %v4430 = vrot.slane %v4428, 1
        %v4431 = vsel %vm1634, %v4426, %v4430
        %v4432 = vshrl.u32 %v3834, 16
        %v4434 = vor.u32 %v4432, %v4430
        %v4436 = vshll.u32 %v3835, 16
        %v4438 = vrot.slane %v4436, 1
        %v4439 = vsel %vm1634, %v4434, %v4438
        %v4440 = vshrl.u32 %v3835, 16
        %v4442 = vor.u32 %v4440, %v4438
        %v4444 = vshll.u32 %v3836, 16
        %v4446 = vrot.slane %v4444, 1
        %v4447 = vsel %vm1634, %v4442, %v4446
        %v4448 = vshrl.u32 %v3836, 16
        %v4450 = vor.u32 %v4448, %v4446
        %v4452 = vshll.u32 %v3837, 16
        %v4454 = vrot.slane %v4452, 1
        %v4455 = vsel %vm1634, %v4450, %v4454
        %v4456 = vshrl.u32 %v3837, 16
        %v4458 = vor.u32 %v4456, %v4454
        %v4460 = vshll.u32 %v3838, 16
        %v4462 = vrot.slane %v4460, 1
        %v4463 = vsel %vm1634, %v4458, %v4462
        %v4464 = vshrl.u32 %v3838, 16
        %v4466 = vor.u32 %v4464, %v4462
        %v4468 = vshll.u32 %v3839, 16
        %v4470 = vrot.slane %v4468, 1
        %v4471 = vsel %vm1634, %v4466, %v4470
        %v4472 = vshrl.u32 %v3839, 16
        %v4474 = vor.u32 %v4472, %v4470
        %v4476 = vshll.u32 %v3840, 16
        %v4478 = vrot.slane %v4476, 1
        %v4479 = vsel %vm1634, %v4474, %v4478
        %v4480 = vshrl.u32 %v3840, 16
        %v4482 = vor.u32 %v4480, %v4478
        %v4484 = vshll.u32 %v4363, 16
        %v4486 = vrot.slane %v4484, 1
        %v4487 = vsel %vm1634, %v4482, %v4486
        %v4488 = vshrl.u32 %v4363, 16
        %v4490 = vor.u32 %v4488, %v4486
        %v4523 = vunpack.c.l.b16 %v4313
        %v4524 = vunpack.c.l.b16 %v4314
        %v4525 = vunpack.c.l.b16 %v4315
        %v4526 = vunpack.c.l.b16 %v4316
        %v4527 = vunpack.c.l.b16 %v4317
        %v4528 = vunpack.c.l.b16 %v4318
        %v4529 = vunpack.c.l.b16 %v4319
        %v4530 = vunpack.c.l.b16 %v4320
        %v4531 = vunpack.c.l.b16 %v4321
        %v4532 = vunpack.c.l.b16 %v4322
        %v4533 = vunpack.c.l.b16 %v4323
        %v4534 = vunpack.c.l.b16 %v4324
        %v4535 = vunpack.c.l.b16 %v4325
        %v4536 = vunpack.c.l.b16 %v4326
        %v4537 = vunpack.c.l.b16 %v4327
        %v4538 = vunpack.c.l.b16 %v4328
        %v4539 = vpack.c.b16 %v4524, %v4523
        %v4540 = vpack.c.b16 %v4526, %v4525
        %v4541 = vpack.c.b16 %v4528, %v4527
        %v4542 = vpack.c.b16 %v4530, %v4529
        %v4543 = vpack.c.b16 %v4532, %v4531
        %v4544 = vpack.c.b16 %v4534, %v4533
        %v4545 = vpack.c.b16 %v4536, %v4535
        %v4546 = vpack.c.b16 %v4538, %v4537
        %4555 = vmatpush.bf16.msra.mxu0 %v4546
        %4556 = vmatpush.bf16.msra.mxu0 %v4545
        %4557 = vmatpush.bf16.msra.mxu0 %v4544
        %4558 = vmatpush.bf16.msra.mxu0 %v4543
        %4559 = vmatpush.bf16.msra.mxu0 %v4542
        %4560 = vmatpush.bf16.msra.mxu0 %v4541
        %4561 = vmatpush.bf16.msra.mxu0 %v4540
        %4562 = vmatpush.bf16.msra.mxu0 %v4539
        %4563 = vmatmul.bf16.gmra.mxu0 %v4375
        %v4564 = vpop.f32.mrf.mxu0
        %v4565 = vadd.f32 0.0, %v4564
        %v4566 = vpop.f32.mrf.mxu0
        %v4567 = vadd.f32 0.0, %v4566
        %4568 = vmatmul.bf16.gmra.mxu0 %v4383
        %v4569 = vpop.f32.mrf.mxu0
        %v4570 = vadd.f32 0.0, %v4569
        %v4571 = vpop.f32.mrf.mxu0
        %v4572 = vadd.f32 0.0, %v4571
        %4573 = vmatmul.bf16.gmra.mxu0 %v4391
        %v4574 = vpop.f32.mrf.mxu0
        %v4575 = vadd.f32 0.0, %v4574
        %v4576 = vpop.f32.mrf.mxu0
        %v4577 = vadd.f32 0.0, %v4576
        %4578 = vmatmul.bf16.gmra.mxu0 %v4399
        %v4579 = vpop.f32.mrf.mxu0
        %v4580 = vadd.f32 0.0, %v4579
        %v4581 = vpop.f32.mrf.mxu0
        %v4582 = vadd.f32 0.0, %v4581
        %4583 = vmatmul.bf16.gmra.mxu0 %v4407
        %v4584 = vpop.f32.mrf.mxu0
        %v4585 = vadd.f32 0.0, %v4584
        %v4586 = vpop.f32.mrf.mxu0
        %v4587 = vadd.f32 0.0, %v4586
        %4588 = vmatmul.bf16.gmra.mxu0 %v4415
        %v4589 = vpop.f32.mrf.mxu0
        %v4590 = vadd.f32 0.0, %v4589
        %v4591 = vpop.f32.mrf.mxu0
        %v4592 = vadd.f32 0.0, %v4591
        %4593 = vmatmul.bf16.gmra.mxu0 %v4423
        %v4594 = vpop.f32.mrf.mxu0
        %v4595 = vadd.f32 0.0, %v4594
        %v4596 = vpop.f32.mrf.mxu0
        %v4597 = vadd.f32 0.0, %v4596
        %4598 = vmatmul.bf16.gmra.mxu0 %v4431
        %v4599 = vpop.f32.mrf.mxu0
        %v4600 = vadd.f32 0.0, %v4599
        %v4601 = vpop.f32.mrf.mxu0
        %v4602 = vadd.f32 0.0, %v4601
        %4603 = vmatmul.bf16.gmra.mxu0 %v4439
        %v4604 = vpop.f32.mrf.mxu0
        %v4605 = vadd.f32 0.0, %v4604
        %v4606 = vpop.f32.mrf.mxu0
        %v4607 = vadd.f32 0.0, %v4606
        %4608 = vmatmul.bf16.gmra.mxu0 %v4447
        %v4609 = vpop.f32.mrf.mxu0
        %v4610 = vadd.f32 0.0, %v4609
        %v4611 = vpop.f32.mrf.mxu0
        %v4612 = vadd.f32 0.0, %v4611
        %4613 = vmatmul.bf16.gmra.mxu0 %v4455
        %v4614 = vpop.f32.mrf.mxu0
        %v4615 = vadd.f32 0.0, %v4614
        %v4616 = vpop.f32.mrf.mxu0
        %v4617 = vadd.f32 0.0, %v4616
        %4618 = vmatmul.bf16.gmra.mxu0 %v4463
        %v4619 = vpop.f32.mrf.mxu0
        %v4620 = vadd.f32 0.0, %v4619
        %v4621 = vpop.f32.mrf.mxu0
        %v4622 = vadd.f32 0.0, %v4621
        %4623 = vmatmul.bf16.gmra.mxu0 %v4471
        %v4624 = vpop.f32.mrf.mxu0
        %v4625 = vadd.f32 0.0, %v4624
        %v4626 = vpop.f32.mrf.mxu0
        %v4627 = vadd.f32 0.0, %v4626
        %4628 = vmatmul.bf16.gmra.mxu0 %v4479
        %v4629 = vpop.f32.mrf.mxu0
        %v4630 = vadd.f32 0.0, %v4629
        %v4631 = vpop.f32.mrf.mxu0
        %v4632 = vadd.f32 0.0, %v4631
        %4633 = vmatmul.bf16.gmra.mxu0 %v4487
        %v4634 = vpop.f32.mrf.mxu0
        %v4635 = vadd.f32 0.0, %v4634
        %v4636 = vpop.f32.mrf.mxu0
        %v4637 = vadd.f32 0.0, %v4636
        %4638 = vmatmul.bf16.gmra.mxu0 %v4490
        %v4639 = vpop.f32.mrf.mxu0
        %v4640 = vadd.f32 0.0, %v4639
        %v4641 = vpop.f32.mrf.mxu0
        %v4642 = vadd.f32 0.0, %v4641
        %4643 = vdwg.mxu0
        %v4644 = vadd.f32 %v4329, %v4565
        %v4645 = vadd.f32 %v4330, %v4567
        %v4646 = vadd.f32 %v4331, %v4570
        %v4647 = vadd.f32 %v4332, %v4572
        %v4648 = vadd.f32 %v4333, %v4575
        %v4649 = vadd.f32 %v4334, %v4577
        %v4650 = vadd.f32 %v4335, %v4580
        %v4651 = vadd.f32 %v4336, %v4582
        %v4652 = vadd.f32 %v4337, %v4585
        %v4653 = vadd.f32 %v4338, %v4587
        %v4654 = vadd.f32 %v4339, %v4590
        %v4655 = vadd.f32 %v4340, %v4592
        %v4656 = vadd.f32 %v4341, %v4595
        %v4657 = vadd.f32 %v4342, %v4597
        %v4658 = vadd.f32 %v4343, %v4600
        %v4659 = vadd.f32 %v4344, %v4602
        %v4660 = vadd.f32 %v4345, %v4605
        %v4661 = vadd.f32 %v4346, %v4607
        %v4662 = vadd.f32 %v4347, %v4610
        %v4663 = vadd.f32 %v4348, %v4612
        %v4664 = vadd.f32 %v4349, %v4615
        %v4665 = vadd.f32 %v4350, %v4617
        %v4666 = vadd.f32 %v4351, %v4620
        %v4667 = vadd.f32 %v4352, %v4622
        %v4668 = vadd.f32 %v4353, %v4625
        %v4669 = vadd.f32 %v4354, %v4627
        %v4670 = vadd.f32 %v4355, %v4630
        %v4671 = vadd.f32 %v4356, %v4632
        %v4672 = vadd.f32 %v4357, %v4635
        %v4673 = vadd.f32 %v4358, %v4637
        %v4674 = vadd.f32 %v4359, %v4640
        %v4675 = vadd.f32 %v4360, %v4642
        %4676 = vst [vmem:[#allocation2] sm:$0xff] %v4644
        %4677 = vst [vmem:[#allocation2 + $0x8] sm:$0xff] %v4645
        %4678 = vst [vmem:[#allocation2 + $0x10] sm:$0xff] %v4646
        %4679 = vst [vmem:[#allocation2 + $0x18] sm:$0xff] %v4647
        %4680 = vst [vmem:[#allocation2 + $0x20] sm:$0xff] %v4648
        %4681 = vst [vmem:[#allocation2 + $0x28] sm:$0xff] %v4649
        %4682 = vst [vmem:[#allocation2 + $0x30] sm:$0xff] %v4650
        %4683 = vst [vmem:[#allocation2 + $0x38] sm:$0xff] %v4651
        %4684 = vst [vmem:[#allocation2 + $0x40] sm:$0xff] %v4652
        %4685 = vst [vmem:[#allocation2 + $0x48] sm:$0xff] %v4653
        %4686 = vst [vmem:[#allocation2 + $0x50] sm:$0xff] %v4654
        %4687 = vst [vmem:[#allocation2 + $0x58] sm:$0xff] %v4655
        %4688 = vst [vmem:[#allocation2 + $0x60] sm:$0xff] %v4656
        %4689 = vst [vmem:[#allocation2 + $0x68] sm:$0xff] %v4657
        %4690 = vst [vmem:[#allocation2 + $0x70] sm:$0xff] %v4658
        %4691 = vst [vmem:[#allocation2 + $0x78] sm:$0xff] %v4659
        %4692 = vst [vmem:[#allocation2 + $0x80] sm:$0xff] %v4660
        %4693 = vst [vmem:[#allocation2 + $0x88] sm:$0xff] %v4661
        %4694 = vst [vmem:[#allocation2 + $0x90] sm:$0xff] %v4662
        %4695 = vst [vmem:[#allocation2 + $0x98] sm:$0xff] %v4663
        %4696 = vst [vmem:[#allocation2 + $0xa0] sm:$0xff] %v4664
        %4697 = vst [vmem:[#allocation2 + $0xa8] sm:$0xff] %v4665
        %4698 = vst [vmem:[#allocation2 + $0xb0] sm:$0xff] %v4666
        %4699 = vst [vmem:[#allocation2 + $0xb8] sm:$0xff] %v4667
        %4700 = vst [vmem:[#allocation2 + $0xc0] sm:$0xff] %v4668
        %4701 = vst [vmem:[#allocation2 + $0xc8] sm:$0xff] %v4669
        %4702 = vst [vmem:[#allocation2 + $0xd0] sm:$0xff] %v4670
        %4703 = vst [vmem:[#allocation2 + $0xd8] sm:$0xff] %v4671
        %4704 = vst [vmem:[#allocation2 + $0xe0] sm:$0xff] %v4672
        %4705 = vst [vmem:[#allocation2 + $0xe8] sm:$0xff] %v4673
        %4706 = vst [vmem:[#allocation2 + $0xf0] sm:$0xff] %v4674
        %4707 = vst [vmem:[#allocation2 + $0xf8] sm:$0x7f] %v4675
        %s4708 = scalar_lea.vmem [#allocation3], 384
        %v4709 = vld [vmem:[%s4708] sm:$0xf]
        %v4710 = vld [vmem:[%s4708 + $0x4] sm:$0xf]
        %v4711 = vld [vmem:[%s4708 + $0x8] sm:$0xf]
        %v4712 = vld [vmem:[%s4708 + $0xc] sm:$0xf]
        %v4713 = vld [vmem:[%s4708 + $0x10] sm:$0xf]
        %v4714 = vld [vmem:[%s4708 + $0x14] sm:$0xf]
        %v4715 = vld [vmem:[%s4708 + $0x18] sm:$0xf]
        %v4716 = vld [vmem:[%s4708 + $0x1c] sm:$0xf]
        %v4717 = vld [vmem:[%s4708 + $0x20] sm:$0xf]
        %v4718 = vld [vmem:[%s4708 + $0x24] sm:$0xf]
        %v4719 = vld [vmem:[%s4708 + $0x28] sm:$0xf]
        %v4720 = vld [vmem:[%s4708 + $0x2c] sm:$0xf]
        %v4721 = vld [vmem:[%s4708 + $0x30] sm:$0xf]
        %v4722 = vld [vmem:[%s4708 + $0x34] sm:$0xf]
        %v4723 = vld [vmem:[%s4708 + $0x38] sm:$0xf]
        %v4724 = vld [vmem:[%s4708 + $0x3c] sm:$0xf]
        %v4725 = vld [vmem:[#allocation2] sm:$0xff]
        %v4726 = vld [vmem:[#allocation2 + $0x8] sm:$0xff]
        %v4727 = vld [vmem:[#allocation2 + $0x10] sm:$0xff]
        %v4728 = vld [vmem:[#allocation2 + $0x18] sm:$0xff]
        %v4729 = vld [vmem:[#allocation2 + $0x20] sm:$0xff]
        %v4730 = vld [vmem:[#allocation2 + $0x28] sm:$0xff]
        %v4731 = vld [vmem:[#allocation2 + $0x30] sm:$0xff]
        %v4732 = vld [vmem:[#allocation2 + $0x38] sm:$0xff]
        %v4733 = vld [vmem:[#allocation2 + $0x40] sm:$0xff]
        %v4734 = vld [vmem:[#allocation2 + $0x48] sm:$0xff]
        %v4735 = vld [vmem:[#allocation2 + $0x50] sm:$0xff]
        %v4736 = vld [vmem:[#allocation2 + $0x58] sm:$0xff]
        %v4737 = vld [vmem:[#allocation2 + $0x60] sm:$0xff]
        %v4738 = vld [vmem:[#allocation2 + $0x68] sm:$0xff]
        %v4739 = vld [vmem:[#allocation2 + $0x70] sm:$0xff]
        %v4740 = vld [vmem:[#allocation2 + $0x78] sm:$0xff]
        %v4741 = vld [vmem:[#allocation2 + $0x80] sm:$0xff]
        %v4742 = vld [vmem:[#allocation2 + $0x88] sm:$0xff]
        %v4743 = vld [vmem:[#allocation2 + $0x90] sm:$0xff]
        %v4744 = vld [vmem:[#allocation2 + $0x98] sm:$0xff]
        %v4745 = vld [vmem:[#allocation2 + $0xa0] sm:$0xff]
        %v4746 = vld [vmem:[#allocation2 + $0xa8] sm:$0xff]
        %v4747 = vld [vmem:[#allocation2 + $0xb0] sm:$0xff]
        %v4748 = vld [vmem:[#allocation2 + $0xb8] sm:$0xff]
        %v4749 = vld [vmem:[#allocation2 + $0xc0] sm:$0xff]
        %v4750 = vld [vmem:[#allocation2 + $0xc8] sm:$0xff]
        %v4751 = vld [vmem:[#allocation2 + $0xd0] sm:$0xff]
        %v4752 = vld [vmem:[#allocation2 + $0xd8] sm:$0xff]
        %v4753 = vld [vmem:[#allocation2 + $0xe0] sm:$0xff]
        %v4754 = vld [vmem:[#allocation2 + $0xe8] sm:$0xff]
        %v4755 = vld [vmem:[#allocation2 + $0xf0] sm:$0x1]
        %v4756 = vpack.c.b16 %v3227, %v3226
        %v4757 = vpack.c.b16 %v3229, %v3228
        %v4758 = vpack.c.b16 %v3231, %v3230
        %v4759 = vpack.c.b16 %v3233, %v3232
        %v4760 = vpack.c.b16 %v3235, %v3234
        %v4761 = vpack.c.b16 %v3237, %v3236
        %v4762 = vpack.c.b16 %v3239, %v3238
        %v4763 = vpack.c.b16 %v3241, %v3240
        %v4764 = vpack.c.b16 %v3243, %v3242
        %v4765 = vpack.c.b16 %v3245, %v3244
        %v4766 = vpack.c.b16 %v3247, %v3246
        %v4767 = vpack.c.b16 %v3249, %v3248
        %v4768 = vpack.c.b16 %v3251, %v3250
        %v4769 = vpack.c.b16 %v3253, %v3252
        %v4770 = vpack.c.b16 %v4107, %v3254
        %v4771 = vpack.c.b16 %v4108, %v4108
        %v4773 = vshrl.u32 %v4756, 16
        %v4775 = vrot.slane %v4773, 3
        %v4776 = vshll.u32 %v4756, 16
        %v4778 = vrot.slane %v4776, 4
        %v4779 = vor.u32 %v4775, %v4778
        %v4781 = vshrl.u32 %v4757, 16
        %v4783 = vrot.slane %v4781, 3
        %v4784 = vshll.u32 %v4757, 16
        %v4786 = vrot.slane %v4784, 4
        %v4787 = vor.u32 %v4783, %v4786
        %v4788 = vsel %vm2000, %v4779, %v4787
        %v4790 = vshrl.u32 %v4758, 16
        %v4792 = vrot.slane %v4790, 3
        %v4793 = vshll.u32 %v4758, 16
        %v4795 = vrot.slane %v4793, 4
        %v4796 = vor.u32 %v4792, %v4795
        %v4797 = vsel %vm2000, %v4787, %v4796
        %v4799 = vshrl.u32 %v4759, 16
        %v4801 = vrot.slane %v4799, 3
        %v4802 = vshll.u32 %v4759, 16
        %v4804 = vrot.slane %v4802, 4
        %v4805 = vor.u32 %v4801, %v4804
        %v4806 = vsel %vm2000, %v4796, %v4805
        %v4808 = vshrl.u32 %v4760, 16
        %v4810 = vrot.slane %v4808, 3
        %v4811 = vshll.u32 %v4760, 16
        %v4813 = vrot.slane %v4811, 4
        %v4814 = vor.u32 %v4810, %v4813
        %v4815 = vsel %vm2000, %v4805, %v4814
        %v4817 = vshrl.u32 %v4761, 16
        %v4819 = vrot.slane %v4817, 3
        %v4820 = vshll.u32 %v4761, 16
        %v4822 = vrot.slane %v4820, 4
        %v4823 = vor.u32 %v4819, %v4822
        %v4824 = vsel %vm2000, %v4814, %v4823
        %v4826 = vshrl.u32 %v4762, 16
        %v4828 = vrot.slane %v4826, 3
        %v4829 = vshll.u32 %v4762, 16
        %v4831 = vrot.slane %v4829, 4
        %v4832 = vor.u32 %v4828, %v4831
        %v4833 = vsel %vm2000, %v4823, %v4832
        %v4835 = vshrl.u32 %v4763, 16
        %v4837 = vrot.slane %v4835, 3
        %v4838 = vshll.u32 %v4763, 16
        %v4840 = vrot.slane %v4838, 4
        %v4841 = vor.u32 %v4837, %v4840
        %v4842 = vsel %vm2000, %v4832, %v4841
        %v4844 = vshrl.u32 %v4764, 16
        %v4846 = vrot.slane %v4844, 3
        %v4847 = vshll.u32 %v4764, 16
        %v4849 = vrot.slane %v4847, 4
        %v4850 = vor.u32 %v4846, %v4849
        %v4851 = vsel %vm2000, %v4841, %v4850
        %v4853 = vshrl.u32 %v4765, 16
        %v4855 = vrot.slane %v4853, 3
        %v4856 = vshll.u32 %v4765, 16
        %v4858 = vrot.slane %v4856, 4
        %v4859 = vor.u32 %v4855, %v4858
        %v4860 = vsel %vm2000, %v4850, %v4859
        %v4862 = vshrl.u32 %v4766, 16
        %v4864 = vrot.slane %v4862, 3
        %v4865 = vshll.u32 %v4766, 16
        %v4867 = vrot.slane %v4865, 4
        %v4868 = vor.u32 %v4864, %v4867
        %v4869 = vsel %vm2000, %v4859, %v4868
        %v4871 = vshrl.u32 %v4767, 16
        %v4873 = vrot.slane %v4871, 3
        %v4874 = vshll.u32 %v4767, 16
        %v4876 = vrot.slane %v4874, 4
        %v4877 = vor.u32 %v4873, %v4876
        %v4878 = vsel %vm2000, %v4868, %v4877
        %v4880 = vshrl.u32 %v4768, 16
        %v4882 = vrot.slane %v4880, 3
        %v4883 = vshll.u32 %v4768, 16
        %v4885 = vrot.slane %v4883, 4
        %v4886 = vor.u32 %v4882, %v4885
        %v4887 = vsel %vm2000, %v4877, %v4886
        %v4889 = vshrl.u32 %v4769, 16
        %v4891 = vrot.slane %v4889, 3
        %v4892 = vshll.u32 %v4769, 16
        %v4894 = vrot.slane %v4892, 4
        %v4895 = vor.u32 %v4891, %v4894
        %v4896 = vsel %vm2000, %v4886, %v4895
        %v4898 = vshrl.u32 %v4770, 16
        %v4900 = vrot.slane %v4898, 3
        %v4901 = vshll.u32 %v4770, 16
        %v4903 = vrot.slane %v4901, 4
        %v4904 = vor.u32 %v4900, %v4903
        %v4905 = vsel %vm2000, %v4895, %v4904
        %v4907 = vshrl.u32 %v4771, 16
        %v4909 = vrot.slane %v4907, 3
        %v4910 = vshll.u32 %v4771, 16
        %v4912 = vrot.slane %v4910, 4
        %v4913 = vor.u32 %v4909, %v4912
        %v4914 = vsel %vm2000, %v4904, %v4913
        %v4947 = vunpack.c.l.b16 %v4709
        %v4948 = vunpack.c.l.b16 %v4710
        %v4949 = vunpack.c.l.b16 %v4711
        %v4950 = vunpack.c.l.b16 %v4712
        %v4951 = vunpack.c.l.b16 %v4713
        %v4952 = vunpack.c.l.b16 %v4714
        %v4953 = vunpack.c.l.b16 %v4715
        %v4954 = vunpack.c.l.b16 %v4716
        %v4955 = vunpack.c.l.b16 %v4717
        %v4956 = vunpack.c.l.b16 %v4718
        %v4957 = vunpack.c.l.b16 %v4719
        %v4958 = vunpack.c.l.b16 %v4720
        %v4959 = vunpack.c.l.b16 %v4721
        %v4960 = vunpack.c.l.b16 %v4722
        %v4961 = vunpack.c.l.b16 %v4723
        %v4962 = vunpack.c.l.b16 %v4724
        %v4963 = vpack.c.b16 %v4948, %v4947
        %v4964 = vpack.c.b16 %v4950, %v4949
        %v4965 = vpack.c.b16 %v4952, %v4951
        %v4966 = vpack.c.b16 %v4954, %v4953
        %v4967 = vpack.c.b16 %v4956, %v4955
        %v4968 = vpack.c.b16 %v4958, %v4957
        %v4969 = vpack.c.b16 %v4960, %v4959
        %v4970 = vpack.c.b16 %v4962, %v4961
        %4979 = vmatpush.bf16.msra.mxu0 %v4970
        %4980 = vmatpush.bf16.msra.mxu0 %v4969
        %4981 = vmatpush.bf16.msra.mxu0 %v4968
        %4982 = vmatpush.bf16.msra.mxu0 %v4967
        %4983 = vmatpush.bf16.msra.mxu0 %v4966
        %4984 = vmatpush.bf16.msra.mxu0 %v4965
        %4985 = vmatpush.bf16.msra.mxu0 %v4964
        %4986 = vmatpush.bf16.msra.mxu0 %v4963
        %4987 = vmatmul.bf16.gmra.mxu0 %v4788
        %v4988 = vpop.f32.mrf.mxu0
        %v4989 = vadd.f32 0.0, %v4988
        %v4990 = vpop.f32.mrf.mxu0
        %v4991 = vadd.f32 0.0, %v4990
        %4992 = vmatmul.bf16.gmra.mxu0 %v4797
        %v4993 = vpop.f32.mrf.mxu0
        %v4994 = vadd.f32 0.0, %v4993
        %v4995 = vpop.f32.mrf.mxu0
        %v4996 = vadd.f32 0.0, %v4995
        %4997 = vmatmul.bf16.gmra.mxu0 %v4806
        %v4998 = vpop.f32.mrf.mxu0
        %v4999 = vadd.f32 0.0, %v4998
        %v5000 = vpop.f32.mrf.mxu0
        %v5001 = vadd.f32 0.0, %v5000
        %5002 = vmatmul.bf16.gmra.mxu0 %v4815
        %v5003 = vpop.f32.mrf.mxu0
        %v5004 = vadd.f32 0.0, %v5003
        %v5005 = vpop.f32.mrf.mxu0
        %v5006 = vadd.f32 0.0, %v5005
        %5007 = vmatmul.bf16.gmra.mxu0 %v4824
        %v5008 = vpop.f32.mrf.mxu0
        %v5009 = vadd.f32 0.0, %v5008
        %v5010 = vpop.f32.mrf.mxu0
        %v5011 = vadd.f32 0.0, %v5010
        %5012 = vmatmul.bf16.gmra.mxu0 %v4833
        %v5013 = vpop.f32.mrf.mxu0
        %v5014 = vadd.f32 0.0, %v5013
        %v5015 = vpop.f32.mrf.mxu0
        %v5016 = vadd.f32 0.0, %v5015
        %5017 = vmatmul.bf16.gmra.mxu0 %v4842
        %v5018 = vpop.f32.mrf.mxu0
        %v5019 = vadd.f32 0.0, %v5018
        %v5020 = vpop.f32.mrf.mxu0
        %v5021 = vadd.f32 0.0, %v5020
        %5022 = vmatmul.bf16.gmra.mxu0 %v4851
        %v5023 = vpop.f32.mrf.mxu0
        %v5024 = vadd.f32 0.0, %v5023
        %v5025 = vpop.f32.mrf.mxu0
        %v5026 = vadd.f32 0.0, %v5025
        %5027 = vmatmul.bf16.gmra.mxu0 %v4860
        %v5028 = vpop.f32.mrf.mxu0
        %v5029 = vadd.f32 0.0, %v5028
        %v5030 = vpop.f32.mrf.mxu0
        %v5031 = vadd.f32 0.0, %v5030
        %5032 = vmatmul.bf16.gmra.mxu0 %v4869
        %v5033 = vpop.f32.mrf.mxu0
        %v5034 = vadd.f32 0.0, %v5033
        %v5035 = vpop.f32.mrf.mxu0
        %v5036 = vadd.f32 0.0, %v5035
        %5037 = vmatmul.bf16.gmra.mxu0 %v4878
        %v5038 = vpop.f32.mrf.mxu0
        %v5039 = vadd.f32 0.0, %v5038
        %v5040 = vpop.f32.mrf.mxu0
        %v5041 = vadd.f32 0.0, %v5040
        %5042 = vmatmul.bf16.gmra.mxu0 %v4887
        %v5043 = vpop.f32.mrf.mxu0
        %v5044 = vadd.f32 0.0, %v5043
        %v5045 = vpop.f32.mrf.mxu0
        %v5046 = vadd.f32 0.0, %v5045
        %5047 = vmatmul.bf16.gmra.mxu0 %v4896
        %v5048 = vpop.f32.mrf.mxu0
        %v5049 = vadd.f32 0.0, %v5048
        %v5050 = vpop.f32.mrf.mxu0
        %v5051 = vadd.f32 0.0, %v5050
        %5052 = vmatmul.bf16.gmra.mxu0 %v4905
        %v5053 = vpop.f32.mrf.mxu0
        %v5054 = vadd.f32 0.0, %v5053
        %v5055 = vpop.f32.mrf.mxu0
        %v5056 = vadd.f32 0.0, %v5055
        %5057 = vmatmul.bf16.gmra.mxu0 %v4914
        %v5058 = vpop.f32.mrf.mxu0
        %v5059 = vadd.f32 0.0, %v5058
        %v5060 = vpop.f32.mrf.mxu0
        %v5061 = vadd.f32 0.0, %v5060
        %5062 = vmatmul.bf16.gmra.mxu0 %v4909
        %v5063 = vpop.f32.mrf.mxu0
        %v5064 = vadd.f32 0.0, %v5063
        %v5065 = vpop.f32.mrf.mxu0
        %5066 = vdwg.mxu0
        %v5067 = vadd.f32 %v4725, %v4989
        %v5068 = vadd.f32 %v4726, %v4991
        %v5069 = vadd.f32 %v4727, %v4994
        %v5070 = vadd.f32 %v4728, %v4996
        %v5071 = vadd.f32 %v4729, %v4999
        %v5072 = vadd.f32 %v4730, %v5001
        %v5073 = vadd.f32 %v4731, %v5004
        %v5074 = vadd.f32 %v4732, %v5006
        %v5075 = vadd.f32 %v4733, %v5009
        %v5076 = vadd.f32 %v4734, %v5011
        %v5077 = vadd.f32 %v4735, %v5014
        %v5078 = vadd.f32 %v4736, %v5016
        %v5079 = vadd.f32 %v4737, %v5019
        %v5080 = vadd.f32 %v4738, %v5021
        %v5081 = vadd.f32 %v4739, %v5024
        %v5082 = vadd.f32 %v4740, %v5026
        %v5083 = vadd.f32 %v4741, %v5029
        %v5084 = vadd.f32 %v4742, %v5031
        %v5085 = vadd.f32 %v4743, %v5034
        %v5086 = vadd.f32 %v4744, %v5036
        %v5087 = vadd.f32 %v4745, %v5039
        %v5088 = vadd.f32 %v4746, %v5041
        %v5089 = vadd.f32 %v4747, %v5044
        %v5090 = vadd.f32 %v4748, %v5046
        %v5091 = vadd.f32 %v4749, %v5049
        %v5092 = vadd.f32 %v4750, %v5051
        %v5093 = vadd.f32 %v4751, %v5054
        %v5094 = vadd.f32 %v4752, %v5056
        %v5095 = vadd.f32 %v4753, %v5059
        %v5096 = vadd.f32 %v4754, %v5061
        %v5097 = vadd.f32 %v4755, %v5064
        %5098 = vst [vmem:[#allocation2] sm:$0xff] %v5067
        %5099 = vst [vmem:[#allocation2 + $0x8] sm:$0xff] %v5068
        %5100 = vst [vmem:[#allocation2 + $0x10] sm:$0xff] %v5069
        %5101 = vst [vmem:[#allocation2 + $0x18] sm:$0xff] %v5070
        %5102 = vst [vmem:[#allocation2 + $0x20] sm:$0xff] %v5071
        %5103 = vst [vmem:[#allocation2 + $0x28] sm:$0xff] %v5072
        %5104 = vst [vmem:[#allocation2 + $0x30] sm:$0xff] %v5073
        %5105 = vst [vmem:[#allocation2 + $0x38] sm:$0xff] %v5074
        %5106 = vst [vmem:[#allocation2 + $0x40] sm:$0xff] %v5075
        %5107 = vst [vmem:[#allocation2 + $0x48] sm:$0xff] %v5076
        %5108 = vst [vmem:[#allocation2 + $0x50] sm:$0xff] %v5077
        %5109 = vst [vmem:[#allocation2 + $0x58] sm:$0xff] %v5078
        %5110 = vst [vmem:[#allocation2 + $0x60] sm:$0xff] %v5079
        %5111 = vst [vmem:[#allocation2 + $0x68] sm:$0xff] %v5080
        %5112 = vst [vmem:[#allocation2 + $0x70] sm:$0xff] %v5081
        %5113 = vst [vmem:[#allocation2 + $0x78] sm:$0xff] %v5082
        %5114 = vst [vmem:[#allocation2 + $0x80] sm:$0xff] %v5083
        %5115 = vst [vmem:[#allocation2 + $0x88] sm:$0xff] %v5084
        %5116 = vst [vmem:[#allocation2 + $0x90] sm:$0xff] %v5085
        %5117 = vst [vmem:[#allocation2 + $0x98] sm:$0xff] %v5086
        %5118 = vst [vmem:[#allocation2 + $0xa0] sm:$0xff] %v5087
        %5119 = vst [vmem:[#allocation2 + $0xa8] sm:$0xff] %v5088
        %5120 = vst [vmem:[#allocation2 + $0xb0] sm:$0xff] %v5089
        %5121 = vst [vmem:[#allocation2 + $0xb8] sm:$0xff] %v5090
        %5122 = vst [vmem:[#allocation2 + $0xc0] sm:$0xff] %v5091
        %5123 = vst [vmem:[#allocation2 + $0xc8] sm:$0xff] %v5092
        %5124 = vst [vmem:[#allocation2 + $0xd0] sm:$0xff] %v5093
        %5125 = vst [vmem:[#allocation2 + $0xd8] sm:$0xff] %v5094
        %5126 = vst [vmem:[#allocation2 + $0xe0] sm:$0xff] %v5095
        %5127 = vst [vmem:[#allocation2 + $0xe8] sm:$0xff] %v5096
        %5128 = vst [vmem:[#allocation2 + $0xf0] sm:$0x1] %v5097
        %s5129 = scalar_lea.vmem [#allocation3], 448
        %v5130 = vld [vmem:[%s5129] sm:$0xf]
        %v5131 = vld [vmem:[%s5129 + $0x4] sm:$0xf]
        %v5132 = vld [vmem:[%s5129 + $0x8] sm:$0xf]
        %v5133 = vld [vmem:[%s5129 + $0xc] sm:$0xf]
        %v5134 = vld [vmem:[%s5129 + $0x10] sm:$0xf]
        %v5135 = vld [vmem:[%s5129 + $0x14] sm:$0xf]
        %v5136 = vld [vmem:[%s5129 + $0x18] sm:$0xf]
        %v5137 = vld [vmem:[%s5129 + $0x1c] sm:$0xf]
        %v5138 = vld [vmem:[%s5129 + $0x20] sm:$0xf]
        %v5139 = vld [vmem:[%s5129 + $0x24] sm:$0xf]
        %v5140 = vld [vmem:[%s5129 + $0x28] sm:$0xf]
        %v5141 = vld [vmem:[%s5129 + $0x2c] sm:$0xf]
        %v5142 = vld [vmem:[%s5129 + $0x30] sm:$0xf]
        %v5143 = vld [vmem:[%s5129 + $0x34] sm:$0xf]
        %v5144 = vld [vmem:[%s5129 + $0x38] sm:$0xf]
        %v5145 = vld [vmem:[%s5129 + $0x3c] sm:$0xf]
        %v5146 = vld [vmem:[#allocation2] sm:$0xff]
        %v5147 = vld [vmem:[#allocation2 + $0x8] sm:$0xff]
        %v5148 = vld [vmem:[#allocation2 + $0x10] sm:$0xff]
        %v5149 = vld [vmem:[#allocation2 + $0x18] sm:$0xff]
        %v5150 = vld [vmem:[#allocation2 + $0x20] sm:$0xff]
        %v5151 = vld [vmem:[#allocation2 + $0x28] sm:$0xff]
        %v5152 = vld [vmem:[#allocation2 + $0x30] sm:$0xff]
        %v5153 = vld [vmem:[#allocation2 + $0x38] sm:$0xff]
        %v5154 = vld [vmem:[#allocation2 + $0x40] sm:$0xff]
        %v5155 = vld [vmem:[#allocation2 + $0x48] sm:$0xff]
        %v5156 = vld [vmem:[#allocation2 + $0x50] sm:$0xff]
        %v5157 = vld [vmem:[#allocation2 + $0x58] sm:$0xff]
        %v5158 = vld [vmem:[#allocation2 + $0x60] sm:$0xff]
        %v5159 = vld [vmem:[#allocation2 + $0x68] sm:$0xff]
        %v5160 = vld [vmem:[#allocation2 + $0x70] sm:$0xff]
        %v5161 = vld [vmem:[#allocation2 + $0x78] sm:$0xff]
        %v5162 = vld [vmem:[#allocation2 + $0x80] sm:$0xff]
        %v5163 = vld [vmem:[#allocation2 + $0x88] sm:$0xff]
        %v5164 = vld [vmem:[#allocation2 + $0x90] sm:$0xff]
        %v5165 = vld [vmem:[#allocation2 + $0x98] sm:$0xff]
        %v5166 = vld [vmem:[#allocation2 + $0xa0] sm:$0xff]
        %v5167 = vld [vmem:[#allocation2 + $0xa8] sm:$0xff]
        %v5168 = vld [vmem:[#allocation2 + $0xb0] sm:$0xff]
        %v5169 = vld [vmem:[#allocation2 + $0xb8] sm:$0xff]
        %v5170 = vld [vmem:[#allocation2 + $0xc0] sm:$0xff]
        %v5171 = vld [vmem:[#allocation2 + $0xc8] sm:$0xff]
        %v5172 = vld [vmem:[#allocation2 + $0xd0] sm:$0xff]
        %v5173 = vld [vmem:[#allocation2 + $0xd8] sm:$0xff]
        %v5174 = vld [vmem:[#allocation2 + $0xe0] sm:$0xff]
        %v5175 = vld [vmem:[#allocation2 + $0xe8] sm:$0xff]
        %v5192 = vunpack.c.l.b16 %v5130
        %v5193 = vunpack.c.l.b16 %v5131
        %v5194 = vunpack.c.l.b16 %v5132
        %v5195 = vunpack.c.l.b16 %v5133
        %v5196 = vunpack.c.l.b16 %v5134
        %v5197 = vunpack.c.l.b16 %v5135
        %v5198 = vunpack.c.l.b16 %v5136
        %v5199 = vunpack.c.l.b16 %v5137
        %v5200 = vunpack.c.l.b16 %v5138
        %v5201 = vunpack.c.l.b16 %v5139
        %v5202 = vunpack.c.l.b16 %v5140
        %v5203 = vunpack.c.l.b16 %v5141
        %v5204 = vunpack.c.l.b16 %v5142
        %v5205 = vunpack.c.l.b16 %v5143
        %v5206 = vunpack.c.l.b16 %v5144
        %v5207 = vunpack.c.l.b16 %v5145
        %v5208 = vpack.c.b16 %v5193, %v5192
        %v5209 = vpack.c.b16 %v5195, %v5194
        %v5210 = vpack.c.b16 %v5197, %v5196
        %v5211 = vpack.c.b16 %v5199, %v5198
        %v5212 = vpack.c.b16 %v5201, %v5200
        %v5213 = vpack.c.b16 %v5203, %v5202
        %v5214 = vpack.c.b16 %v5205, %v5204
        %v5215 = vpack.c.b16 %v5207, %v5206
        %5224 = vmatpush.bf16.msra.mxu0 %v5215
        %5225 = vmatpush.bf16.msra.mxu0 %v5214
        %5226 = vmatpush.bf16.msra.mxu0 %v5213
        %5227 = vmatpush.bf16.msra.mxu0 %v5212
        %5228 = vmatpush.bf16.msra.mxu0 %v5211
        %5229 = vmatpush.bf16.msra.mxu0 %v5210
        %5230 = vmatpush.bf16.msra.mxu0 %v5209
        %5231 = vmatpush.bf16.msra.mxu0 %v5208
        %5232 = vmatmul.bf16.gmra.mxu0 %v2949
        %v5233 = vpop.f32.mrf.mxu0
        %v5234 = vadd.f32 0.0, %v5233
        %v5235 = vpop.f32.mrf.mxu0
        %v5236 = vadd.f32 0.0, %v5235
        %5237 = vmatmul.bf16.gmra.mxu0 %v2950
        %v5238 = vpop.f32.mrf.mxu0
        %v5239 = vadd.f32 0.0, %v5238
        %v5240 = vpop.f32.mrf.mxu0
        %v5241 = vadd.f32 0.0, %v5240
        %5242 = vmatmul.bf16.gmra.mxu0 %v2951
        %v5243 = vpop.f32.mrf.mxu0
        %v5244 = vadd.f32 0.0, %v5243
        %v5245 = vpop.f32.mrf.mxu0
        %v5246 = vadd.f32 0.0, %v5245
        %5247 = vmatmul.bf16.gmra.mxu0 %v2952
        %v5248 = vpop.f32.mrf.mxu0
        %v5249 = vadd.f32 0.0, %v5248
        %v5250 = vpop.f32.mrf.mxu0
        %v5251 = vadd.f32 0.0, %v5250
        %5252 = vmatmul.bf16.gmra.mxu0 %v2953
        %v5253 = vpop.f32.mrf.mxu0
        %v5254 = vadd.f32 0.0, %v5253
        %v5255 = vpop.f32.mrf.mxu0
        %v5256 = vadd.f32 0.0, %v5255
        %5257 = vmatmul.bf16.gmra.mxu0 %v2954
        %v5258 = vpop.f32.mrf.mxu0
        %v5259 = vadd.f32 0.0, %v5258
        %v5260 = vpop.f32.mrf.mxu0
        %v5261 = vadd.f32 0.0, %v5260
        %5262 = vmatmul.bf16.gmra.mxu0 %v2955
        %v5263 = vpop.f32.mrf.mxu0
        %v5264 = vadd.f32 0.0, %v5263
        %v5265 = vpop.f32.mrf.mxu0
        %v5266 = vadd.f32 0.0, %v5265
        %5267 = vmatmul.bf16.gmra.mxu0 %v2956
        %v5268 = vpop.f32.mrf.mxu0
        %v5269 = vadd.f32 0.0, %v5268
        %v5270 = vpop.f32.mrf.mxu0
        %v5271 = vadd.f32 0.0, %v5270
        %5272 = vmatmul.bf16.gmra.mxu0 %v2957
        %v5273 = vpop.f32.mrf.mxu0
        %v5274 = vadd.f32 0.0, %v5273
        %v5275 = vpop.f32.mrf.mxu0
        %v5276 = vadd.f32 0.0, %v5275
        %5277 = vmatmul.bf16.gmra.mxu0 %v2958
        %v5278 = vpop.f32.mrf.mxu0
        %v5279 = vadd.f32 0.0, %v5278
        %v5280 = vpop.f32.mrf.mxu0
        %v5281 = vadd.f32 0.0, %v5280
        %5282 = vmatmul.bf16.gmra.mxu0 %v2959
        %v5283 = vpop.f32.mrf.mxu0
        %v5284 = vadd.f32 0.0, %v5283
        %v5285 = vpop.f32.mrf.mxu0
        %v5286 = vadd.f32 0.0, %v5285
        %5287 = vmatmul.bf16.gmra.mxu0 %v2960
        %v5288 = vpop.f32.mrf.mxu0
        %v5289 = vadd.f32 0.0, %v5288
        %v5290 = vpop.f32.mrf.mxu0
        %v5291 = vadd.f32 0.0, %v5290
        %5292 = vmatmul.bf16.gmra.mxu0 %v2961
        %v5293 = vpop.f32.mrf.mxu0
        %v5294 = vadd.f32 0.0, %v5293
        %v5295 = vpop.f32.mrf.mxu0
        %v5296 = vadd.f32 0.0, %v5295
        %5297 = vmatmul.bf16.gmra.mxu0 %v2962
        %v5298 = vpop.f32.mrf.mxu0
        %v5299 = vadd.f32 0.0, %v5298
        %v5300 = vpop.f32.mrf.mxu0
        %v5301 = vadd.f32 0.0, %v5300
        %5302 = vmatmul.bf16.gmra.mxu0 %v2963
        %v5303 = vpop.f32.mrf.mxu0
        %v5304 = vadd.f32 0.0, %v5303
        %v5305 = vpop.f32.mrf.mxu0
        %v5306 = vadd.f32 0.0, %v5305
        %5307 = vdwg.mxu0
        %v5308 = vadd.f32 %v5146, %v5234
        %v5309 = vadd.f32 %v5147, %v5236
        %v5310 = vadd.f32 %v5148, %v5239
        %v5311 = vadd.f32 %v5149, %v5241
        %v5312 = vadd.f32 %v5150, %v5244
        %v5313 = vadd.f32 %v5151, %v5246
        %v5314 = vadd.f32 %v5152, %v5249
        %v5315 = vadd.f32 %v5153, %v5251
        %v5316 = vadd.f32 %v5154, %v5254
        %v5317 = vadd.f32 %v5155, %v5256
        %v5318 = vadd.f32 %v5156, %v5259
        %v5319 = vadd.f32 %v5157, %v5261
        %v5320 = vadd.f32 %v5158, %v5264
        %v5321 = vadd.f32 %v5159, %v5266
        %v5322 = vadd.f32 %v5160, %v5269
        %v5323 = vadd.f32 %v5161, %v5271
        %v5324 = vadd.f32 %v5162, %v5274
        %v5325 = vadd.f32 %v5163, %v5276
        %v5326 = vadd.f32 %v5164, %v5279
        %v5327 = vadd.f32 %v5165, %v5281
        %v5328 = vadd.f32 %v5166, %v5284
        %v5329 = vadd.f32 %v5167, %v5286
        %v5330 = vadd.f32 %v5168, %v5289
        %v5331 = vadd.f32 %v5169, %v5291
        %v5332 = vadd.f32 %v5170, %v5294
        %v5333 = vadd.f32 %v5171, %v5296
        %v5334 = vadd.f32 %v5172, %v5299
        %v5335 = vadd.f32 %v5173, %v5301
        %v5336 = vadd.f32 %v5174, %v5304
        %v5337 = vadd.f32 %v5175, %v5306
        %5338 = vst [vmem:[#allocation2] sm:$0xff] %v5308
        %5339 = vst [vmem:[#allocation2 + $0x8] sm:$0xff] %v5309
        %5340 = vst [vmem:[#allocation2 + $0x10] sm:$0xff] %v5310
        %5341 = vst [vmem:[#allocation2 + $0x18] sm:$0xff] %v5311
        %5342 = vst [vmem:[#allocation2 + $0x20] sm:$0xff] %v5312
        %5343 = vst [vmem:[#allocation2 + $0x28] sm:$0xff] %v5313
        %5344 = vst [vmem:[#allocation2 + $0x30] sm:$0xff] %v5314
        %5345 = vst [vmem:[#allocation2 + $0x38] sm:$0xff] %v5315
        %5346 = vst [vmem:[#allocation2 + $0x40] sm:$0xff] %v5316
        %5347 = vst [vmem:[#allocation2 + $0x48] sm:$0xff] %v5317
        %5348 = vst [vmem:[#allocation2 + $0x50] sm:$0xff] %v5318
        %5349 = vst [vmem:[#allocation2 + $0x58] sm:$0xff] %v5319
        %5350 = vst [vmem:[#allocation2 + $0x60] sm:$0xff] %v5320
        %5351 = vst [vmem:[#allocation2 + $0x68] sm:$0xff] %v5321
        %5352 = vst [vmem:[#allocation2 + $0x70] sm:$0xff] %v5322
        %5353 = vst [vmem:[#allocation2 + $0x78] sm:$0xff] %v5323
        %5354 = vst [vmem:[#allocation2 + $0x80] sm:$0xff] %v5324
        %5355 = vst [vmem:[#allocation2 + $0x88] sm:$0xff] %v5325
        %5356 = vst [vmem:[#allocation2 + $0x90] sm:$0xff] %v5326
        %5357 = vst [vmem:[#allocation2 + $0x98] sm:$0xff] %v5327
        %5358 = vst [vmem:[#allocation2 + $0xa0] sm:$0xff] %v5328
        %5359 = vst [vmem:[#allocation2 + $0xa8] sm:$0xff] %v5329
        %5360 = vst [vmem:[#allocation2 + $0xb0] sm:$0xff] %v5330
        %5361 = vst [vmem:[#allocation2 + $0xb8] sm:$0xff] %v5331
        %5362 = vst [vmem:[#allocation2 + $0xc0] sm:$0xff] %v5332
        %5363 = vst [vmem:[#allocation2 + $0xc8] sm:$0xff] %v5333
        %5364 = vst [vmem:[#allocation2 + $0xd0] sm:$0xff] %v5334
        %5365 = vst [vmem:[#allocation2 + $0xd8] sm:$0xff] %v5335
        %5366 = vst [vmem:[#allocation2 + $0xe0] sm:$0xff] %v5336
        %5367 = vst [vmem:[#allocation2 + $0xe8] sm:$0xff] %v5337
        %s5368 = scalar_lea.vmem [#allocation3], 512
        %v5369 = vld [vmem:[%s5368] sm:$0xf]
        %v5370 = vld [vmem:[%s5368 + $0x4] sm:$0xf]
        %v5371 = vld [vmem:[%s5368 + $0x8] sm:$0xf]
        %v5372 = vld [vmem:[%s5368 + $0xc] sm:$0xf]
        %v5373 = vld [vmem:[%s5368 + $0x10] sm:$0xf]
        %v5374 = vld [vmem:[%s5368 + $0x14] sm:$0xf]
        %v5375 = vld [vmem:[%s5368 + $0x18] sm:$0xf]
        %v5376 = vld [vmem:[%s5368 + $0x1c] sm:$0xf]
        %v5377 = vld [vmem:[%s5368 + $0x20] sm:$0xf]
        %v5378 = vld [vmem:[%s5368 + $0x24] sm:$0xf]
        %v5379 = vld [vmem:[%s5368 + $0x28] sm:$0xf]
        %v5380 = vld [vmem:[%s5368 + $0x2c] sm:$0xf]
        %v5381 = vld [vmem:[%s5368 + $0x30] sm:$0xf]
        %v5382 = vld [vmem:[%s5368 + $0x34] sm:$0xf]
        %v5383 = vld [vmem:[%s5368 + $0x38] sm:$0xf]
        %v5384 = vld [vmem:[%s5368 + $0x3c] sm:$0xf]
        %v5385 = vld [vmem:[#allocation2] sm:$0xff]
        %v5386 = vld [vmem:[#allocation2 + $0x8] sm:$0xff]
        %v5387 = vld [vmem:[#allocation2 + $0x10] sm:$0xff]
        %v5388 = vld [vmem:[#allocation2 + $0x18] sm:$0xff]
        %v5389 = vld [vmem:[#allocation2 + $0x20] sm:$0xff]
        %v5390 = vld [vmem:[#allocation2 + $0x28] sm:$0xff]
        %v5391 = vld [vmem:[#allocation2 + $0x30] sm:$0xff]
        %v5392 = vld [vmem:[#allocation2 + $0x38] sm:$0xff]
        %v5393 = vld [vmem:[#allocation2 + $0x40] sm:$0xff]
        %v5394 = vld [vmem:[#allocation2 + $0x48] sm:$0xff]
        %v5395 = vld [vmem:[#allocation2 + $0x50] sm:$0xff]
        %v5396 = vld [vmem:[#allocation2 + $0x58] sm:$0xff]
        %v5397 = vld [vmem:[#allocation2 + $0x60] sm:$0xff]
        %v5398 = vld [vmem:[#allocation2 + $0x68] sm:$0xff]
        %v5399 = vld [vmem:[#allocation2 + $0x70] sm:$0xff]
        %v5400 = vld [vmem:[#allocation2 + $0x78] sm:$0xff]
        %v5401 = vld [vmem:[#allocation2 + $0x80] sm:$0xff]
        %v5402 = vld [vmem:[#allocation2 + $0x88] sm:$0xff]
        %v5403 = vld [vmem:[#allocation2 + $0x90] sm:$0xff]
        %v5404 = vld [vmem:[#allocation2 + $0x98] sm:$0xff]
        %v5405 = vld [vmem:[#allocation2 + $0xa0] sm:$0xff]
        %v5406 = vld [vmem:[#allocation2 + $0xa8] sm:$0xff]
        %v5407 = vld [vmem:[#allocation2 + $0xb0] sm:$0xff]
        %v5408 = vld [vmem:[#allocation2 + $0xb8] sm:$0xff]
        %v5409 = vld [vmem:[#allocation2 + $0xc0] sm:$0xff]
        %v5410 = vld [vmem:[#allocation2 + $0xc8] sm:$0xff]
        %v5411 = vld [vmem:[#allocation2 + $0xd0] sm:$0xff]
        %v5412 = vld [vmem:[#allocation2 + $0xd8] sm:$0xff]
        %v5413 = vld [vmem:[#allocation2 + $0xe0] sm:$0xff]
        %v5414 = vld [vmem:[#allocation2 + $0xe8] sm:$0x7f]
        %v5431 = vunpack.c.l.b16 %v5369
        %v5432 = vunpack.c.l.b16 %v5370
        %v5433 = vunpack.c.l.b16 %v5371
        %v5434 = vunpack.c.l.b16 %v5372
        %v5435 = vunpack.c.l.b16 %v5373
        %v5436 = vunpack.c.l.b16 %v5374
        %v5437 = vunpack.c.l.b16 %v5375
        %v5438 = vunpack.c.l.b16 %v5376
        %v5439 = vunpack.c.l.b16 %v5377
        %v5440 = vunpack.c.l.b16 %v5378
        %v5441 = vunpack.c.l.b16 %v5379
        %v5442 = vunpack.c.l.b16 %v5380
        %v5443 = vunpack.c.l.b16 %v5381
        %v5444 = vunpack.c.l.b16 %v5382
        %v5445 = vunpack.c.l.b16 %v5383
        %v5446 = vunpack.c.l.b16 %v5384
        %v5447 = vpack.c.b16 %v5432, %v5431
        %v5448 = vpack.c.b16 %v5434, %v5433
        %v5449 = vpack.c.b16 %v5436, %v5435
        %v5450 = vpack.c.b16 %v5438, %v5437
        %v5451 = vpack.c.b16 %v5440, %v5439
        %v5452 = vpack.c.b16 %v5442, %v5441
        %v5453 = vpack.c.b16 %v5444, %v5443
        %v5454 = vpack.c.b16 %v5446, %v5445
        %5463 = vmatpush.bf16.msra.mxu0 %v5454
        %5464 = vmatpush.bf16.msra.mxu0 %v5453
        %5465 = vmatpush.bf16.msra.mxu0 %v5452
        %5466 = vmatpush.bf16.msra.mxu0 %v5451
        %5467 = vmatpush.bf16.msra.mxu0 %v5450
        %5468 = vmatpush.bf16.msra.mxu0 %v5449
        %5469 = vmatpush.bf16.msra.mxu0 %v5448
        %5470 = vmatpush.bf16.msra.mxu0 %v5447
        %5471 = vmatmul.bf16.gmra.mxu0 %v4383
        %v5472 = vpop.f32.mrf.mxu0
        %v5473 = vadd.f32 0.0, %v5472
        %v5474 = vpop.f32.mrf.mxu0
        %v5475 = vadd.f32 0.0, %v5474
        %5476 = vmatmul.bf16.gmra.mxu0 %v4391
        %v5477 = vpop.f32.mrf.mxu0
        %v5478 = vadd.f32 0.0, %v5477
        %v5479 = vpop.f32.mrf.mxu0
        %v5480 = vadd.f32 0.0, %v5479
        %5481 = vmatmul.bf16.gmra.mxu0 %v4399
        %v5482 = vpop.f32.mrf.mxu0
        %v5483 = vadd.f32 0.0, %v5482
        %v5484 = vpop.f32.mrf.mxu0
        %v5485 = vadd.f32 0.0, %v5484
        %5486 = vmatmul.bf16.gmra.mxu0 %v4407
        %v5487 = vpop.f32.mrf.mxu0
        %v5488 = vadd.f32 0.0, %v5487
        %v5489 = vpop.f32.mrf.mxu0
        %v5490 = vadd.f32 0.0, %v5489
        %5491 = vmatmul.bf16.gmra.mxu0 %v4415
        %v5492 = vpop.f32.mrf.mxu0
        %v5493 = vadd.f32 0.0, %v5492
        %v5494 = vpop.f32.mrf.mxu0
        %v5495 = vadd.f32 0.0, %v5494
        %5496 = vmatmul.bf16.gmra.mxu0 %v4423
        %v5497 = vpop.f32.mrf.mxu0
        %v5498 = vadd.f32 0.0, %v5497
        %v5499 = vpop.f32.mrf.mxu0
        %v5500 = vadd.f32 0.0, %v5499
        %5501 = vmatmul.bf16.gmra.mxu0 %v4431
        %v5502 = vpop.f32.mrf.mxu0
        %v5503 = vadd.f32 0.0, %v5502
        %v5504 = vpop.f32.mrf.mxu0
        %v5505 = vadd.f32 0.0, %v5504
        %5506 = vmatmul.bf16.gmra.mxu0 %v4439
        %v5507 = vpop.f32.mrf.mxu0
        %v5508 = vadd.f32 0.0, %v5507
        %v5509 = vpop.f32.mrf.mxu0
        %v5510 = vadd.f32 0.0, %v5509
        %5511 = vmatmul.bf16.gmra.mxu0 %v4447
        %v5512 = vpop.f32.mrf.mxu0
        %v5513 = vadd.f32 0.0, %v5512
        %v5514 = vpop.f32.mrf.mxu0
        %v5515 = vadd.f32 0.0, %v5514
        %5516 = vmatmul.bf16.gmra.mxu0 %v4455
        %v5517 = vpop.f32.mrf.mxu0
        %v5518 = vadd.f32 0.0, %v5517
        %v5519 = vpop.f32.mrf.mxu0
        %v5520 = vadd.f32 0.0, %v5519
        %5521 = vmatmul.bf16.gmra.mxu0 %v4463
        %v5522 = vpop.f32.mrf.mxu0
        %v5523 = vadd.f32 0.0, %v5522
        %v5524 = vpop.f32.mrf.mxu0
        %v5525 = vadd.f32 0.0, %v5524
        %5526 = vmatmul.bf16.gmra.mxu0 %v4471
        %v5527 = vpop.f32.mrf.mxu0
        %v5528 = vadd.f32 0.0, %v5527
        %v5529 = vpop.f32.mrf.mxu0
        %v5530 = vadd.f32 0.0, %v5529
        %5531 = vmatmul.bf16.gmra.mxu0 %v4479
        %v5532 = vpop.f32.mrf.mxu0
        %v5533 = vadd.f32 0.0, %v5532
        %v5534 = vpop.f32.mrf.mxu0
        %v5535 = vadd.f32 0.0, %v5534
        %5536 = vmatmul.bf16.gmra.mxu0 %v4487
        %v5537 = vpop.f32.mrf.mxu0
        %v5538 = vadd.f32 0.0, %v5537
        %v5539 = vpop.f32.mrf.mxu0
        %v5540 = vadd.f32 0.0, %v5539
        %5541 = vmatmul.bf16.gmra.mxu0 %v4490
        %v5542 = vpop.f32.mrf.mxu0
        %v5543 = vadd.f32 0.0, %v5542
        %v5544 = vpop.f32.mrf.mxu0
        %v5545 = vadd.f32 0.0, %v5544
        %5546 = vdwg.mxu0
        %v5547 = vadd.f32 %v5385, %v5473
        %v5548 = vadd.f32 %v5386, %v5475
        %v5549 = vadd.f32 %v5387, %v5478
        %v5550 = vadd.f32 %v5388, %v5480
        %v5551 = vadd.f32 %v5389, %v5483
        %v5552 = vadd.f32 %v5390, %v5485
        %v5553 = vadd.f32 %v5391, %v5488
        %v5554 = vadd.f32 %v5392, %v5490
        %v5555 = vadd.f32 %v5393, %v5493
        %v5556 = vadd.f32 %v5394, %v5495
        %v5557 = vadd.f32 %v5395, %v5498
        %v5558 = vadd.f32 %v5396, %v5500
        %v5559 = vadd.f32 %v5397, %v5503
        %v5560 = vadd.f32 %v5398, %v5505
        %v5561 = vadd.f32 %v5399, %v5508
        %v5562 = vadd.f32 %v5400, %v5510
        %v5563 = vadd.f32 %v5401, %v5513
        %v5564 = vadd.f32 %v5402, %v5515
        %v5565 = vadd.f32 %v5403, %v5518
        %v5566 = vadd.f32 %v5404, %v5520
        %v5567 = vadd.f32 %v5405, %v5523
        %v5568 = vadd.f32 %v5406, %v5525
        %v5569 = vadd.f32 %v5407, %v5528
        %v5570 = vadd.f32 %v5408, %v5530
        %v5571 = vadd.f32 %v5409, %v5533
        %v5572 = vadd.f32 %v5410, %v5535
        %v5573 = vadd.f32 %v5411, %v5538
        %v5574 = vadd.f32 %v5412, %v5540
        %v5575 = vadd.f32 %v5413, %v5543
        %v5576 = vadd.f32 %v5414, %v5545
        %5577 = vst [vmem:[#allocation2] sm:$0xff] %v5547
        %5578 = vst [vmem:[#allocation2 + $0x8] sm:$0xff] %v5548
        %5579 = vst [vmem:[#allocation2 + $0x10] sm:$0xff] %v5549
        %5580 = vst [vmem:[#allocation2 + $0x18] sm:$0xff] %v5550
        %5581 = vst [vmem:[#allocation2 + $0x20] sm:$0xff] %v5551
        %5582 = vst [vmem:[#allocation2 + $0x28] sm:$0xff] %v5552
        %5583 = vst [vmem:[#allocation2 + $0x30] sm:$0xff] %v5553
        %5584 = vst [vmem:[#allocation2 + $0x38] sm:$0xff] %v5554
        %5585 = vst [vmem:[#allocation2 + $0x40] sm:$0xff] %v5555
        %5586 = vst [vmem:[#allocation2 + $0x48] sm:$0xff] %v5556
        %5587 = vst [vmem:[#allocation2 + $0x50] sm:$0xff] %v5557
        %5588 = vst [vmem:[#allocation2 + $0x58] sm:$0xff] %v5558
        %5589 = vst [vmem:[#allocation2 + $0x60] sm:$0xff] %v5559
        %5590 = vst [vmem:[#allocation2 + $0x68] sm:$0xff] %v5560
        %5591 = vst [vmem:[#allocation2 + $0x70] sm:$0xff] %v5561
        %5592 = vst [vmem:[#allocation2 + $0x78] sm:$0xff] %v5562
        %5593 = vst [vmem:[#allocation2 + $0x80] sm:$0xff] %v5563
        %5594 = vst [vmem:[#allocation2 + $0x88] sm:$0xff] %v5564
        %5595 = vst [vmem:[#allocation2 + $0x90] sm:$0xff] %v5565
        %5596 = vst [vmem:[#allocation2 + $0x98] sm:$0xff] %v5566
        %5597 = vst [vmem:[#allocation2 + $0xa0] sm:$0xff] %v5567
        %5598 = vst [vmem:[#allocation2 + $0xa8] sm:$0xff] %v5568
        %5599 = vst [vmem:[#allocation2 + $0xb0] sm:$0xff] %v5569
        %5600 = vst [vmem:[#allocation2 + $0xb8] sm:$0xff] %v5570
        %5601 = vst [vmem:[#allocation2 + $0xc0] sm:$0xff] %v5571
        %5602 = vst [vmem:[#allocation2 + $0xc8] sm:$0xff] %v5572
        %5603 = vst [vmem:[#allocation2 + $0xd0] sm:$0xff] %v5573
        %5604 = vst [vmem:[#allocation2 + $0xd8] sm:$0xff] %v5574
        %5605 = vst [vmem:[#allocation2 + $0xe0] sm:$0xff] %v5575
        %5606 = vst [vmem:[#allocation2 + $0xe8] sm:$0x7f] %v5576
        %v5607 = vld [vmem:[#allocation2] sm:$0xff]
        %v5608 = vld [vmem:[#allocation2 + $0x8] sm:$0xff]
        %v5609 = vld [vmem:[#allocation2 + $0x10] sm:$0xff]
        %v5610 = vld [vmem:[#allocation2 + $0x18] sm:$0xff]
        %v5611 = vld [vmem:[#allocation2 + $0x20] sm:$0xff]
        %v5612 = vld [vmem:[#allocation2 + $0x28] sm:$0xff]
        %v5613 = vld [vmem:[#allocation2 + $0x30] sm:$0xff]
        %v5614 = vld [vmem:[#allocation2 + $0x38] sm:$0xff]
        %v5615 = vld [vmem:[#allocation2 + $0x40] sm:$0xff]
        %v5616 = vld [vmem:[#allocation2 + $0x48] sm:$0xff]
        %v5617 = vld [vmem:[#allocation2 + $0x50] sm:$0xff]
        %v5618 = vld [vmem:[#allocation2 + $0x58] sm:$0xff]
        %v5619 = vld [vmem:[#allocation2 + $0x60] sm:$0xff]
        %v5620 = vld [vmem:[#allocation2 + $0x68] sm:$0xff]
        %v5621 = vld [vmem:[#allocation2 + $0x70] sm:$0xff]
        %v5622 = vld [vmem:[#allocation2 + $0x78] sm:$0xff]
        %v5623 = vld [vmem:[#allocation2 + $0x80] sm:$0xff]
        %v5624 = vld [vmem:[#allocation2 + $0x88] sm:$0xff]
        %v5625 = vld [vmem:[#allocation2 + $0x90] sm:$0xff]
        %v5626 = vld [vmem:[#allocation2 + $0x98] sm:$0xff]
        %v5627 = vld [vmem:[#allocation2 + $0xa0] sm:$0xff]
        %v5628 = vld [vmem:[#allocation2 + $0xa8] sm:$0xff]
        %v5629 = vld [vmem:[#allocation2 + $0xb0] sm:$0xff]
        %v5630 = vld [vmem:[#allocation2 + $0xb8] sm:$0xff]
        %v5631 = vld [vmem:[#allocation2 + $0xc0] sm:$0xff]
        %v5632 = vld [vmem:[#allocation2 + $0xc8] sm:$0xff]
        %v5633 = vld [vmem:[#allocation2 + $0xd0] sm:$0xff]
        %v5634 = vld [vmem:[#allocation2 + $0xd8] sm:$0xff]
        %v5635 = vld [vmem:[#allocation2 + $0xe0] sm:$0xff]
        %v5636 = vld [vmem:[#allocation2 + $0xe8] sm:$0xff]
        %v5637 = vld [vmem:[#allocation2 + $0xf0] sm:$0xff]
        %v5638 = vld [vmem:[#allocation2 + $0xf8] sm:$0xff]
        %v5639 = vmax.f32 %v5607, 0.0
        %v5640 = vmax.f32 %v5608, 0.0
        %v5641 = vmax.f32 %v5609, 0.0
        %v5642 = vmax.f32 %v5610, 0.0
        %v5643 = vmax.f32 %v5611, 0.0
        %v5644 = vmax.f32 %v5612, 0.0
        %v5645 = vmax.f32 %v5613, 0.0
        %v5646 = vmax.f32 %v5614, 0.0
        %v5647 = vmax.f32 %v5615, 0.0
        %v5648 = vmax.f32 %v5616, 0.0
        %v5649 = vmax.f32 %v5617, 0.0
        %v5650 = vmax.f32 %v5618, 0.0
        %v5651 = vmax.f32 %v5619, 0.0
        %v5652 = vmax.f32 %v5620, 0.0
        %v5653 = vmax.f32 %v5621, 0.0
        %v5654 = vmax.f32 %v5622, 0.0
        %v5655 = vmax.f32 %v5623, 0.0
        %v5656 = vmax.f32 %v5624, 0.0
        %v5657 = vmax.f32 %v5625, 0.0
        %v5658 = vmax.f32 %v5626, 0.0
        %v5659 = vmax.f32 %v5627, 0.0
        %v5660 = vmax.f32 %v5628, 0.0
        %v5661 = vmax.f32 %v5629, 0.0
        %v5662 = vmax.f32 %v5630, 0.0
        %v5663 = vmax.f32 %v5631, 0.0
        %v5664 = vmax.f32 %v5632, 0.0
        %v5665 = vmax.f32 %v5633, 0.0
        %v5666 = vmax.f32 %v5634, 0.0
        %v5667 = vmax.f32 %v5635, 0.0
        %v5668 = vmax.f32 %v5636, 0.0
        %v5669 = vmax.f32 %v5637, 0.0
        %v5670 = vmax.f32 %v5638, 0.0
        %v5671 = vpack.c.bf16 %v5639, %v5639
        %v5672 = vpack.c.bf16 %v5640, %v5640
        %v5673 = vpack.c.bf16 %v5641, %v5641
        %v5674 = vpack.c.bf16 %v5642, %v5642
        %v5675 = vpack.c.bf16 %v5643, %v5643
        %v5676 = vpack.c.bf16 %v5644, %v5644
        %v5677 = vpack.c.bf16 %v5645, %v5645
        %v5678 = vpack.c.bf16 %v5646, %v5646
        %v5679 = vpack.c.bf16 %v5647, %v5647
        %v5680 = vpack.c.bf16 %v5648, %v5648
        %v5681 = vpack.c.bf16 %v5649, %v5649
        %v5682 = vpack.c.bf16 %v5650, %v5650
        %v5683 = vpack.c.bf16 %v5651, %v5651
        %v5684 = vpack.c.bf16 %v5652, %v5652
        %v5685 = vpack.c.bf16 %v5653, %v5653
        %v5686 = vpack.c.bf16 %v5654, %v5654
        %v5687 = vpack.c.bf16 %v5655, %v5655
        %v5688 = vpack.c.bf16 %v5656, %v5656
        %v5689 = vpack.c.bf16 %v5657, %v5657
        %v5690 = vpack.c.bf16 %v5658, %v5658
        %v5691 = vpack.c.bf16 %v5659, %v5659
        %v5692 = vpack.c.bf16 %v5660, %v5660
        %v5693 = vpack.c.bf16 %v5661, %v5661
        %v5694 = vpack.c.bf16 %v5662, %v5662
        %v5695 = vpack.c.bf16 %v5663, %v5663
        %v5696 = vpack.c.bf16 %v5664, %v5664
        %v5697 = vpack.c.bf16 %v5665, %v5665
        %v5698 = vpack.c.bf16 %v5666, %v5666
        %v5699 = vpack.c.bf16 %v5667, %v5667
        %v5700 = vpack.c.bf16 %v5668, %v5668
        %v5701 = vpack.c.bf16 %v5669, %v5669
        %v5702 = vpack.c.bf16 %v5670, %v5670
        %vm5703 = vcmask 60416
        %5704 = vst.msk [vmem:[%s241] sm:$0xf] %vm5703, %v5671
        %5705 = vst.msk [vmem:[%s241 + $0x4] sm:$0xf] %vm5703, %v5672
        %5706 = vst.msk [vmem:[%s241 + $0x8] sm:$0xf] %vm5703, %v5673
        %5707 = vst.msk [vmem:[%s241 + $0xc] sm:$0xf] %vm5703, %v5674
        %5708 = vst.msk [vmem:[%s241 + $0x10] sm:$0xf] %vm5703, %v5675
        %5709 = vst.msk [vmem:[%s241 + $0x14] sm:$0xf] %vm5703, %v5676
        %5710 = vst.msk [vmem:[%s241 + $0x18] sm:$0xf] %vm5703, %v5677
        %5711 = vst.msk [vmem:[%s241 + $0x1c] sm:$0xf] %vm5703, %v5678
        %5712 = vst.msk [vmem:[%s241 + $0x20] sm:$0xf] %vm5703, %v5679
        %5713 = vst.msk [vmem:[%s241 + $0x24] sm:$0xf] %vm5703, %v5680
        %5714 = vst.msk [vmem:[%s241 + $0x28] sm:$0xf] %vm5703, %v5681
        %5715 = vst.msk [vmem:[%s241 + $0x2c] sm:$0xf] %vm5703, %v5682
        %5716 = vst.msk [vmem:[%s241 + $0x30] sm:$0xf] %vm5703, %v5683
        %5717 = vst.msk [vmem:[%s241 + $0x34] sm:$0xf] %vm5703, %v5684
        %5718 = vst.msk [vmem:[%s241 + $0x38] sm:$0xf] %vm5703, %v5685
        %5719 = vst.msk [vmem:[%s241 + $0x3c] sm:$0xf] %vm5703, %v5686
        %5720 = vst.msk [vmem:[%s241 + $0x40] sm:$0xf] %vm5703, %v5687
        %5721 = vst.msk [vmem:[%s241 + $0x44] sm:$0xf] %vm5703, %v5688
        %5722 = vst.msk [vmem:[%s241 + $0x48] sm:$0xf] %vm5703, %v5689
        %5723 = vst.msk [vmem:[%s241 + $0x4c] sm:$0xf] %vm5703, %v5690
        %5724 = vst.msk [vmem:[%s241 + $0x50] sm:$0xf] %vm5703, %v5691
        %5725 = vst.msk [vmem:[%s241 + $0x54] sm:$0xf] %vm5703, %v5692
        %5726 = vst.msk [vmem:[%s241 + $0x58] sm:$0xf] %vm5703, %v5693
        %5727 = vst.msk [vmem:[%s241 + $0x5c] sm:$0xf] %vm5703, %v5694
        %5728 = vst.msk [vmem:[%s241 + $0x60] sm:$0xf] %vm5703, %v5695
        %5729 = vst.msk [vmem:[%s241 + $0x64] sm:$0xf] %vm5703, %v5696
        %5730 = vst.msk [vmem:[%s241 + $0x68] sm:$0xf] %vm5703, %v5697
        %5731 = vst.msk [vmem:[%s241 + $0x6c] sm:$0xf] %vm5703, %v5698
        %5732 = vst.msk [vmem:[%s241 + $0x70] sm:$0xf] %vm5703, %v5699
        %5733 = vst.msk [vmem:[%s241 + $0x74] sm:$0xf] %vm5703, %v5700
        %5734 = vst.msk [vmem:[%s241 + $0x78] sm:$0xf] %vm5703, %v5701
        %5735 = vst.msk [vmem:[%s241 + $0x7c] sm:$0xf] %vm5703, %v5702
        %p5736 = scmp.lt.s32.totalorder %s17, 1
        %s5737 = scalar_select %p5736, %s17, 1
        %s5738 = smul.addr %s5737, 32
        %s5739 = smul.addr %s5738, 4
        %s5740 = scalar_lea.vmem %s5, %s5739
        // Predicated region
        $region45: #{tpu_custom_call.1} parent=39 // pred_check
          %p5741 = pneg %p145
        $region46: #{tpu_custom_call.1} parent=39 // pred_check_branch
          %5743 = sbr.rel (%p5741) target = $region48
        $region47: #{tpu_custom_call.1} parent=39 // pred_region
          _
        $region48: #{tpu_custom_call.1} parent=39 // pred_fallthru
          _
      $region40: #{tpu_custom_call.1} parent=5 // pred_fallthru
        _
      %p5744 = scmp.le.s32.totalorder 2, %s12
      // Predicated region
      $region49: #{tpu_custom_call.1} parent=5 // pred_check
        %p5745 = pneg %p5744
      $region50: #{tpu_custom_call.1} parent=5 // pred_check_branch
        %5747 = sbr.rel (%p5745) target = $region52
      $region51: #{tpu_custom_call.1} parent=5 // pred_region
        %s5748 = ssub.s32 %s12, 2
        // Predicated region
        $region53: #{tpu_custom_call.1} parent=51 // pred_check
          %p5749 = pneg %p151
        $region54: #{tpu_custom_call.1} parent=51 // pred_check_branch
          %5751 = sbr.rel (%p5749) target = $region56
        $region55: #{tpu_custom_call.1} parent=51 // pred_region
          %p5752 = scmp.lt.s32.totalorder %s18, 1
          %s5753 = scalar_select %p5752, %s18, 1
          %s5754 = smul.addr %s5753, 32
          %s5755 = smul.addr %s5754, 4
          %s5756 = scalar_lea.vmem %s5, %s5755
        $region56: #{tpu_custom_call.1} parent=51 // pred_fallthru
          _
      $region52: #{tpu_custom_call.1} parent=5 // pred_fallthru
        _
    $region6: #{tpu_custom_call.1} parent=1 // loop_footer
      %s16 = sadd.s32 1, %s12
    $region7: #{tpu_custom_call.1} parent=1 // loop_footer_branch
      %11 = sbr.rel target = $region3
    $region8: #{tpu_custom_call.1} parent=1 // loop_exit
      _
    %5757 = vsyncpa [#allocation4], 1
    %s5758 = scalar_lea.sflag [#allocation4], 1
    %5759 = vsyncpa %s5758, 1

</llo_original>
